<compile_context>
chip_gen: v7x
topology: tpu7x:2x2x1
jax: 0.10.0
libtpu: 0.0.40
codegen_flags: <defaults>
</compile_context>

<pallas_src>
import functools

import jax
import jax.numpy as jnp
from jax.experimental import pallas as pl
from jax.experimental.pallas import tpu as pltpu

_EPS = 1e-5
_LANE = 128


def _round_up(x, m):
    return (x + m - 1) // m * m


# --------------------------------------------------------------------------
# in-kernel helpers
# --------------------------------------------------------------------------
def _pool2x2(x, cin):
    """x: (R, 2, Wp, 2*Cin) bf16 with the 2x2 pool phases folded in -> (R, Wp, Cin)."""
    xm = jnp.maximum(x[:, 0], x[:, 1])                   # max over the 2 pooled rows
    return jnp.maximum(xm[:, :, :cin], xm[:, :, cin:])   # max over the 2 pooled cols


def _conv3x3_acc(pad_ref, w_ref, th, wp, c):
    """3x3 SAME conv of one padded row tile via 9 accumulated K=C MXU matmuls.

    pad_ref : (th+2, wp+2, c) bf16 padded activation tile (1-px halo).
    w_ref   : (9*c, cout) bf16 packed weights (tap-major, lane-aligned slices).
    Returns (th*wp, cout) f32.  No bias -- cancelled by training-mode BN.

    Reading the shifted windows directly from pad_ref (instead of materializing
    a 9x im2col slab) keeps the vst slot free on v6e/v7x and shrinks scratch.
    """
    acc = None
    for t in range(9):
        ky, kx = t // 3, t % 3
        win = pad_ref[ky:ky + th, kx:kx + wp, :].reshape(th * wp, c)
        part = jnp.dot(win, w_ref[t * c:(t + 1) * c, :],
                       preferred_element_type=jnp.float32)
        acc = part if acc is None else acc + part
    return acc


def _fill_pad(pad_ref, interior, top_fn, bot_fn, th, wp):
    """Fill the (th+2, wp+2, C) padded-activation scratch for one row tile.

    top_fn/bot_fn produce the (1, wp, C) neighbor rows; at true image borders
    (first / last row tile) the halo rows stay zero (SAME conv padding).
    Every used element is rewritten each grid step, so the persistent scratch
    is safe under "parallel" (megacore-sharded) grid axes.
    """
    c = pad_ref.shape[-1]
    t = pl.program_id(1)
    n_t = pl.num_programs(1)

    pad_ref[1:th + 1, 1:wp + 1, :] = interior
    zrow = jnp.zeros((1, wp, c), pad_ref.dtype)
    pad_ref[0:1, 1:wp + 1, :] = zrow
    pad_ref[th + 1:th + 2, 1:wp + 1, :] = zrow

    @pl.when(t > 0)
    def _():
        pad_ref[0:1, 1:wp + 1, :] = top_fn()

    @pl.when(t < n_t - 1)
    def _():
        pad_ref[th + 1:th + 2, 1:wp + 1, :] = bot_fn()

    zcol = jnp.zeros((th + 2, 1, c), pad_ref.dtype)
    pad_ref[:, 0:1, :] = zcol
    pad_ref[:, wp + 1:wp + 2, :] = zcol


# --------------------------------------------------------------------------
# pass 1: in-kernel 2x2 max-pool + conv1 + BN1 partial sums
# --------------------------------------------------------------------------
def _pool_conv1_kernel(xm_ref, xt_ref, xb_ref, w1_ref, y1_ref, s1_ref, pad_ref):
    _, th, _, wp, two_cin = xm_ref.shape
    cin = two_cin // 2

    _fill_pad(pad_ref,
              _pool2x2(xm_ref[0], cin),
              lambda: _pool2x2(xt_ref[0], cin),
              lambda: _pool2x2(xb_ref[0], cin),
              th, wp)

    y = _conv3x3_acc(pad_ref, w1_ref, th, wp, cin)      # (th*wp, Cmid) f32
    cmid = y.shape[-1]
    y1_ref[0] = y.reshape(th, wp, cmid).astype(y1_ref.dtype)
    s1_ref[0, 0:1, :] = jnp.sum(y, axis=0, keepdims=True)
    s1_ref[0, 1:2, :] = jnp.sum(y * y, axis=0, keepdims=True)


# --------------------------------------------------------------------------
# pass 2: BN1 (pre-folded affine) + ReLU + conv2 + BN2 partial sums
# --------------------------------------------------------------------------
def _bn_relu_conv2_kernel(y1m_ref, y1t_ref, y1b_ref, ab1_ref, w2_ref,
                          y2_ref, s2_ref, pad_ref):
    _, th, wp, cm = y1m_ref.shape
    a = ab1_ref[0:1, :].reshape(1, 1, cm)
    c = ab1_ref[1:2, :].reshape(1, 1, cm)

    def bn_relu(v):  # folded BN1 affine + ReLU, bf16 out for the MXU
        return jnp.maximum(v.astype(jnp.float32) * a + c, 0.0).astype(pad_ref.dtype)

    _fill_pad(pad_ref,
              bn_relu(y1m_ref[0]),
              lambda: bn_relu(y1t_ref[0]),
              lambda: bn_relu(y1b_ref[0]),
              th, wp)

    y = _conv3x3_acc(pad_ref, w2_ref, th, wp, cm)       # (th*wp, Cout) f32
    cout = y.shape[-1]
    y2_ref[0] = y.reshape(th, wp, cout).astype(y2_ref.dtype)
    s2_ref[0, 0:1, :] = jnp.sum(y, axis=0, keepdims=True)
    s2_ref[0, 1:2, :] = jnp.sum(y * y, axis=0, keepdims=True)


# --------------------------------------------------------------------------
# pass 3: BN2 (pre-folded affine) + ReLU, writes the unpadded Cout channels
# --------------------------------------------------------------------------
def _bn_relu_out_kernel(y2_ref, ab2_ref, o_ref):
    _, th, wp, cp = y2_ref.shape
    cout = o_ref.shape[-1]
    a = ab2_ref[0:1, :].reshape(1, 1, cp)
    c = ab2_ref[1:2, :].reshape(1, 1, cp)
    h = jnp.maximum(y2_ref[0].astype(jnp.float32) * a + c, 0.0)
    o_ref[0] = h[:, :, :cout]


# --------------------------------------------------------------------------
# VMEM budgeting
# --------------------------------------------------------------------------
def _vmem_estimate(th, wp, cin_p, cmid_p, cout_p):
    """Rough per-grid-step VMEM footprint (bytes) of the heavier conv pass."""
    bf = 2
    # pass 1: pooled-layout input tile + 2 halo rows (x2 double buffering),
    # output tile (x2), BN partials, weights (x2), padded-activation scratch.
    p1 = 2 * ((th + 2) * 2 * wp * 2 * cin_p * bf
              + th * wp * cmid_p * bf
              + 2 * cmid_p * 4
              + 9 * cin_p * cmid_p * bf)
    p1 += (th + 2) * (wp + 2) * cin_p * bf
    # pass 2: bf16 activation tile + 2 halo rows, output tile, partials,
    # weights, BN affine, padded scratch.
    p2 = 2 * ((th + 2) * wp * cmid_p * bf
              + th * wp * cout_p * bf
              + 2 * cout_p * 4
              + 9 * cmid_p * cout_p * bf
              + 2 * cmid_p * 4)
    p2 += (th + 2) * (wp + 2) * cmid_p * bf
    return max(p1, p2)


def _choose_row_tile(hp, wp, cin_p, cmid_p, cout_p, budget=40 << 20):
    """Largest divisor of hp whose per-step footprint fits the budget.
    40 MiB leaves pipelining headroom even on v7x's 64 MiB physical VMEM."""
    for th in range(hp, 0, -1):
        if hp % th == 0 and _vmem_estimate(th, wp, cin_p, cmid_p, cout_p) <= budget:
            return th
    return 1


# --------------------------------------------------------------------------
# wrapper
# --------------------------------------------------------------------------
@functools.partial(jax.jit, static_argnames=("row_tile",))
def down_forward(x_nchw, params, row_tile=None):
    N, Cin, H, W = x_nchw.shape
    assert H % 2 == 0 and W % 2 == 0, "even spatial dims required (MaxPool2d(2))"
    Hp, Wp = H // 2, W // 2
    M = N * Hp * Wp

    w1, w2 = params["w1"], params["w2"]       # (3,3,Cin,Cmid), (3,3,Cmid,Cout)
    Cmid, Cout = w1.shape[-1], w2.shape[-1]
    Cin_p = _round_up(Cin, _LANE)
    Cmid_p = _round_up(Cmid, _LANE)
    Cout_p = _round_up(Cout, _LANE)

    TH = row_tile or _choose_row_tile(Hp, Wp, Cin_p, Cmid_p, Cout_p)
    assert Hp % TH == 0, (Hp, TH)
    nT = Hp // TH
    vlim = int(min(60 << 20,
                   max(32 << 20,
                       2 * _vmem_estimate(TH, Wp, Cin_p, Cmid_p, Cout_p))))

    # layout glue: NCHW -> NHWC (channels on lanes), lane-pad channels, bf16,
    # fold the 2x2 pool phases into (row-pair, lane-pair) with a free reshape.
    x = jnp.transpose(x_nchw, (0, 2, 3, 1))
    x = jnp.pad(x, ((0, 0), (0, 0), (0, 0), (0, Cin_p - Cin)))
    x = x.astype(jnp.bfloat16).reshape(N, Hp, 2, Wp, 2 * Cin_p)

    def pack_w(w, cin_p, cout_p):
        cin, cout = w.shape[2], w.shape[3]
        w = jnp.pad(w, ((0, 0), (0, 0), (0, cin_p - cin), (0, cout_p - cout)))
        return w.reshape(9 * cin_p, cout_p).astype(jnp.bfloat16)

    w1p = pack_w(w1, Cin_p, Cmid_p)
    w2p = pack_w(w2, Cmid_p, Cout_p)

    def pad_vec(v, cp):
        return jnp.pad(v.reshape(-1).astype(jnp.float32), (0, cp - v.size))

    g1, be1 = pad_vec(params["g1"], Cmid_p), pad_vec(params["be1"], Cmid_p)
    g2, be2 = pad_vec(params["g2"], Cout_p), pad_vec(params["be2"], Cout_p)

    cparams = pltpu.CompilerParams(
        dimension_semantics=("parallel", "parallel"),
        vmem_limit_bytes=vlim,
    )
    grid = (N, nT)

    def top_row(t):      # pooled row just above the tile, clamped at the border
        return jnp.maximum(t * TH - 1, 0)

    def bot_row(t):      # pooled row just below the tile, clamped at the border
        return jnp.minimum(t * TH + TH, Hp - 1)

    # ---------------- pass 1: maxpool + conv1 (+ BN1 partials) ----------------
    y1_pre, s1 = pl.pallas_call(
        _pool_conv1_kernel,
        grid=grid,
        out_shape=(jax.ShapeDtypeStruct((N, Hp, Wp, Cmid_p), jnp.bfloat16),
                   jax.ShapeDtypeStruct((N * nT, 2, Cmid_p), jnp.float32)),
        in_specs=[
            pl.BlockSpec((1, TH, 2, Wp, 2 * Cin_p), lambda n, t: (n, t, 0, 0, 0)),
            pl.BlockSpec((1, 1, 2, Wp, 2 * Cin_p),
                         lambda n, t: (n, top_row(t), 0, 0, 0)),
            pl.BlockSpec((1, 1, 2, Wp, 2 * Cin_p),
                         lambda n, t: (n, bot_row(t), 0, 0, 0)),
            # NOTE: constant-index weight operand; pipeline_mode=pl.Buffered(1)
            # could reclaim its second buffer if VMEM ever gets tight.
            pl.BlockSpec((9 * Cin_p, Cmid_p), lambda n, t: (0, 0)),
        ],
        out_specs=(
            pl.BlockSpec((1, TH, Wp, Cmid_p), lambda n, t: (n, t, 0, 0)),
            pl.BlockSpec((1, 2, Cmid_p), lambda n, t: (n * nT + t, 0, 0)),
        ),
        scratch_shapes=[pltpu.VMEM((TH + 2, Wp + 2, Cin_p), jnp.bfloat16)],
        compiler_params=cparams,
    )(x, x, x, w1p)

    # global (whole-batch) BN statistics, folded into a*x + c  (tiny JAX ops)
    def bn_affine(stats, g, be):
        s = jnp.sum(stats, axis=0)                  # (2, C)
        mu = s[0] / M
        var = s[1] / M - mu * mu                    # biased, PyTorch training BN
        a = g * jax.lax.rsqrt(var + _EPS)
        return jnp.stack([a, be - mu * a], axis=0)  # (2, C) f32

    ab1 = bn_affine(s1, g1, be1)

    # ---------------- pass 2: BN1+ReLU + conv2 (+ BN2 partials) ---------------
    y2_pre, s2 = pl.pallas_call(
        _bn_relu_conv2_kernel,
        grid=grid,
        out_shape=(jax.ShapeDtypeStruct((N, Hp, Wp, Cout_p), jnp.bfloat16),
                   jax.ShapeDtypeStruct((N * nT, 2, Cout_p), jnp.float32)),
        in_specs=[
            pl.BlockSpec((1, TH, Wp, Cmid_p), lambda n, t: (n, t, 0, 0)),
            pl.BlockSpec((1, 1, Wp, Cmid_p), lambda n, t: (n, top_row(t), 0, 0)),
            pl.BlockSpec((1, 1, Wp, Cmid_p), lambda n, t: (n, bot_row(t), 0, 0)),
            pl.BlockSpec((2, Cmid_p), lambda n, t: (0, 0)),
            pl.BlockSpec((9 * Cmid_p, Cout_p), lambda n, t: (0, 0)),
        ],
        out_specs=(
            pl.BlockSpec((1, TH, Wp, Cout_p), lambda n, t: (n, t, 0, 0)),
            pl.BlockSpec((1, 2, Cout_p), lambda n, t: (n * nT + t, 0, 0)),
        ),
        scratch_shapes=[pltpu.VMEM((TH + 2, Wp + 2, Cmid_p), jnp.bfloat16)],
        compiler_params=cparams,
    )(y1_pre, y1_pre, y1_pre, ab1, w2p)

    ab2 = bn_affine(s2, g2, be2)

    # ---------------- pass 3: BN2 + ReLU (emit unpadded channels) -------------
    out_nhwc = pl.pallas_call(
        _bn_relu_out_kernel,
        grid=grid,
        out_shape=jax.ShapeDtypeStruct((N, Hp, Wp, Cout), jnp.float32),
        in_specs=[
            pl.BlockSpec((1, TH, Wp, Cout_p), lambda n, t: (n, t, 0, 0)),
            pl.BlockSpec((2, Cout_p), lambda n, t: (0, 0)),
        ],
        out_specs=pl.BlockSpec((1, TH, Wp, Cout), lambda n, t: (n, t, 0, 0)),
        compiler_params=cparams,
    )(y2_pre, ab2)

    return jnp.transpose(out_nhwc, (0, 3, 1, 2))     # NHWC -> NCHW


# --------------------------------------------------------------------------
# params + pure-JAX reference (training-mode BN, f32)
# --------------------------------------------------------------------------
def init_params(key, in_channels, out_channels, mid_channels=None):
    mid = mid_channels or out_channels
    k = jax.random.split(key, 8)
    return {
        "w1": jax.random.normal(k[0], (3, 3, in_channels, mid), jnp.float32) * 0.2,
        "b1": jax.random.normal(k[1], (mid,), jnp.float32) * 0.1,   # cancelled by BN
        "g1": 1.0 + 0.1 * jax.random.normal(k[2], (mid,), jnp.float32),
        "be1": 0.1 * jax.random.normal(k[3], (mid,), jnp.float32),
        "w2": jax.random.normal(k[4], (3, 3, mid, out_channels), jnp.float32) * 0.2,
        "b2": jax.random.normal(k[5], (out_channels,), jnp.float32) * 0.1,
        "g2": 1.0 + 0.1 * jax.random.normal(k[6], (out_channels,), jnp.float32),
        "be2": 0.1 * jax.random.normal(k[7], (out_channels,), jnp.float32),
    }


def down_ref(x_nchw, params):
    """Pure-JAX f32 reference mirroring the PyTorch forward (training-mode BN)."""
    x = jnp.transpose(x_nchw, (0, 2, 3, 1))
    p = jax.lax.reduce_window(x, -jnp.inf, jax.lax.max,
                              (1, 2, 2, 1), (1, 2, 2, 1), "VALID")

    def conv_bn_relu(h, w, b, g, be):
        y = jax.lax.conv_general_dilated(
            h, w, window_strides=(1, 1), padding="SAME",
            dimension_numbers=("NHWC", "HWIO", "NHWC")) + b
        mu = jnp.mean(y, axis=(0, 1, 2))
        var = jnp.mean((y - mu) ** 2, axis=(0, 1, 2))
        return jnp.maximum((y - mu) * jax.lax.rsqrt(var + _EPS) * g + be, 0.0)

    h1 = conv_bn_relu(p, params["w1"], params["b1"], params["g1"], params["be1"])
    h2 = conv_bn_relu(h1, params["w2"], params["b2"], params["g2"], params["be2"])
    return jnp.transpose(h2, (0, 3, 1, 2))


if __name__ == "__main__":
    key = jax.random.PRNGKey(0)
    kx, kp = jax.random.split(key)
    N, Cin, H, W = 2, 4, 16, 16
    Cout = 8

    x = jax.random.normal(kx, (N, Cin, H, W), jnp.float32)
    params = init_params(kp, Cin, Cout)
    ref = down_ref(x, params)

    # default (auto row tile: one tile per sample at this toy size)
    out = down_forward(x, params)
    jax.block_until_ready(out)
    assert out.shape == (N, Cout, H // 2, W // 2), out.shape

    # forced multi-tile run to exercise the row-halo path (2 tiles of 4 rows)
    out_tiled = down_forward(x, params, row_tile=4)
    jax.block_until_ready(out_tiled)
    assert out_tiled.shape == (N, Cout, H // 2, W // 2), out_tiled.shape

    for o in (out, out_tiled):
        max_err = float(jnp.max(jnp.abs(o - ref)))
        mean_err = float(jnp.mean(jnp.abs(o - ref)))
        # bf16 MXU operands through two conv+BN stages -> loose absolute tolerance.
        if max_err > 1e-1 or mean_err > 1e-2:
            raise AssertionError(f"mismatch vs reference: max={max_err} mean={mean_err}")
    print("KERNEL_OK")
</pallas_src>

<mosaic_0001>
module attributes {stable_mosaic.version = 11 : i64} {
  func.func @_pool_conv1_kernel(%arg0: i32, %arg1: i32, %arg2: memref<1x8x2x8x256xbf16, #tpu.memory_space<vmem>>, %arg3: memref<1x1x2x8x256xbf16, #tpu.memory_space<vmem>>, %arg4: memref<1x1x2x8x256xbf16, #tpu.memory_space<vmem>>, %arg5: memref<1152x128xbf16, #tpu.memory_space<vmem>>, %arg6: memref<1x8x8x128xbf16, #tpu.memory_space<vmem>>, %arg7: memref<1x2x128xf32, #tpu.memory_space<vmem>>, %arg8: memref<10x10x128xbf16, #tpu.memory_space<vmem>>) attributes {dimension_semantics = [#tpu.dimension_semantics<parallel>, #tpu.dimension_semantics<parallel>], iteration_bounds = array<i64: 2, 1>, scalar_prefetch = 0 : i64, scratch_operands = 1 : i64, tpu.core_type = #tpu.core_type<tc>, window_params = [{transform_indices = @transform_0, window_bounds = array<i64: 1, 8, 2, 8, 256>}, {transform_indices = @transform_1, window_bounds = array<i64: 1, 1, 2, 8, 256>}, {transform_indices = @transform_2, window_bounds = array<i64: 1, 1, 2, 8, 256>}, {pipeline_mode = #tpu.pipeline_mode<synchronous>, transform_indices = @transform_3, window_bounds = array<i64: 1152, 128>}, {transform_indices = @transform_4, window_bounds = array<i64: 1, 8, 8, 128>}, {transform_indices = @transform_5, window_bounds = array<i64: 1, 2, 128>}]} {
    %c0 = arith.constant 0 : index
    %c0_0 = arith.constant 0 : index
    %c0_1 = arith.constant 0 : index
    %c0_2 = arith.constant 0 : index
    %c0_3 = arith.constant 0 : index
    %0 = vector.load %arg2[%c0, %c0_0, %c0_1, %c0_2, %c0_3] : memref<1x8x2x8x256xbf16, #tpu.memory_space<vmem>>, vector<1x8x2x8x256xbf16>
    %1 = vector.shape_cast %0 : vector<1x8x2x8x256xbf16> to vector<8x2x8x256xbf16>
    %2 = vector.extract_strided_slice %1 {offsets = [0, 0, 0, 0], sizes = [8, 1, 8, 256], strides = [1, 1, 1, 1]} : vector<8x2x8x256xbf16> to vector<8x1x8x256xbf16>
    %3 = vector.shape_cast %2 : vector<8x1x8x256xbf16> to vector<8x8x256xbf16>
    %4 = vector.extract_strided_slice %1 {offsets = [0, 1, 0, 0], sizes = [8, 1, 8, 256], strides = [1, 1, 1, 1]} : vector<8x2x8x256xbf16> to vector<8x1x8x256xbf16>
    %5 = vector.shape_cast %4 : vector<8x1x8x256xbf16> to vector<8x8x256xbf16>
    %6 = arith.maximumf %3, %5 : vector<8x8x256xbf16>
    %7 = vector.extract_strided_slice %6 {offsets = [0, 0, 0], sizes = [8, 8, 128], strides = [1, 1, 1]} : vector<8x8x256xbf16> to vector<8x8x128xbf16>
    %8 = vector.extract_strided_slice %6 {offsets = [0, 0, 128], sizes = [8, 8, 128], strides = [1, 1, 1]} : vector<8x8x256xbf16> to vector<8x8x128xbf16>
    %9 = arith.maximumf %7, %8 : vector<8x8x128xbf16>
    %c1 = arith.constant 1 : index
    %c1_4 = arith.constant 1 : index
    %c0_5 = arith.constant 0 : index
    %10 = vector.load %arg8[%c1, %c1_4, %c0_5] : memref<10x10x128xbf16, #tpu.memory_space<vmem>>, vector<8x8x128xbf16>
    tpu.vector_store %arg8[%c1, %c1_4, %c0_5], %9 {strides = array<i32>} : memref<10x10x128xbf16, #tpu.memory_space<vmem>>, vector<8x8x128xbf16>,
    %cst = arith.constant 0.000000e+00 : bf16
    %11 = vector.broadcast %cst : bf16 to vector<1x8x128xbf16>
    %c0_6 = arith.constant 0 : index
    %c1_7 = arith.constant 1 : index
    %c0_8 = arith.constant 0 : index
    %12 = vector.load %arg8[%c0_6, %c1_7, %c0_8] : memref<10x10x128xbf16, #tpu.memory_space<vmem>>, vector<1x8x128xbf16>
    tpu.vector_store %arg8[%c0_6, %c1_7, %c0_8], %11 {strides = array<i32>} : memref<10x10x128xbf16, #tpu.memory_space<vmem>>, vector<1x8x128xbf16>,
    %c9 = arith.constant 9 : index
    %c1_9 = arith.constant 1 : index
    %c0_10 = arith.constant 0 : index
    %13 = vector.load %arg8[%c9, %c1_9, %c0_10] : memref<10x10x128xbf16, #tpu.memory_space<vmem>>, vector<1x8x128xbf16>
    tpu.vector_store %arg8[%c9, %c1_9, %c0_10], %11 {strides = array<i32>} : memref<10x10x128xbf16, #tpu.memory_space<vmem>>, vector<1x8x128xbf16>,
    %c0_i32 = arith.constant 0 : i32
    %14 = arith.cmpi sgt, %arg1, %c0_i32 : i32
    %15 = arith.extui %14 : i1 to i32
    %c0_i32_11 = arith.constant 0 : i32
    %16 = arith.cmpi ne, %15, %c0_i32_11 : i32
    scf.if %16 {
      %c0_78 = arith.constant 0 : index
      %c0_79 = arith.constant 0 : index
      %c0_80 = arith.constant 0 : index
      %c0_81 = arith.constant 0 : index
      %c0_82 = arith.constant 0 : index
      %83 = vector.load %arg3[%c0_78, %c0_79, %c0_80, %c0_81, %c0_82] : memref<1x1x2x8x256xbf16, #tpu.memory_space<vmem>>, vector<1x1x2x8x256xbf16>
      %84 = vector.shape_cast %83 : vector<1x1x2x8x256xbf16> to vector<1x2x8x256xbf16>
      %85 = vector.extract_strided_slice %84 {offsets = [0, 0, 0, 0], sizes = [1, 1, 8, 256], strides = [1, 1, 1, 1]} : vector<1x2x8x256xbf16> to vector<1x1x8x256xbf16>
      %86 = vector.shape_cast %85 : vector<1x1x8x256xbf16> to vector<1x8x256xbf16>
      %87 = vector.extract_strided_slice %84 {offsets = [0, 1, 0, 0], sizes = [1, 1, 8, 256], strides = [1, 1, 1, 1]} : vector<1x2x8x256xbf16> to vector<1x1x8x256xbf16>
      %88 = vector.shape_cast %87 : vector<1x1x8x256xbf16> to vector<1x8x256xbf16>
      %89 = arith.maximumf %86, %88 : vector<1x8x256xbf16>
      %90 = vector.extract_strided_slice %89 {offsets = [0, 0, 0], sizes = [1, 8, 128], strides = [1, 1, 1]} : vector<1x8x256xbf16> to vector<1x8x128xbf16>
      %91 = vector.extract_strided_slice %89 {offsets = [0, 0, 128], sizes = [1, 8, 128], strides = [1, 1, 1]} : vector<1x8x256xbf16> to vector<1x8x128xbf16>
      %92 = arith.maximumf %90, %91 : vector<1x8x128xbf16>
      %c0_83 = arith.constant 0 : index
      %c1_84 = arith.constant 1 : index
      %c0_85 = arith.constant 0 : index
      %93 = vector.load %arg8[%c0_83, %c1_84, %c0_85] : memref<10x10x128xbf16, #tpu.memory_space<vmem>>, vector<1x8x128xbf16>
      tpu.vector_store %arg8[%c0_83, %c1_84, %c0_85], %92 {strides = array<i32>} : memref<10x10x128xbf16, #tpu.memory_space<vmem>>, vector<1x8x128xbf16>,
    } else {
    }
    %c0_i32_12 = arith.constant 0 : i32
    %17 = arith.cmpi slt, %arg1, %c0_i32_12 : i32
    %18 = arith.extui %17 : i1 to i32
    %c0_i32_13 = arith.constant 0 : i32
    %19 = arith.cmpi ne, %18, %c0_i32_13 : i32
    scf.if %19 {
      %c0_78 = arith.constant 0 : index
      %c0_79 = arith.constant 0 : index
      %c0_80 = arith.constant 0 : index
      %c0_81 = arith.constant 0 : index
      %c0_82 = arith.constant 0 : index
      %83 = vector.load %arg4[%c0_78, %c0_79, %c0_80, %c0_81, %c0_82] : memref<1x1x2x8x256xbf16, #tpu.memory_space<vmem>>, vector<1x1x2x8x256xbf16>
      %84 = vector.shape_cast %83 : vector<1x1x2x8x256xbf16> to vector<1x2x8x256xbf16>
      %85 = vector.extract_strided_slice %84 {offsets = [0, 0, 0, 0], sizes = [1, 1, 8, 256], strides = [1, 1, 1, 1]} : vector<1x2x8x256xbf16> to vector<1x1x8x256xbf16>
      %86 = vector.shape_cast %85 : vector<1x1x8x256xbf16> to vector<1x8x256xbf16>
      %87 = vector.extract_strided_slice %84 {offsets = [0, 1, 0, 0], sizes = [1, 1, 8, 256], strides = [1, 1, 1, 1]} : vector<1x2x8x256xbf16> to vector<1x1x8x256xbf16>
      %88 = vector.shape_cast %87 : vector<1x1x8x256xbf16> to vector<1x8x256xbf16>
      %89 = arith.maximumf %86, %88 : vector<1x8x256xbf16>
      %90 = vector.extract_strided_slice %89 {offsets = [0, 0, 0], sizes = [1, 8, 128], strides = [1, 1, 1]} : vector<1x8x256xbf16> to vector<1x8x128xbf16>
      %91 = vector.extract_strided_slice %89 {offsets = [0, 0, 128], sizes = [1, 8, 128], strides = [1, 1, 1]} : vector<1x8x256xbf16> to vector<1x8x128xbf16>
      %92 = arith.maximumf %90, %91 : vector<1x8x128xbf16>
      %c9_83 = arith.constant 9 : index
      %c1_84 = arith.constant 1 : index
      %c0_85 = arith.constant 0 : index
      %93 = vector.load %arg8[%c9_83, %c1_84, %c0_85] : memref<10x10x128xbf16, #tpu.memory_space<vmem>>, vector<1x8x128xbf16>
      tpu.vector_store %arg8[%c9_83, %c1_84, %c0_85], %92 {strides = array<i32>} : memref<10x10x128xbf16, #tpu.memory_space<vmem>>, vector<1x8x128xbf16>,
    } else {
    }
    %cst_14 = arith.constant 0.000000e+00 : bf16
    %20 = vector.broadcast %cst_14 : bf16 to vector<10x1x128xbf16>
    %c0_15 = arith.constant 0 : index
    %c0_16 = arith.constant 0 : index
    %c0_17 = arith.constant 0 : index
    %21 = vector.load %arg8[%c0_15, %c0_16, %c0_17] : memref<10x10x128xbf16, #tpu.memory_space<vmem>>, vector<10x1x128xbf16>
    tpu.vector_store %arg8[%c0_15, %c0_16, %c0_17], %20 {strides = array<i32>} : memref<10x10x128xbf16, #tpu.memory_space<vmem>>, vector<10x1x128xbf16>,
    %c0_18 = arith.constant 0 : index
    %c9_19 = arith.constant 9 : index
    %c0_20 = arith.constant 0 : index
    %22 = vector.load %arg8[%c0_18, %c9_19, %c0_20] : memref<10x10x128xbf16, #tpu.memory_space<vmem>>, vector<10x1x128xbf16>
    tpu.vector_store %arg8[%c0_18, %c9_19, %c0_20], %20 {strides = array<i32>} : memref<10x10x128xbf16, #tpu.memory_space<vmem>>, vector<10x1x128xbf16>,
    %c0_21 = arith.constant 0 : index
    %c0_22 = arith.constant 0 : index
    %c0_23 = arith.constant 0 : index
    %23 = vector.load %arg8[%c0_21, %c0_22, %c0_23] : memref<10x10x128xbf16, #tpu.memory_space<vmem>>, vector<8x8x128xbf16>
    %24 = vector.shape_cast %23 : vector<8x8x128xbf16> to vector<64x128xbf16>
    %c0_24 = arith.constant 0 : index
    %c0_25 = arith.constant 0 : index
    %25 = vector.load %arg5[%c0_24, %c0_25] : memref<1152x128xbf16, #tpu.memory_space<vmem>>, vector<128x128xbf16>
    %cst_26 = arith.constant dense<0.000000e+00> : vector<64x128xf32>
    %26 = tpu.matmul %24, %25, %cst_26 {dimension_numbers = #tpu.dot_dimension_numbers<[1], [0], [0], [1], [0, 0, 1, 1], [], []>} : vector<64x128xbf16>, vector<128x128xbf16>, vector<64x128xf32> -> vector<64x128xf32>
    %c0_27 = arith.constant 0 : index
    %c1_28 = arith.constant 1 : index
    %c0_29 = arith.constant 0 : index
    %27 = vector.load %arg8[%c0_27, %c1_28, %c0_29] : memref<10x10x128xbf16, #tpu.memory_space<vmem>>, vector<8x8x128xbf16>
    %28 = vector.shape_cast %27 : vector<8x8x128xbf16> to vector<64x128xbf16>
    %c128 = arith.constant 128 : index
    %c0_30 = arith.constant 0 : index
    %29 = vector.load %arg5[%c128, %c0_30] : memref<1152x128xbf16, #tpu.memory_space<vmem>>, vector<128x128xbf16>
    %cst_31 = arith.constant dense<0.000000e+00> : vector<64x128xf32>
    %30 = tpu.matmul %28, %29, %cst_31 {dimension_numbers = #tpu.dot_dimension_numbers<[1], [0], [0], [1], [0, 0, 1, 1], [], []>} : vector<64x128xbf16>, vector<128x128xbf16>, vector<64x128xf32> -> vector<64x128xf32>
    %31 = arith.addf %26, %30 : vector<64x128xf32>
    %c0_32 = arith.constant 0 : index
    %c2 = arith.constant 2 : index
    %c0_33 = arith.constant 0 : index
    %32 = vector.load %arg8[%c0_32, %c2, %c0_33] : memref<10x10x128xbf16, #tpu.memory_space<vmem>>, vector<8x8x128xbf16>
    %33 = vector.shape_cast %32 : vector<8x8x128xbf16> to vector<64x128xbf16>
    %c256 = arith.constant 256 : index
    %c0_34 = arith.constant 0 : index
    %34 = vector.load %arg5[%c256, %c0_34] : memref<1152x128xbf16, #tpu.memory_space<vmem>>, vector<128x128xbf16>
    %cst_35 = arith.constant dense<0.000000e+00> : vector<64x128xf32>
    %35 = tpu.matmul %33, %34, %cst_35 {dimension_numbers = #tpu.dot_dimension_numbers<[1], [0], [0], [1], [0, 0, 1, 1], [], []>} : vector<64x128xbf16>, vector<128x128xbf16>, vector<64x128xf32> -> vector<64x128xf32>
    %36 = arith.addf %31, %35 : vector<64x128xf32>
    %c1_36 = arith.constant 1 : index
    %c0_37 = arith.constant 0 : index
    %c0_38 = arith.constant 0 : index
    %37 = vector.load %arg8[%c1_36, %c0_37, %c0_38] : memref<10x10x128xbf16, #tpu.memory_space<vmem>>, vector<8x8x128xbf16>
    %38 = vector.shape_cast %37 : vector<8x8x128xbf16> to vector<64x128xbf16>
    %c384 = arith.constant 384 : index
    %c0_39 = arith.constant 0 : index
    %39 = vector.load %arg5[%c384, %c0_39] : memref<1152x128xbf16, #tpu.memory_space<vmem>>, vector<128x128xbf16>
    %cst_40 = arith.constant dense<0.000000e+00> : vector<64x128xf32>
    %40 = tpu.matmul %38, %39, %cst_40 {dimension_numbers = #tpu.dot_dimension_numbers<[1], [0], [0], [1], [0, 0, 1, 1], [], []>} : vector<64x128xbf16>, vector<128x128xbf16>, vector<64x128xf32> -> vector<64x128xf32>
    %41 = arith.addf %36, %40 : vector<64x128xf32>
    %c1_41 = arith.constant 1 : index
    %c1_42 = arith.constant 1 : index
    %c0_43 = arith.constant 0 : index
    %42 = vector.load %arg8[%c1_41, %c1_42, %c0_43] : memref<10x10x128xbf16, #tpu.memory_space<vmem>>, vector<8x8x128xbf16>
    %43 = vector.shape_cast %42 : vector<8x8x128xbf16> to vector<64x128xbf16>
    %c512 = arith.constant 512 : index
    %c0_44 = arith.constant 0 : index
    %44 = vector.load %arg5[%c512, %c0_44] : memref<1152x128xbf16, #tpu.memory_space<vmem>>, vector<128x128xbf16>
    %cst_45 = arith.constant dense<0.000000e+00> : vector<64x128xf32>
    %45 = tpu.matmul %43, %44, %cst_45 {dimension_numbers = #tpu.dot_dimension_numbers<[1], [0], [0], [1], [0, 0, 1, 1], [], []>} : vector<64x128xbf16>, vector<128x128xbf16>, vector<64x128xf32> -> vector<64x128xf32>
    %46 = arith.addf %41, %45 : vector<64x128xf32>
    %c1_46 = arith.constant 1 : index
    %c2_47 = arith.constant 2 : index
    %c0_48 = arith.constant 0 : index
    %47 = vector.load %arg8[%c1_46, %c2_47, %c0_48] : memref<10x10x128xbf16, #tpu.memory_space<vmem>>, vector<8x8x128xbf16>
    %48 = vector.shape_cast %47 : vector<8x8x128xbf16> to vector<64x128xbf16>
    %c640 = arith.constant 640 : index
    %c0_49 = arith.constant 0 : index
    %49 = vector.load %arg5[%c640, %c0_49] : memref<1152x128xbf16, #tpu.memory_space<vmem>>, vector<128x128xbf16>
    %cst_50 = arith.constant dense<0.000000e+00> : vector<64x128xf32>
    %50 = tpu.matmul %48, %49, %cst_50 {dimension_numbers = #tpu.dot_dimension_numbers<[1], [0], [0], [1], [0, 0, 1, 1], [], []>} : vector<64x128xbf16>, vector<128x128xbf16>, vector<64x128xf32> -> vector<64x128xf32>
    %51 = arith.addf %46, %50 : vector<64x128xf32>
    %c2_51 = arith.constant 2 : index
    %c0_52 = arith.constant 0 : index
    %c0_53 = arith.constant 0 : index
    %52 = vector.load %arg8[%c2_51, %c0_52, %c0_53] : memref<10x10x128xbf16, #tpu.memory_space<vmem>>, vector<8x8x128xbf16>
    %53 = vector.shape_cast %52 : vector<8x8x128xbf16> to vector<64x128xbf16>
    %c768 = arith.constant 768 : index
    %c0_54 = arith.constant 0 : index
    %54 = vector.load %arg5[%c768, %c0_54] : memref<1152x128xbf16, #tpu.memory_space<vmem>>, vector<128x128xbf16>
    %cst_55 = arith.constant dense<0.000000e+00> : vector<64x128xf32>
    %55 = tpu.matmul %53, %54, %cst_55 {dimension_numbers = #tpu.dot_dimension_numbers<[1], [0], [0], [1], [0, 0, 1, 1], [], []>} : vector<64x128xbf16>, vector<128x128xbf16>, vector<64x128xf32> -> vector<64x128xf32>
    %56 = arith.addf %51, %55 : vector<64x128xf32>
    %c2_56 = arith.constant 2 : index
    %c1_57 = arith.constant 1 : index
    %c0_58 = arith.constant 0 : index
    %57 = vector.load %arg8[%c2_56, %c1_57, %c0_58] : memref<10x10x128xbf16, #tpu.memory_space<vmem>>, vector<8x8x128xbf16>
    %58 = vector.shape_cast %57 : vector<8x8x128xbf16> to vector<64x128xbf16>
    %c896 = arith.constant 896 : index
    %c0_59 = arith.constant 0 : index
    %59 = vector.load %arg5[%c896, %c0_59] : memref<1152x128xbf16, #tpu.memory_space<vmem>>, vector<128x128xbf16>
    %cst_60 = arith.constant dense<0.000000e+00> : vector<64x128xf32>
    %60 = tpu.matmul %58, %59, %cst_60 {dimension_numbers = #tpu.dot_dimension_numbers<[1], [0], [0], [1], [0, 0, 1, 1], [], []>} : vector<64x128xbf16>, vector<128x128xbf16>, vector<64x128xf32> -> vector<64x128xf32>
    %61 = arith.addf %56, %60 : vector<64x128xf32>
    %c2_61 = arith.constant 2 : index
    %c2_62 = arith.constant 2 : index
    %c0_63 = arith.constant 0 : index
    %62 = vector.load %arg8[%c2_61, %c2_62, %c0_63] : memref<10x10x128xbf16, #tpu.memory_space<vmem>>, vector<8x8x128xbf16>
    %63 = vector.shape_cast %62 : vector<8x8x128xbf16> to vector<64x128xbf16>
    %c1024 = arith.constant 1024 : index
    %c0_64 = arith.constant 0 : index
    %64 = vector.load %arg5[%c1024, %c0_64] : memref<1152x128xbf16, #tpu.memory_space<vmem>>, vector<128x128xbf16>
    %cst_65 = arith.constant dense<0.000000e+00> : vector<64x128xf32>
    %65 = tpu.matmul %63, %64, %cst_65 {dimension_numbers = #tpu.dot_dimension_numbers<[1], [0], [0], [1], [0, 0, 1, 1], [], []>} : vector<64x128xbf16>, vector<128x128xbf16>, vector<64x128xf32> -> vector<64x128xf32>
    %66 = arith.addf %61, %65 : vector<64x128xf32>
    %67 = vector.shape_cast %66 : vector<64x128xf32> to vector<8x8x128xf32>
    %68 = arith.truncf %67 : vector<8x8x128xf32> to vector<8x8x128xbf16>
    %c0_66 = arith.constant 0 : index
    %c0_67 = arith.constant 0 : index
    %c0_68 = arith.constant 0 : index
    %c0_69 = arith.constant 0 : index
    %69 = vector.load %arg6[%c0_66, %c0_67, %c0_68, %c0_69] : memref<1x8x8x128xbf16, #tpu.memory_space<vmem>>, vector<1x8x8x128xbf16>
    %70 = vector.shape_cast %69 : vector<1x8x8x128xbf16> to vector<8x8x128xbf16>
    %71 = vector.shape_cast %68 : vector<8x8x128xbf16> to vector<1x8x8x128xbf16>
    tpu.vector_store %arg6[%c0_66, %c0_67, %c0_68, %c0_69], %71 {strides = array<i32>} : memref<1x8x8x128xbf16, #tpu.memory_space<vmem>>, vector<1x8x8x128xbf16>,
    %cst_70 = arith.constant dense<0.000000e+00> : vector<128xf32>
    %72 = vector.multi_reduction <add>, %66, %cst_70 [0] : vector<64x128xf32> to vector<128xf32>
    %73 = vector.shape_cast %72 : vector<128xf32> to vector<1x128xf32>
    %c0_71 = arith.constant 0 : index
    %c0_72 = arith.constant 0 : index
    %c0_73 = arith.constant 0 : index
    %74 = vector.load %arg7[%c0_71, %c0_72, %c0_73] : memref<1x2x128xf32, #tpu.memory_space<vmem>>, vector<1x1x128xf32>
    %75 = vector.shape_cast %74 : vector<1x1x128xf32> to vector<1x128xf32>
    %76 = vector.shape_cast %73 : vector<1x128xf32> to vector<1x1x128xf32>
    tpu.vector_store %arg7[%c0_71, %c0_72, %c0_73], %76 {strides = array<i32>} : memref<1x2x128xf32, #tpu.memory_space<vmem>>, vector<1x1x128xf32>,
    %77 = arith.mulf %66, %66 : vector<64x128xf32>
    %cst_74 = arith.constant dense<0.000000e+00> : vector<128xf32>
    %78 = vector.multi_reduction <add>, %77, %cst_74 [0] : vector<64x128xf32> to vector<128xf32>
    %79 = vector.shape_cast %78 : vector<128xf32> to vector<1x128xf32>
    %c0_75 = arith.constant 0 : index
    %c1_76 = arith.constant 1 : index
    %c0_77 = arith.constant 0 : index
    %80 = vector.load %arg7[%c0_75, %c1_76, %c0_77] : memref<1x2x128xf32, #tpu.memory_space<vmem>>, vector<1x1x128xf32>
    %81 = vector.shape_cast %80 : vector<1x1x128xf32> to vector<1x128xf32>
    %82 = vector.shape_cast %79 : vector<1x128xf32> to vector<1x1x128xf32>
    tpu.vector_store %arg7[%c0_75, %c1_76, %c0_77], %82 {strides = array<i32>} : memref<1x2x128xf32, #tpu.memory_space<vmem>>, vector<1x1x128xf32>,
    return
  }
  func.func @transform_0(%arg0: i32, %arg1: i32) -> (i32, i32, i32, i32, i32) {
    %c0_i32 = arith.constant 0 : i32
    %c0_i32_0 = arith.constant 0 : i32
    %c0_i32_1 = arith.constant 0 : i32
    %c0_i32_2 = arith.constant 0 : i32
    return %arg0, %arg1, %c0_i32, %c0_i32_0, %c0_i32_1 : i32, i32, i32, i32, i32
  }
  func.func @transform_1(%arg0: i32, %arg1: i32) -> (i32, i32, i32, i32, i32) {
    %c8_i32 = arith.constant 8 : i32
    %0 = arith.muli %arg1, %c8_i32 : i32
    %c1_i32 = arith.constant 1 : i32
    %1 = arith.subi %0, %c1_i32 : i32
    %c0_i32 = arith.constant 0 : i32
    %2 = arith.maxsi %1, %c0_i32 : i32
    %c0_i32_0 = arith.constant 0 : i32
    %c0_i32_1 = arith.constant 0 : i32
    %c0_i32_2 = arith.constant 0 : i32
    %c0_i32_3 = arith.constant 0 : i32
    return %arg0, %2, %c0_i32_0, %c0_i32_1, %c0_i32_2 : i32, i32, i32, i32, i32
  }
  func.func @transform_2(%arg0: i32, %arg1: i32) -> (i32, i32, i32, i32, i32) {
    %c8_i32 = arith.constant 8 : i32
    %0 = arith.muli %arg1, %c8_i32 : i32
    %c8_i32_0 = arith.constant 8 : i32
    %1 = arith.addi %0, %c8_i32_0 : i32
    %c7_i32 = arith.constant 7 : i32
    %2 = arith.minsi %1, %c7_i32 : i32
    %c0_i32 = arith.constant 0 : i32
    %c0_i32_1 = arith.constant 0 : i32
    %c0_i32_2 = arith.constant 0 : i32
    %c0_i32_3 = arith.constant 0 : i32
    return %arg0, %2, %c0_i32, %c0_i32_1, %c0_i32_2 : i32, i32, i32, i32, i32
  }
  func.func @transform_3(%arg0: i32, %arg1: i32) -> (i32, i32) {
    %c0_i32 = arith.constant 0 : i32
    %c0_i32_0 = arith.constant 0 : i32
    %c0_i32_1 = arith.constant 0 : i32
    return %c0_i32, %c0_i32_0 : i32, i32
  }
  func.func @transform_4(%arg0: i32, %arg1: i32) -> (i32, i32, i32, i32) {
    %c0_i32 = arith.constant 0 : i32
    %c0_i32_0 = arith.constant 0 : i32
    %c0_i32_1 = arith.constant 0 : i32
    return %arg0, %arg1, %c0_i32, %c0_i32_0 : i32, i32, i32, i32
  }
  func.func @transform_5(%arg0: i32, %arg1: i32) -> (i32, i32, i32) {
    %c1_i32 = arith.constant 1 : i32
    %0 = arith.muli %arg0, %c1_i32 : i32
    %1 = arith.addi %0, %arg1 : i32
    %c0_i32 = arith.constant 0 : i32
    %c0_i32_0 = arith.constant 0 : i32
    %c0_i32_1 = arith.constant 0 : i32
    return %1, %c0_i32, %c0_i32_0 : i32, i32, i32
  }
}

module attributes {stable_mosaic.version = 11 : i64} {
  func.func @_bn_relu_out_kernel(%arg0: i32, %arg1: i32, %arg2: memref<1x8x8x128xbf16, #tpu.memory_space<vmem>>, %arg3: memref<2x128xf32, #tpu.memory_space<vmem>>, %arg4: memref<1x8x8x8xf32, #tpu.memory_space<vmem>>) attributes {dimension_semantics = [#tpu.dimension_semantics<parallel>, #tpu.dimension_semantics<parallel>], iteration_bounds = array<i64: 2, 1>, scalar_prefetch = 0 : i64, scratch_operands = 0 : i64, tpu.core_type = #tpu.core_type<tc>, window_params = [{transform_indices = @transform_0, window_bounds = array<i64: 1, 8, 8, 128>}, {pipeline_mode = #tpu.pipeline_mode<synchronous>, transform_indices = @transform_1, window_bounds = array<i64: 2, 128>}, {transform_indices = @transform_2, window_bounds = array<i64: 1, 8, 8, 8>}]} {
    %c0 = arith.constant 0 : index
    %c0_0 = arith.constant 0 : index
    %0 = vector.load %arg3[%c0, %c0_0] : memref<2x128xf32, #tpu.memory_space<vmem>>, vector<1x128xf32>
    %1 = vector.shape_cast %0 : vector<1x128xf32> to vector<1x1x128xf32>
    %c1 = arith.constant 1 : index
    %c0_1 = arith.constant 0 : index
    %2 = vector.load %arg3[%c1, %c0_1] : memref<2x128xf32, #tpu.memory_space<vmem>>, vector<1x128xf32>
    %3 = vector.shape_cast %2 : vector<1x128xf32> to vector<1x1x128xf32>
    %c0_2 = arith.constant 0 : index
    %c0_3 = arith.constant 0 : index
    %c0_4 = arith.constant 0 : index
    %c0_5 = arith.constant 0 : index
    %4 = vector.load %arg2[%c0_2, %c0_3, %c0_4, %c0_5] : memref<1x8x8x128xbf16, #tpu.memory_space<vmem>>, vector<1x8x8x128xbf16>
    %5 = vector.shape_cast %4 : vector<1x8x8x128xbf16> to vector<8x8x128xbf16>
    %6 = arith.extf %5 : vector<8x8x128xbf16> to vector<8x8x128xf32>
    %7 = vector.broadcast %1 : vector<1x1x128xf32> to vector<8x8x128xf32>
    %8 = arith.mulf %6, %7 : vector<8x8x128xf32>
    %9 = vector.broadcast %3 : vector<1x1x128xf32> to vector<8x8x128xf32>
    %10 = arith.addf %8, %9 : vector<8x8x128xf32>
    %cst = arith.constant 0.000000e+00 : f32
    %11 = vector.broadcast %cst : f32 to vector<8x8x128xf32>
    %12 = arith.maximumf %10, %11 : vector<8x8x128xf32>
    %13 = vector.extract_strided_slice %12 {offsets = [0, 0, 0], sizes = [8, 8, 8], strides = [1, 1, 1]} : vector<8x8x128xf32> to vector<8x8x8xf32>
    %c0_6 = arith.constant 0 : index
    %c0_7 = arith.constant 0 : index
    %c0_8 = arith.constant 0 : index
    %c0_9 = arith.constant 0 : index
    %14 = vector.load %arg4[%c0_6, %c0_7, %c0_8, %c0_9] : memref<1x8x8x8xf32, #tpu.memory_space<vmem>>, vector<1x8x8x8xf32>
    %15 = vector.shape_cast %14 : vector<1x8x8x8xf32> to vector<8x8x8xf32>
    %16 = vector.shape_cast %13 : vector<8x8x8xf32> to vector<1x8x8x8xf32>
    tpu.vector_store %arg4[%c0_6, %c0_7, %c0_8, %c0_9], %16 {strides = array<i32>} : memref<1x8x8x8xf32, #tpu.memory_space<vmem>>, vector<1x8x8x8xf32>,
    return
  }
  func.func @transform_0(%arg0: i32, %arg1: i32) -> (i32, i32, i32, i32) {
    %c0_i32 = arith.constant 0 : i32
    %c0_i32_0 = arith.constant 0 : i32
    %c0_i32_1 = arith.constant 0 : i32
    return %arg0, %arg1, %c0_i32, %c0_i32_0 : i32, i32, i32, i32
  }
  func.func @transform_1(%arg0: i32, %arg1: i32) -> (i32, i32) {
    %c0_i32 = arith.constant 0 : i32
    %c0_i32_0 = arith.constant 0 : i32
    %c0_i32_1 = arith.constant 0 : i32
    return %c0_i32, %c0_i32_0 : i32, i32
  }
  func.func @transform_2(%arg0: i32, %arg1: i32) -> (i32, i32, i32, i32) {
    %c0_i32 = arith.constant 0 : i32
    %c0_i32_0 = arith.constant 0 : i32
    %c0_i32_1 = arith.constant 0 : i32
    return %arg0, %arg1, %c0_i32, %c0_i32_0 : i32, i32, i32, i32
  }
}

module attributes {stable_mosaic.version = 11 : i64} {
  func.func @_bn_relu_conv2_kernel(%arg0: i32, %arg1: i32, %arg2: memref<1x8x8x128xbf16, #tpu.memory_space<vmem>>, %arg3: memref<1x1x8x128xbf16, #tpu.memory_space<vmem>>, %arg4: memref<1x1x8x128xbf16, #tpu.memory_space<vmem>>, %arg5: memref<2x128xf32, #tpu.memory_space<vmem>>, %arg6: memref<1152x128xbf16, #tpu.memory_space<vmem>>, %arg7: memref<1x8x8x128xbf16, #tpu.memory_space<vmem>>, %arg8: memref<1x2x128xf32, #tpu.memory_space<vmem>>, %arg9: memref<10x10x128xbf16, #tpu.memory_space<vmem>>) attributes {dimension_semantics = [#tpu.dimension_semantics<parallel>, #tpu.dimension_semantics<parallel>], iteration_bounds = array<i64: 2, 1>, scalar_prefetch = 0 : i64, scratch_operands = 1 : i64, tpu.core_type = #tpu.core_type<tc>, window_params = [{transform_indices = @transform_0, window_bounds = array<i64: 1, 8, 8, 128>}, {transform_indices = @transform_1, window_bounds = array<i64: 1, 1, 8, 128>}, {transform_indices = @transform_2, window_bounds = array<i64: 1, 1, 8, 128>}, {pipeline_mode = #tpu.pipeline_mode<synchronous>, transform_indices = @transform_3, window_bounds = array<i64: 2, 128>}, {pipeline_mode = #tpu.pipeline_mode<synchronous>, transform_indices = @transform_4, window_bounds = array<i64: 1152, 128>}, {transform_indices = @transform_5, window_bounds = array<i64: 1, 8, 8, 128>}, {transform_indices = @transform_6, window_bounds = array<i64: 1, 2, 128>}]} {
    %c0 = arith.constant 0 : index
    %c0_0 = arith.constant 0 : index
    %0 = vector.load %arg5[%c0, %c0_0] : memref<2x128xf32, #tpu.memory_space<vmem>>, vector<1x128xf32>
    %1 = vector.shape_cast %0 : vector<1x128xf32> to vector<1x1x128xf32>
    %c1 = arith.constant 1 : index
    %c0_1 = arith.constant 0 : index
    %2 = vector.load %arg5[%c1, %c0_1] : memref<2x128xf32, #tpu.memory_space<vmem>>, vector<1x128xf32>
    %3 = vector.shape_cast %2 : vector<1x128xf32> to vector<1x1x128xf32>
    %c0_2 = arith.constant 0 : index
    %c0_3 = arith.constant 0 : index
    %c0_4 = arith.constant 0 : index
    %c0_5 = arith.constant 0 : index
    %4 = vector.load %arg2[%c0_2, %c0_3, %c0_4, %c0_5] : memref<1x8x8x128xbf16, #tpu.memory_space<vmem>>, vector<1x8x8x128xbf16>
    %5 = vector.shape_cast %4 : vector<1x8x8x128xbf16> to vector<8x8x128xbf16>
    %6 = arith.extf %5 : vector<8x8x128xbf16> to vector<8x8x128xf32>
    %7 = vector.broadcast %1 : vector<1x1x128xf32> to vector<8x8x128xf32>
    %8 = arith.mulf %6, %7 : vector<8x8x128xf32>
    %9 = vector.broadcast %3 : vector<1x1x128xf32> to vector<8x8x128xf32>
    %10 = arith.addf %8, %9 : vector<8x8x128xf32>
    %cst = arith.constant 0.000000e+00 : f32
    %11 = vector.broadcast %cst : f32 to vector<8x8x128xf32>
    %12 = arith.maximumf %10, %11 : vector<8x8x128xf32>
    %13 = arith.truncf %12 : vector<8x8x128xf32> to vector<8x8x128xbf16>
    %c1_6 = arith.constant 1 : index
    %c1_7 = arith.constant 1 : index
    %c0_8 = arith.constant 0 : index
    %14 = vector.load %arg9[%c1_6, %c1_7, %c0_8] : memref<10x10x128xbf16, #tpu.memory_space<vmem>>, vector<8x8x128xbf16>
    tpu.vector_store %arg9[%c1_6, %c1_7, %c0_8], %13 {strides = array<i32>} : memref<10x10x128xbf16, #tpu.memory_space<vmem>>, vector<8x8x128xbf16>,
    %cst_9 = arith.constant 0.000000e+00 : bf16
    %15 = vector.broadcast %cst_9 : bf16 to vector<1x8x128xbf16>
    %c0_10 = arith.constant 0 : index
    %c1_11 = arith.constant 1 : index
    %c0_12 = arith.constant 0 : index
    %16 = vector.load %arg9[%c0_10, %c1_11, %c0_12] : memref<10x10x128xbf16, #tpu.memory_space<vmem>>, vector<1x8x128xbf16>
    tpu.vector_store %arg9[%c0_10, %c1_11, %c0_12], %15 {strides = array<i32>} : memref<10x10x128xbf16, #tpu.memory_space<vmem>>, vector<1x8x128xbf16>,
    %c9 = arith.constant 9 : index
    %c1_13 = arith.constant 1 : index
    %c0_14 = arith.constant 0 : index
    %17 = vector.load %arg9[%c9, %c1_13, %c0_14] : memref<10x10x128xbf16, #tpu.memory_space<vmem>>, vector<1x8x128xbf16>
    tpu.vector_store %arg9[%c9, %c1_13, %c0_14], %15 {strides = array<i32>} : memref<10x10x128xbf16, #tpu.memory_space<vmem>>, vector<1x8x128xbf16>,
    %c0_i32 = arith.constant 0 : i32
    %18 = arith.cmpi sgt, %arg1, %c0_i32 : i32
    %19 = arith.extui %18 : i1 to i32
    %c0_i32_15 = arith.constant 0 : i32
    %20 = arith.cmpi ne, %19, %c0_i32_15 : i32
    scf.if %20 {
      %c0_82 = arith.constant 0 : index
      %c0_83 = arith.constant 0 : index
      %c0_84 = arith.constant 0 : index
      %c0_85 = arith.constant 0 : index
      %87 = vector.load %arg3[%c0_82, %c0_83, %c0_84, %c0_85] : memref<1x1x8x128xbf16, #tpu.memory_space<vmem>>, vector<1x1x8x128xbf16>
      %88 = vector.shape_cast %87 : vector<1x1x8x128xbf16> to vector<1x8x128xbf16>
      %89 = arith.extf %88 : vector<1x8x128xbf16> to vector<1x8x128xf32>
      %90 = vector.broadcast %1 : vector<1x1x128xf32> to vector<1x8x128xf32>
      %91 = arith.mulf %89, %90 : vector<1x8x128xf32>
      %92 = vector.broadcast %3 : vector<1x1x128xf32> to vector<1x8x128xf32>
      %93 = arith.addf %91, %92 : vector<1x8x128xf32>
      %cst_86 = arith.constant 0.000000e+00 : f32
      %94 = vector.broadcast %cst_86 : f32 to vector<1x8x128xf32>
      %95 = arith.maximumf %93, %94 : vector<1x8x128xf32>
      %96 = arith.truncf %95 : vector<1x8x128xf32> to vector<1x8x128xbf16>
      %c0_87 = arith.constant 0 : index
      %c1_88 = arith.constant 1 : index
      %c0_89 = arith.constant 0 : index
      %97 = vector.load %arg9[%c0_87, %c1_88, %c0_89] : memref<10x10x128xbf16, #tpu.memory_space<vmem>>, vector<1x8x128xbf16>
      tpu.vector_store %arg9[%c0_87, %c1_88, %c0_89], %96 {strides = array<i32>} : memref<10x10x128xbf16, #tpu.memory_space<vmem>>, vector<1x8x128xbf16>,
    } else {
    }
    %c0_i32_16 = arith.constant 0 : i32
    %21 = arith.cmpi slt, %arg1, %c0_i32_16 : i32
    %22 = arith.extui %21 : i1 to i32
    %c0_i32_17 = arith.constant 0 : i32
    %23 = arith.cmpi ne, %22, %c0_i32_17 : i32
    scf.if %23 {
      %c0_82 = arith.constant 0 : index
      %c0_83 = arith.constant 0 : index
      %c0_84 = arith.constant 0 : index
      %c0_85 = arith.constant 0 : index
      %87 = vector.load %arg4[%c0_82, %c0_83, %c0_84, %c0_85] : memref<1x1x8x128xbf16, #tpu.memory_space<vmem>>, vector<1x1x8x128xbf16>
      %88 = vector.shape_cast %87 : vector<1x1x8x128xbf16> to vector<1x8x128xbf16>
      %89 = arith.extf %88 : vector<1x8x128xbf16> to vector<1x8x128xf32>
      %90 = vector.broadcast %1 : vector<1x1x128xf32> to vector<1x8x128xf32>
      %91 = arith.mulf %89, %90 : vector<1x8x128xf32>
      %92 = vector.broadcast %3 : vector<1x1x128xf32> to vector<1x8x128xf32>
      %93 = arith.addf %91, %92 : vector<1x8x128xf32>
      %cst_86 = arith.constant 0.000000e+00 : f32
      %94 = vector.broadcast %cst_86 : f32 to vector<1x8x128xf32>
      %95 = arith.maximumf %93, %94 : vector<1x8x128xf32>
      %96 = arith.truncf %95 : vector<1x8x128xf32> to vector<1x8x128xbf16>
      %c9_87 = arith.constant 9 : index
      %c1_88 = arith.constant 1 : index
      %c0_89 = arith.constant 0 : index
      %97 = vector.load %arg9[%c9_87, %c1_88, %c0_89] : memref<10x10x128xbf16, #tpu.memory_space<vmem>>, vector<1x8x128xbf16>
      tpu.vector_store %arg9[%c9_87, %c1_88, %c0_89], %96 {strides = array<i32>} : memref<10x10x128xbf16, #tpu.memory_space<vmem>>, vector<1x8x128xbf16>,
    } else {
    }
    %cst_18 = arith.constant 0.000000e+00 : bf16
    %24 = vector.broadcast %cst_18 : bf16 to vector<10x1x128xbf16>
    %c0_19 = arith.constant 0 : index
    %c0_20 = arith.constant 0 : index
    %c0_21 = arith.constant 0 : index
    %25 = vector.load %arg9[%c0_19, %c0_20, %c0_21] : memref<10x10x128xbf16, #tpu.memory_space<vmem>>, vector<10x1x128xbf16>
    tpu.vector_store %arg9[%c0_19, %c0_20, %c0_21], %24 {strides = array<i32>} : memref<10x10x128xbf16, #tpu.memory_space<vmem>>, vector<10x1x128xbf16>,
    %c0_22 = arith.constant 0 : index
    %c9_23 = arith.constant 9 : index
    %c0_24 = arith.constant 0 : index
    %26 = vector.load %arg9[%c0_22, %c9_23, %c0_24] : memref<10x10x128xbf16, #tpu.memory_space<vmem>>, vector<10x1x128xbf16>
    tpu.vector_store %arg9[%c0_22, %c9_23, %c0_24], %24 {strides = array<i32>} : memref<10x10x128xbf16, #tpu.memory_space<vmem>>, vector<10x1x128xbf16>,
    %c0_25 = arith.constant 0 : index
    %c0_26 = arith.constant 0 : index
    %c0_27 = arith.constant 0 : index
    %27 = vector.load %arg9[%c0_25, %c0_26, %c0_27] : memref<10x10x128xbf16, #tpu.memory_space<vmem>>, vector<8x8x128xbf16>
    %28 = vector.shape_cast %27 : vector<8x8x128xbf16> to vector<64x128xbf16>
    %c0_28 = arith.constant 0 : index
    %c0_29 = arith.constant 0 : index
    %29 = vector.load %arg6[%c0_28, %c0_29] : memref<1152x128xbf16, #tpu.memory_space<vmem>>, vector<128x128xbf16>
    %cst_30 = arith.constant dense<0.000000e+00> : vector<64x128xf32>
    %30 = tpu.matmul %28, %29, %cst_30 {dimension_numbers = #tpu.dot_dimension_numbers<[1], [0], [0], [1], [0, 0, 1, 1], [], []>} : vector<64x128xbf16>, vector<128x128xbf16>, vector<64x128xf32> -> vector<64x128xf32>
    %c0_31 = arith.constant 0 : index
    %c1_32 = arith.constant 1 : index
    %c0_33 = arith.constant 0 : index
    %31 = vector.load %arg9[%c0_31, %c1_32, %c0_33] : memref<10x10x128xbf16, #tpu.memory_space<vmem>>, vector<8x8x128xbf16>
    %32 = vector.shape_cast %31 : vector<8x8x128xbf16> to vector<64x128xbf16>
    %c128 = arith.constant 128 : index
    %c0_34 = arith.constant 0 : index
    %33 = vector.load %arg6[%c128, %c0_34] : memref<1152x128xbf16, #tpu.memory_space<vmem>>, vector<128x128xbf16>
    %cst_35 = arith.constant dense<0.000000e+00> : vector<64x128xf32>
    %34 = tpu.matmul %32, %33, %cst_35 {dimension_numbers = #tpu.dot_dimension_numbers<[1], [0], [0], [1], [0, 0, 1, 1], [], []>} : vector<64x128xbf16>, vector<128x128xbf16>, vector<64x128xf32> -> vector<64x128xf32>
    %35 = arith.addf %30, %34 : vector<64x128xf32>
    %c0_36 = arith.constant 0 : index
    %c2 = arith.constant 2 : index
    %c0_37 = arith.constant 0 : index
    %36 = vector.load %arg9[%c0_36, %c2, %c0_37] : memref<10x10x128xbf16, #tpu.memory_space<vmem>>, vector<8x8x128xbf16>
    %37 = vector.shape_cast %36 : vector<8x8x128xbf16> to vector<64x128xbf16>
    %c256 = arith.constant 256 : index
    %c0_38 = arith.constant 0 : index
    %38 = vector.load %arg6[%c256, %c0_38] : memref<1152x128xbf16, #tpu.memory_space<vmem>>, vector<128x128xbf16>
    %cst_39 = arith.constant dense<0.000000e+00> : vector<64x128xf32>
    %39 = tpu.matmul %37, %38, %cst_39 {dimension_numbers = #tpu.dot_dimension_numbers<[1], [0], [0], [1], [0, 0, 1, 1], [], []>} : vector<64x128xbf16>, vector<128x128xbf16>, vector<64x128xf32> -> vector<64x128xf32>
    %40 = arith.addf %35, %39 : vector<64x128xf32>
    %c1_40 = arith.constant 1 : index
    %c0_41 = arith.constant 0 : index
    %c0_42 = arith.constant 0 : index
    %41 = vector.load %arg9[%c1_40, %c0_41, %c0_42] : memref<10x10x128xbf16, #tpu.memory_space<vmem>>, vector<8x8x128xbf16>
    %42 = vector.shape_cast %41 : vector<8x8x128xbf16> to vector<64x128xbf16>
    %c384 = arith.constant 384 : index
    %c0_43 = arith.constant 0 : index
    %43 = vector.load %arg6[%c384, %c0_43] : memref<1152x128xbf16, #tpu.memory_space<vmem>>, vector<128x128xbf16>
    %cst_44 = arith.constant dense<0.000000e+00> : vector<64x128xf32>
    %44 = tpu.matmul %42, %43, %cst_44 {dimension_numbers = #tpu.dot_dimension_numbers<[1], [0], [0], [1], [0, 0, 1, 1], [], []>} : vector<64x128xbf16>, vector<128x128xbf16>, vector<64x128xf32> -> vector<64x128xf32>
    %45 = arith.addf %40, %44 : vector<64x128xf32>
    %c1_45 = arith.constant 1 : index
    %c1_46 = arith.constant 1 : index
    %c0_47 = arith.constant 0 : index
    %46 = vector.load %arg9[%c1_45, %c1_46, %c0_47] : memref<10x10x128xbf16, #tpu.memory_space<vmem>>, vector<8x8x128xbf16>
    %47 = vector.shape_cast %46 : vector<8x8x128xbf16> to vector<64x128xbf16>
    %c512 = arith.constant 512 : index
    %c0_48 = arith.constant 0 : index
    %48 = vector.load %arg6[%c512, %c0_48] : memref<1152x128xbf16, #tpu.memory_space<vmem>>, vector<128x128xbf16>
    %cst_49 = arith.constant dense<0.000000e+00> : vector<64x128xf32>
    %49 = tpu.matmul %47, %48, %cst_49 {dimension_numbers = #tpu.dot_dimension_numbers<[1], [0], [0], [1], [0, 0, 1, 1], [], []>} : vector<64x128xbf16>, vector<128x128xbf16>, vector<64x128xf32> -> vector<64x128xf32>
    %50 = arith.addf %45, %49 : vector<64x128xf32>
    %c1_50 = arith.constant 1 : index
    %c2_51 = arith.constant 2 : index
    %c0_52 = arith.constant 0 : index
    %51 = vector.load %arg9[%c1_50, %c2_51, %c0_52] : memref<10x10x128xbf16, #tpu.memory_space<vmem>>, vector<8x8x128xbf16>
    %52 = vector.shape_cast %51 : vector<8x8x128xbf16> to vector<64x128xbf16>
    %c640 = arith.constant 640 : index
    %c0_53 = arith.constant 0 : index
    %53 = vector.load %arg6[%c640, %c0_53] : memref<1152x128xbf16, #tpu.memory_space<vmem>>, vector<128x128xbf16>
    %cst_54 = arith.constant dense<0.000000e+00> : vector<64x128xf32>
    %54 = tpu.matmul %52, %53, %cst_54 {dimension_numbers = #tpu.dot_dimension_numbers<[1], [0], [0], [1], [0, 0, 1, 1], [], []>} : vector<64x128xbf16>, vector<128x128xbf16>, vector<64x128xf32> -> vector<64x128xf32>
    %55 = arith.addf %50, %54 : vector<64x128xf32>
    %c2_55 = arith.constant 2 : index
    %c0_56 = arith.constant 0 : index
    %c0_57 = arith.constant 0 : index
    %56 = vector.load %arg9[%c2_55, %c0_56, %c0_57] : memref<10x10x128xbf16, #tpu.memory_space<vmem>>, vector<8x8x128xbf16>
    %57 = vector.shape_cast %56 : vector<8x8x128xbf16> to vector<64x128xbf16>
    %c768 = arith.constant 768 : index
    %c0_58 = arith.constant 0 : index
    %58 = vector.load %arg6[%c768, %c0_58] : memref<1152x128xbf16, #tpu.memory_space<vmem>>, vector<128x128xbf16>
    %cst_59 = arith.constant dense<0.000000e+00> : vector<64x128xf32>
    %59 = tpu.matmul %57, %58, %cst_59 {dimension_numbers = #tpu.dot_dimension_numbers<[1], [0], [0], [1], [0, 0, 1, 1], [], []>} : vector<64x128xbf16>, vector<128x128xbf16>, vector<64x128xf32> -> vector<64x128xf32>
    %60 = arith.addf %55, %59 : vector<64x128xf32>
    %c2_60 = arith.constant 2 : index
    %c1_61 = arith.constant 1 : index
    %c0_62 = arith.constant 0 : index
    %61 = vector.load %arg9[%c2_60, %c1_61, %c0_62] : memref<10x10x128xbf16, #tpu.memory_space<vmem>>, vector<8x8x128xbf16>
    %62 = vector.shape_cast %61 : vector<8x8x128xbf16> to vector<64x128xbf16>
    %c896 = arith.constant 896 : index
    %c0_63 = arith.constant 0 : index
    %63 = vector.load %arg6[%c896, %c0_63] : memref<1152x128xbf16, #tpu.memory_space<vmem>>, vector<128x128xbf16>
    %cst_64 = arith.constant dense<0.000000e+00> : vector<64x128xf32>
    %64 = tpu.matmul %62, %63, %cst_64 {dimension_numbers = #tpu.dot_dimension_numbers<[1], [0], [0], [1], [0, 0, 1, 1], [], []>} : vector<64x128xbf16>, vector<128x128xbf16>, vector<64x128xf32> -> vector<64x128xf32>
    %65 = arith.addf %60, %64 : vector<64x128xf32>
    %c2_65 = arith.constant 2 : index
    %c2_66 = arith.constant 2 : index
    %c0_67 = arith.constant 0 : index
    %66 = vector.load %arg9[%c2_65, %c2_66, %c0_67] : memref<10x10x128xbf16, #tpu.memory_space<vmem>>, vector<8x8x128xbf16>
    %67 = vector.shape_cast %66 : vector<8x8x128xbf16> to vector<64x128xbf16>
    %c1024 = arith.constant 1024 : index
    %c0_68 = arith.constant 0 : index
    %68 = vector.load %arg6[%c1024, %c0_68] : memref<1152x128xbf16, #tpu.memory_space<vmem>>, vector<128x128xbf16>
    %cst_69 = arith.constant dense<0.000000e+00> : vector<64x128xf32>
    %69 = tpu.matmul %67, %68, %cst_69 {dimension_numbers = #tpu.dot_dimension_numbers<[1], [0], [0], [1], [0, 0, 1, 1], [], []>} : vector<64x128xbf16>, vector<128x128xbf16>, vector<64x128xf32> -> vector<64x128xf32>
    %70 = arith.addf %65, %69 : vector<64x128xf32>
    %71 = vector.shape_cast %70 : vector<64x128xf32> to vector<8x8x128xf32>
    %72 = arith.truncf %71 : vector<8x8x128xf32> to vector<8x8x128xbf16>
    %c0_70 = arith.constant 0 : index
    %c0_71 = arith.constant 0 : index
    %c0_72 = arith.constant 0 : index
    %c0_73 = arith.constant 0 : index
    %73 = vector.load %arg7[%c0_70, %c0_71, %c0_72, %c0_73] : memref<1x8x8x128xbf16, #tpu.memory_space<vmem>>, vector<1x8x8x128xbf16>
    %74 = vector.shape_cast %73 : vector<1x8x8x128xbf16> to vector<8x8x128xbf16>
    %75 = vector.shape_cast %72 : vector<8x8x128xbf16> to vector<1x8x8x128xbf16>
    tpu.vector_store %arg7[%c0_70, %c0_71, %c0_72, %c0_73], %75 {strides = array<i32>} : memref<1x8x8x128xbf16, #tpu.memory_space<vmem>>, vector<1x8x8x128xbf16>,
    %cst_74 = arith.constant dense<0.000000e+00> : vector<128xf32>
    %76 = vector.multi_reduction <add>, %70, %cst_74 [0] : vector<64x128xf32> to vector<128xf32>
    %77 = vector.shape_cast %76 : vector<128xf32> to vector<1x128xf32>
    %c0_75 = arith.constant 0 : index
    %c0_76 = arith.constant 0 : index
    %c0_77 = arith.constant 0 : index
    %78 = vector.load %arg8[%c0_75, %c0_76, %c0_77] : memref<1x2x128xf32, #tpu.memory_space<vmem>>, vector<1x1x128xf32>
    %79 = vector.shape_cast %78 : vector<1x1x128xf32> to vector<1x128xf32>
    %80 = vector.shape_cast %77 : vector<1x128xf32> to vector<1x1x128xf32>
    tpu.vector_store %arg8[%c0_75, %c0_76, %c0_77], %80 {strides = array<i32>} : memref<1x2x128xf32, #tpu.memory_space<vmem>>, vector<1x1x128xf32>,
    %81 = arith.mulf %70, %70 : vector<64x128xf32>
    %cst_78 = arith.constant dense<0.000000e+00> : vector<128xf32>
    %82 = vector.multi_reduction <add>, %81, %cst_78 [0] : vector<64x128xf32> to vector<128xf32>
    %83 = vector.shape_cast %82 : vector<128xf32> to vector<1x128xf32>
    %c0_79 = arith.constant 0 : index
    %c1_80 = arith.constant 1 : index
    %c0_81 = arith.constant 0 : index
    %84 = vector.load %arg8[%c0_79, %c1_80, %c0_81] : memref<1x2x128xf32, #tpu.memory_space<vmem>>, vector<1x1x128xf32>
    %85 = vector.shape_cast %84 : vector<1x1x128xf32> to vector<1x128xf32>
    %86 = vector.shape_cast %83 : vector<1x128xf32> to vector<1x1x128xf32>
    tpu.vector_store %arg8[%c0_79, %c1_80, %c0_81], %86 {strides = array<i32>} : memref<1x2x128xf32, #tpu.memory_space<vmem>>, vector<1x1x128xf32>,
    return
  }
  func.func @transform_0(%arg0: i32, %arg1: i32) -> (i32, i32, i32, i32) {
    %c0_i32 = arith.constant 0 : i32
    %c0_i32_0 = arith.constant 0 : i32
    %c0_i32_1 = arith.constant 0 : i32
    return %arg0, %arg1, %c0_i32, %c0_i32_0 : i32, i32, i32, i32
  }
  func.func @transform_1(%arg0: i32, %arg1: i32) -> (i32, i32, i32, i32) {
    %c8_i32 = arith.constant 8 : i32
    %0 = arith.muli %arg1, %c8_i32 : i32
    %c1_i32 = arith.constant 1 : i32
    %1 = arith.subi %0, %c1_i32 : i32
    %c0_i32 = arith.constant 0 : i32
    %2 = arith.maxsi %1, %c0_i32 : i32
    %c0_i32_0 = arith.constant 0 : i32
    %c0_i32_1 = arith.constant 0 : i32
    %c0_i32_2 = arith.constant 0 : i32
    return %arg0, %2, %c0_i32_0, %c0_i32_1 : i32, i32, i32, i32
  }
  func.func @transform_2(%arg0: i32, %arg1: i32) -> (i32, i32, i32, i32) {
    %c8_i32 = arith.constant 8 : i32
    %0 = arith.muli %arg1, %c8_i32 : i32
    %c8_i32_0 = arith.constant 8 : i32
    %1 = arith.addi %0, %c8_i32_0 : i32
    %c7_i32 = arith.constant 7 : i32
    %2 = arith.minsi %1, %c7_i32 : i32
    %c0_i32 = arith.constant 0 : i32
    %c0_i32_1 = arith.constant 0 : i32
    %c0_i32_2 = arith.constant 0 : i32
    return %arg0, %2, %c0_i32, %c0_i32_1 : i32, i32, i32, i32
  }
  func.func @transform_3(%arg0: i32, %arg1: i32) -> (i32, i32) {
    %c0_i32 = arith.constant 0 : i32
    %c0_i32_0 = arith.constant 0 : i32
    %c0_i32_1 = arith.constant 0 : i32
    return %c0_i32, %c0_i32_0 : i32, i32
  }
  func.func @transform_4(%arg0: i32, %arg1: i32) -> (i32, i32) {
    %c0_i32 = arith.constant 0 : i32
    %c0_i32_0 = arith.constant 0 : i32
    %c0_i32_1 = arith.constant 0 : i32
    return %c0_i32, %c0_i32_0 : i32, i32
  }
  func.func @transform_5(%arg0: i32, %arg1: i32) -> (i32, i32, i32, i32) {
    %c0_i32 = arith.constant 0 : i32
    %c0_i32_0 = arith.constant 0 : i32
    %c0_i32_1 = arith.constant 0 : i32
    return %arg0, %arg1, %c0_i32, %c0_i32_0 : i32, i32, i32, i32
  }
  func.func @transform_6(%arg0: i32, %arg1: i32) -> (i32, i32, i32) {
    %c1_i32 = arith.constant 1 : i32
    %0 = arith.muli %arg0, %c1_i32 : i32
    %1 = arith.addi %0, %arg1 : i32
    %c0_i32 = arith.constant 0 : i32
    %c0_i32_0 = arith.constant 0 : i32
    %c0_i32_1 = arith.constant 0 : i32
    return %1, %c0_i32, %c0_i32_0 : i32, i32, i32
  }
}

</mosaic_0001>

<llo_original>
// kernel: down_forward.5
$region0: #{down_forward.5}
  #allocation0 [shape = 'u32[]', space=smem, size = 0x4, offset = 0x4, fixed_abs, tag = 'smem constant byte address 0x4 - core index']
  #allocation1 [shape = 'u32[144,128]{1,0:T(1,128)}', space=vmem, size = 0x12000, scoped, tag = 'internal scratch']
  %s0 = inlined_call_operand.vmem [shape: bf16[2,8,8,128], index: 0, kind: input, shape index: {}]
  %s1 = inlined_call_operand.vmem [shape: f32[2,128], index: 1, kind: input, shape index: {}]
  %s2 = inlined_call_operand.vmem [shape: f32[2,8,8,8], index: 2, kind: output, shape index: {}]
  %s3 = sld [smem:[#allocation0]]
  $region41: #{down_forward.5} parent=0
    _
  %s5 = ssub.s32 1, %s3
  %s6 = scalar_select 0, %s5, %s3
  loop: start=0, step=1, limit=4
  $region2: #{down_forward.5} parent=0 // loop_pre_header
    _
  $region3: #{down_forward.5} parent=0 // loop_header
    %s8 = sphi 0, %s12
    %p9 = scmp.ge.s32.totalorder %s8, 4
    %s15 = sphi 0, %s27
    %s16 = sphi 0, %s23
    %s17 = sphi 0, %s15
    %s18 = sphi 0, %s16
    %s19 = sphi 0, %s17
    %s20 = sphi 0, %s18
    %s32 = sphi 0, %s34
    %s35 = sphi 0, %s32
    %s36 = sphi 0, %s35
    %s52 = sphi 0, %s36
    %s56 = sphi 0, %s56
    %s58 = sphi 0, %s56
    %s59 = sphi 0, %s58
    %s73 = sphi 0, %s59
    %s81 = sphi 0, %s83
    %s84 = sphi 0, %s81
    %s85 = sphi 0, %s84
    %s101 = sphi 0, %s85
  $region4: #{down_forward.5} parent=0 // loop_header_branch
    %11 = sbr.rel (%p9) target = $region8
  $region5: #{down_forward.5} parent=0 // loop_body
    %s13 = ssub.s32 %s8, 1
    %s14 = ssub.s32 %s8, 2
    %s21 = sadd.s32 1, %s16
    %p22 = scmp.ge.s32.totalorder %s21, 1
    %s23 = scalar_select %p22, 0, %s21
    %s24 = sadd.s32 1, %s15
    %s25 = scalar_select %p22, %s24, %s15
    %p26 = scmp.ge.s32.totalorder %s25, 2
    %s27 = scalar_select %p26, 0, %s25
    %s28 = ssub.s32 %s15, %s27
    %s29 = ssub.s32 %s16, %s23
    %s30 = sor.u32 %s28, %s29
    %p31 = scmp.eq.s32.totalorder %s30, 0
    %s33 = sadd.s32 %s32, 1
    %s34 = scalar_select %p31, %s32, %s33
    %p37 = pneg %p31
    %p38 = scmp.eq.s32.totalorder %s8, 1
    %p39 = por %p37, %p38
    %p40 = scmp.ne.s32.totalorder %s32, %s35
    %p41 = scmp.eq.s32.totalorder %s8, 0
    %p42 = por %p40, %p41
    %p43 = scmp.ne.s32.totalorder %s32, %s35
    %p44 = scmp.eq.s32.totalorder %s13, 1
    %p45 = por %p43, %p44
    %p46 = scmp.ne.s32.totalorder %s35, %s36
    %p47 = scmp.eq.s32.totalorder %s13, 0
    %p48 = por %p46, %p47
    %p49 = scmp.ne.s32.totalorder %s35, %s36
    %p50 = scmp.eq.s32.totalorder %s14, 1
    %p51 = por %p49, %p50
    %p53 = scmp.ne.s32.totalorder %s36, %s52
    %p54 = scmp.eq.s32.totalorder %s14, 0
    %p55 = por %p53, %p54
    %s57 = sadd.s32 %s56, 1
    %p60 = scmp.eq.s32.totalorder %s8, 1
    %p61 = scmp.ne.s32.totalorder %s56, %s58
    %p62 = scmp.eq.s32.totalorder %s8, 0
    %p63 = por %p61, %p62
    %p64 = scmp.ne.s32.totalorder %s56, %s58
    %p65 = scmp.eq.s32.totalorder %s13, 1
    %p66 = por %p64, %p65
    %p67 = scmp.ne.s32.totalorder %s58, %s59
    %p68 = scmp.eq.s32.totalorder %s13, 0
    %p69 = por %p67, %p68
    %p70 = scmp.ne.s32.totalorder %s58, %s59
    %p71 = scmp.eq.s32.totalorder %s14, 1
    %p72 = por %p70, %p71
    %p74 = scmp.ne.s32.totalorder %s59, %s73
    %p75 = scmp.eq.s32.totalorder %s14, 0
    %p76 = por %p74, %p75
    %s77 = ssub.s32 %s15, %s27
    %s78 = ssub.s32 %s16, %s23
    %s79 = sor.u32 %s77, %s78
    %p80 = scmp.eq.s32.totalorder %s79, 0
    %s82 = sadd.s32 %s81, 1
    %s83 = scalar_select %p80, %s81, %s82
    %p86 = pneg %p80
    %p87 = scmp.eq.s32.totalorder %s8, 1
    %p88 = por %p86, %p87
    %p89 = scmp.ne.s32.totalorder %s81, %s84
    %p90 = scmp.eq.s32.totalorder %s8, 0
    %p91 = por %p89, %p90
    %p92 = scmp.ne.s32.totalorder %s81, %s84
    %p93 = scmp.eq.s32.totalorder %s13, 1
    %p94 = por %p92, %p93
    %p95 = scmp.ne.s32.totalorder %s84, %s85
    %p96 = scmp.eq.s32.totalorder %s13, 0
    %p97 = por %p95, %p96
    %p98 = scmp.ne.s32.totalorder %s84, %s85
    %p99 = scmp.eq.s32.totalorder %s14, 1
    %p100 = por %p98, %p99
    %p102 = scmp.ne.s32.totalorder %s85, %s101
    %p103 = scmp.eq.s32.totalorder %s14, 0
    %p104 = por %p102, %p103
    %p105 = scmp.le.s32.totalorder 1, %s8
    %p106 = scmp.lt.s32.totalorder %s8, 3
    %p107 = pnand %p105, %p106
    %p108 = pneg %p107
    // Predicated region
    $region9: #{down_forward.5} parent=5 // pred_check
      _
    $region10: #{down_forward.5} parent=5 // pred_check_branch
      %110 = sbr.rel (%p107) target = $region12
    $region11: #{down_forward.5} parent=5 // pred_region
      %s111 = ssub.s32 %s8, 1
      // Predicated region
      $region13: #{down_forward.5} parent=11 // pred_check
        %p112 = pneg %p69
      $region14: #{down_forward.5} parent=11 // pred_check_branch
        %114 = sbr.rel (%p112) target = $region16
      $region15: #{down_forward.5} parent=11 // pred_region
        _
      $region16: #{down_forward.5} parent=11 // pred_fallthru
        _
    $region12: #{down_forward.5} parent=5 // pred_fallthru
      _
    %p115 = scmp.lt.s32.totalorder %s8, 2
    // Predicated region
    $region17: #{down_forward.5} parent=5 // pred_check
      %p116 = pneg %p115
    $region18: #{down_forward.5} parent=5 // pred_check_branch
      %118 = sbr.rel (%p116) target = $region20
    $region19: #{down_forward.5} parent=5 // pred_region
      // Predicated region
      $region21: #{down_forward.5} parent=19 // pred_check
        %p119 = pneg %p42
      $region22: #{down_forward.5} parent=19 // pred_check_branch
        %121 = sbr.rel (%p119) target = $region24
      $region23: #{down_forward.5} parent=19 // pred_region
        %s122 = smul.u32 8, %s16
        %p123 = scmp.lt.s32.totalorder %s15, 1
        %s124 = scalar_select %p123, %s15, 1
        %p125 = scmp.lt.s32.totalorder %s122, 7
        %s126 = scalar_select %p125, %s122, 7
        %s127 = smul.addr %s124, 8
        %s128 = sadd.s32 %s126, %s127
        %s129 = smul.addr %s128, 4
        %s130 = scalar_lea.vmem %s0, %s129
        %s131 = smul.u32 8, %s16
      $region24: #{down_forward.5} parent=19 // pred_fallthru
        _
    $region20: #{down_forward.5} parent=5 // pred_fallthru
      _
    %p132 = scmp.le.s32.totalorder 1, %s8
    %p133 = scmp.lt.s32.totalorder %s8, 3
    %p134 = pnand %p132, %p133
    %p135 = pneg %p134
    // Predicated region
    $region25: #{down_forward.5} parent=5 // pred_check
      _
    $region26: #{down_forward.5} parent=5 // pred_check_branch
      %137 = sbr.rel (%p134) target = $region28
    $region27: #{down_forward.5} parent=5 // pred_region
      %s138 = ssub.s32 %s8, 1
      %s139 = smul.u32 8, %s18
      %p140 = scmp.lt.s32.totalorder %s17, 1
      %s141 = scalar_select %p140, %s17, 1
      %p142 = scmp.lt.s32.totalorder %s139, 7
      %s143 = scalar_select %p142, %s139, 7
      %s144 = smul.addr %s141, 8
      %s145 = sadd.s32 %s143, %s144
      %s146 = smul.addr %s145, 4
      %s147 = scalar_lea.vmem %s0, %s146
      %p148 = pneg %p48
      %p149 = pneg %p45
      %p150 = pneg %p69
      %p151 = pneg %p66
      %p152 = pneg %p97
      %p153 = pneg %p94
      %s154 = smul.u32 8, %s18
      %p155 = scmp.lt.s32.totalorder %s17, 1
      %s156 = scalar_select %p155, %s17, 1
      %p157 = scmp.lt.s32.totalorder %s154, 7
      %s158 = scalar_select %p157, %s154, 7
      %s159 = smul.addr %s156, 8
      %s160 = sadd.s32 %s158, %s159
      %s161 = smul.addr %s160, 8
      %s162 = scalar_lea.vmem %s2, %s161
      %s163 = smul.u32 8, %s18
      %p164 = scmp.lt.s32.totalorder %s17, 1
      %s165 = scalar_select %p164, %s17, 1
      %p166 = scmp.lt.s32.totalorder %s163, 7
      %s167 = scalar_select %p166, %s163, 7
      %s168 = smul.addr %s165, 8
      %s169 = sadd.s32 %s167, %s168
      %s170 = smul.addr %s169, 4
      %s171 = scalar_lea.vmem %s0, %s170
      %s172 = smul.u32 8, %s18
      %s173 = smul.u32 8, %s18
      %p174 = scmp.lt.s32.totalorder %s17, 1
      %s175 = scalar_select %p174, %s17, 1
      %p176 = scmp.lt.s32.totalorder %s173, 7
      %s177 = scalar_select %p176, %s173, 7
      %s178 = smul.addr %s175, 8
      %s179 = sadd.s32 %s177, %s178
      %s180 = smul.addr %s179, 8
      %s181 = scalar_lea.vmem %s2, %s180
      %s182 = smul.u32 8, %s18
      %v183 = vld [vmem:[%s1] sm:$0x1]
      %v184 = vld [vmem:[%s1 + $0x1] sm:$0x1]
      %v185 = vld [vmem:[%s171] sm:$0xf]
      %v186 = vld [vmem:[%s171 + $0x4] sm:$0xf]
      %v187 = vld [vmem:[%s171 + $0x8] sm:$0xf]
      %v188 = vld [vmem:[%s171 + $0xc] sm:$0xf]
      %v189 = vld [vmem:[%s171 + $0x10] sm:$0xf]
      %v190 = vld [vmem:[%s171 + $0x14] sm:$0xf]
      %v191 = vld [vmem:[%s171 + $0x18] sm:$0xf]
      %v192 = vld [vmem:[%s171 + $0x1c] sm:$0xf]
      %v193 = vunpack.c.l.bf16 %v185
      %v194 = vunpack.c.l.bf16 %v186
      %v195 = vunpack.c.l.bf16 %v187
      %v196 = vunpack.c.l.bf16 %v188
      %v197 = vunpack.c.l.bf16 %v189
      %v198 = vunpack.c.l.bf16 %v190
      %v199 = vunpack.c.l.bf16 %v191
      %v200 = vunpack.c.l.bf16 %v192
      %v201 = vlaneseq
      %v202 = vshrl.u32 %v201, 7
      %v203 = vsub.s32 0, %v202
      %v204 = vrot.slane %v183, %v203
      %v205 = vmul.f32 %v193, %v204
      %v206 = vmul.f32 %v194, %v204
      %v207 = vmul.f32 %v195, %v204
      %v208 = vmul.f32 %v196, %v204
      %v209 = vmul.f32 %v197, %v204
      %v210 = vmul.f32 %v198, %v204
      %v211 = vmul.f32 %v199, %v204
      %v212 = vmul.f32 %v200, %v204
      %v213 = vlaneseq
      %v214 = vshrl.u32 %v213, 7
      %v215 = vsub.s32 0, %v214
      %v216 = vrot.slane %v184, %v215
      %v217 = vadd.f32 %v205, %v216
      %v218 = vadd.f32 %v206, %v216
      %v219 = vadd.f32 %v207, %v216
      %v220 = vadd.f32 %v208, %v216
      %v221 = vadd.f32 %v209, %v216
      %v222 = vadd.f32 %v210, %v216
      %v223 = vadd.f32 %v211, %v216
      %v224 = vadd.f32 %v212, %v216
      %v225 = vmax.f32 %v217, 0.0
      %v226 = vmax.f32 %v218, 0.0
      %v227 = vmax.f32 %v219, 0.0
      %v228 = vmax.f32 %v220, 0.0
      %v229 = vmax.f32 %v221, 0.0
      %v230 = vmax.f32 %v222, 0.0
      %v231 = vmax.f32 %v223, 0.0
      %v232 = vmax.f32 %v224, 0.0
      %vm233 = vcmask 64512
      %234 = vst.msk [vmem:[%s181] sm:$0xff] %vm233, %v225
      %235 = vst.msk [vmem:[%s181 + $0x8] sm:$0xff] %vm233, %v226
      %236 = vst.msk [vmem:[%s181 + $0x10] sm:$0xff] %vm233, %v227
      %237 = vst.msk [vmem:[%s181 + $0x18] sm:$0xff] %vm233, %v228
      %238 = vst.msk [vmem:[%s181 + $0x20] sm:$0xff] %vm233, %v229
      %239 = vst.msk [vmem:[%s181 + $0x28] sm:$0xff] %vm233, %v230
      %240 = vst.msk [vmem:[%s181 + $0x30] sm:$0xff] %vm233, %v231
      %241 = vst.msk [vmem:[%s181 + $0x38] sm:$0xff] %vm233, %v232
      %s242 = smul.u32 8, %s18
      %p243 = scmp.lt.s32.totalorder %s17, 1
      %s244 = scalar_select %p243, %s17, 1
      %p245 = scmp.lt.s32.totalorder %s242, 7
      %s246 = scalar_select %p245, %s242, 7
      %s247 = smul.addr %s244, 8
      %s248 = sadd.s32 %s246, %s247
      %s249 = smul.addr %s248, 8
      %s250 = scalar_lea.vmem %s2, %s249
      // Predicated region
      $region29: #{down_forward.5} parent=27 // pred_check
        %p251 = pneg %p94
      $region30: #{down_forward.5} parent=27 // pred_check_branch
        %253 = sbr.rel (%p251) target = $region32
      $region31: #{down_forward.5} parent=27 // pred_region
        %s254 = smul.u32 8, %s18
      $region32: #{down_forward.5} parent=27 // pred_fallthru
        _
    $region28: #{down_forward.5} parent=5 // pred_fallthru
      _
    %p255 = scmp.le.s32.totalorder 2, %s8
    // Predicated region
    $region33: #{down_forward.5} parent=5 // pred_check
      %p256 = pneg %p255
    $region34: #{down_forward.5} parent=5 // pred_check_branch
      %258 = sbr.rel (%p256) target = $region36
    $region35: #{down_forward.5} parent=5 // pred_region
      %s259 = ssub.s32 %s8, 2
      // Predicated region
      $region37: #{down_forward.5} parent=35 // pred_check
        %p260 = pneg %p100
      $region38: #{down_forward.5} parent=35 // pred_check_branch
        %262 = sbr.rel (%p260) target = $region40
      $region39: #{down_forward.5} parent=35 // pred_region
        %s263 = smul.u32 8, %s20
        %p264 = scmp.lt.s32.totalorder %s19, 1
        %s265 = scalar_select %p264, %s19, 1
        %p266 = scmp.lt.s32.totalorder %s263, 7
        %s267 = scalar_select %p266, %s263, 7
        %s268 = smul.addr %s265, 8
        %s269 = sadd.s32 %s267, %s268
        %s270 = smul.addr %s269, 8
        %s271 = scalar_lea.vmem %s2, %s270
      $region40: #{down_forward.5} parent=35 // pred_fallthru
        _
    $region36: #{down_forward.5} parent=5 // pred_fallthru
      _
  $region6: #{down_forward.5} parent=0 // loop_footer
    %s12 = sadd.s32 1, %s8
  $region7: #{down_forward.5} parent=0 // loop_footer_branch
    %7 = sbr.rel target = $region3
  $region8: #{down_forward.5} parent=0 // loop_exit
    _

// kernel: down_forward.4
$region0: #{down_forward.4}
  #allocation0 [shape = 'u32[]', space=smem, size = 0x4, offset = 0x4, fixed_abs, tag = 'smem constant byte address 0x4 - core index']
  #allocation1 [shape = 'u32[144,128]{1,0:T(1,128)}', space=vmem, size = 0x12000, scoped, tag = 'internal scratch']
  #allocation2 [shape = 'bf16[10,10,128]{2,1,0:T(8,128)(2,1)}', space=vmem, size = 0xa000, scoped, tag = 'scratch operand']
  %s0 = inlined_call_operand.vmem [shape: bf16[2,8,8,128], index: 0, kind: input, shape index: {}, may-alias: {0,1,2}]
  %s1 = inlined_call_operand.vmem [shape: bf16[2,8,8,128], index: 1, kind: input, shape index: {}, may-alias: {0,1,2}]
  %s2 = inlined_call_operand.vmem [shape: bf16[2,8,8,128], index: 2, kind: input, shape index: {}, may-alias: {0,1,2}]
  %s3 = inlined_call_operand.vmem [shape: f32[2,128], index: 3, kind: input, shape index: {}]
  %s4 = inlined_call_operand.vmem [shape: bf16[1152,128], index: 4, kind: input, shape index: {}]
  %s5 = inlined_call_operand.vmem [shape: bf16[2,8,8,128], index: 5, kind: output, shape index: {0}]
  %s6 = inlined_call_operand.vmem [shape: f32[2,2,128], index: 6, kind: output, shape index: {1}]
  %7 = xla_tuple %s5, %s6
  %s8 = sld [smem:[#allocation0]]
  $region69: #{down_forward.4} parent=0
    _
  %s10 = ssub.s32 1, %s8
  %s11 = scalar_select 0, %s10, %s8
  loop: start=0, step=1, limit=4
  $region2: #{down_forward.4} parent=0 // loop_pre_header
    _
  $region3: #{down_forward.4} parent=0 // loop_header
    %s13 = sphi 0, %s17
    %p14 = scmp.ge.s32.totalorder %s13, 4
    %s20 = sphi 0, %s32
    %s21 = sphi 0, %s28
    %s22 = sphi 0, %s20
    %s23 = sphi 0, %s21
    %s24 = sphi 0, %s22
    %s25 = sphi 0, %s23
    %s37 = sphi 0, %s39
    %s40 = sphi 0, %s37
    %s41 = sphi 0, %s40
    %s57 = sphi 0, %s41
    %s73 = sphi 0, %s75
    %s76 = sphi 0, %s73
    %s77 = sphi 0, %s76
    %s93 = sphi 0, %s77
    %s109 = sphi 0, %s111
    %s112 = sphi 0, %s109
    %s113 = sphi 0, %s112
    %s129 = sphi 0, %s113
    %s133 = sphi 0, %s133
    %s135 = sphi 0, %s133
    %s136 = sphi 0, %s135
    %s150 = sphi 0, %s136
    %s154 = sphi 0, %s154
    %s156 = sphi 0, %s154
    %s157 = sphi 0, %s156
    %s171 = sphi 0, %s157
    %s179 = sphi 0, %s181
    %s182 = sphi 0, %s179
    %s183 = sphi 0, %s182
    %s199 = sphi 0, %s183
    %s207 = sphi 0, %s209
    %s210 = sphi 0, %s207
    %s211 = sphi 0, %s210
    %s227 = sphi 0, %s211
  $region4: #{down_forward.4} parent=0 // loop_header_branch
    %16 = sbr.rel (%p14) target = $region8
  $region5: #{down_forward.4} parent=0 // loop_body
    %s18 = ssub.s32 %s13, 1
    %s19 = ssub.s32 %s13, 2
    %s26 = sadd.s32 1, %s21
    %p27 = scmp.ge.s32.totalorder %s26, 1
    %s28 = scalar_select %p27, 0, %s26
    %s29 = sadd.s32 1, %s20
    %s30 = scalar_select %p27, %s29, %s20
    %p31 = scmp.ge.s32.totalorder %s30, 2
    %s32 = scalar_select %p31, 0, %s30
    %s33 = ssub.s32 %s20, %s32
    %s34 = ssub.s32 %s21, %s28
    %s35 = sor.u32 %s33, %s34
    %p36 = scmp.eq.s32.totalorder %s35, 0
    %s38 = sadd.s32 %s37, 1
    %s39 = scalar_select %p36, %s37, %s38
    %p42 = pneg %p36
    %p43 = scmp.eq.s32.totalorder %s13, 1
    %p44 = por %p42, %p43
    %p45 = scmp.ne.s32.totalorder %s37, %s40
    %p46 = scmp.eq.s32.totalorder %s13, 0
    %p47 = por %p45, %p46
    %p48 = scmp.ne.s32.totalorder %s37, %s40
    %p49 = scmp.eq.s32.totalorder %s18, 1
    %p50 = por %p48, %p49
    %p51 = scmp.ne.s32.totalorder %s40, %s41
    %p52 = scmp.eq.s32.totalorder %s18, 0
    %p53 = por %p51, %p52
    %p54 = scmp.ne.s32.totalorder %s40, %s41
    %p55 = scmp.eq.s32.totalorder %s19, 1
    %p56 = por %p54, %p55
    %p58 = scmp.ne.s32.totalorder %s41, %s57
    %p59 = scmp.eq.s32.totalorder %s19, 0
    %p60 = por %p58, %p59
    %s61 = smul.u32 %s21, 8
    %s62 = ssub.s32 %s61, 1
    %p63 = scmp.gt.s32.totalorder %s62, 0
    %s64 = scalar_select %p63, %s62, 0
    %s65 = smul.u32 %s28, 8
    %s66 = ssub.s32 %s65, 1
    %p67 = scmp.gt.s32.totalorder %s66, 0
    %s68 = scalar_select %p67, %s66, 0
    %s69 = ssub.s32 %s20, %s32
    %s70 = ssub.s32 %s64, %s68
    %s71 = sor.u32 %s69, %s70
    %p72 = scmp.eq.s32.totalorder %s71, 0
    %s74 = sadd.s32 %s73, 1
    %s75 = scalar_select %p72, %s73, %s74
    %p78 = pneg %p72
    %p79 = scmp.eq.s32.totalorder %s13, 1
    %p80 = por %p78, %p79
    %p81 = scmp.ne.s32.totalorder %s73, %s76
    %p82 = scmp.eq.s32.totalorder %s13, 0
    %p83 = por %p81, %p82
    %p84 = scmp.ne.s32.totalorder %s73, %s76
    %p85 = scmp.eq.s32.totalorder %s18, 1
    %p86 = por %p84, %p85
    %p87 = scmp.ne.s32.totalorder %s76, %s77
    %p88 = scmp.eq.s32.totalorder %s18, 0
    %p89 = por %p87, %p88
    %p90 = scmp.ne.s32.totalorder %s76, %s77
    %p91 = scmp.eq.s32.totalorder %s19, 1
    %p92 = por %p90, %p91
    %p94 = scmp.ne.s32.totalorder %s77, %s93
    %p95 = scmp.eq.s32.totalorder %s19, 0
    %p96 = por %p94, %p95
    %s97 = smul.u32 %s21, 8
    %s98 = sadd.s32 %s97, 8
    %p99 = scmp.lt.s32.totalorder %s98, 7
    %s100 = scalar_select %p99, %s98, 7
    %s101 = smul.u32 %s28, 8
    %s102 = sadd.s32 %s101, 8
    %p103 = scmp.lt.s32.totalorder %s102, 7
    %s104 = scalar_select %p103, %s102, 7
    %s105 = ssub.s32 %s20, %s32
    %s106 = ssub.s32 %s100, %s104
    %s107 = sor.u32 %s105, %s106
    %p108 = scmp.eq.s32.totalorder %s107, 0
    %s110 = sadd.s32 %s109, 1
    %s111 = scalar_select %p108, %s109, %s110
    %p114 = pneg %p108
    %p115 = scmp.eq.s32.totalorder %s13, 1
    %p116 = por %p114, %p115
    %p117 = scmp.ne.s32.totalorder %s109, %s112
    %p118 = scmp.eq.s32.totalorder %s13, 0
    %p119 = por %p117, %p118
    %p120 = scmp.ne.s32.totalorder %s109, %s112
    %p121 = scmp.eq.s32.totalorder %s18, 1
    %p122 = por %p120, %p121
    %p123 = scmp.ne.s32.totalorder %s112, %s113
    %p124 = scmp.eq.s32.totalorder %s18, 0
    %p125 = por %p123, %p124
    %p126 = scmp.ne.s32.totalorder %s112, %s113
    %p127 = scmp.eq.s32.totalorder %s19, 1
    %p128 = por %p126, %p127
    %p130 = scmp.ne.s32.totalorder %s113, %s129
    %p131 = scmp.eq.s32.totalorder %s19, 0
    %p132 = por %p130, %p131
    %s134 = sadd.s32 %s133, 1
    %p137 = scmp.eq.s32.totalorder %s13, 1
    %p138 = scmp.ne.s32.totalorder %s133, %s135
    %p139 = scmp.eq.s32.totalorder %s13, 0
    %p140 = por %p138, %p139
    %p141 = scmp.ne.s32.totalorder %s133, %s135
    %p142 = scmp.eq.s32.totalorder %s18, 1
    %p143 = por %p141, %p142
    %p144 = scmp.ne.s32.totalorder %s135, %s136
    %p145 = scmp.eq.s32.totalorder %s18, 0
    %p146 = por %p144, %p145
    %p147 = scmp.ne.s32.totalorder %s135, %s136
    %p148 = scmp.eq.s32.totalorder %s19, 1
    %p149 = por %p147, %p148
    %p151 = scmp.ne.s32.totalorder %s136, %s150
    %p152 = scmp.eq.s32.totalorder %s19, 0
    %p153 = por %p151, %p152
    %s155 = sadd.s32 %s154, 1
    %p158 = scmp.eq.s32.totalorder %s13, 1
    %p159 = scmp.ne.s32.totalorder %s154, %s156
    %p160 = scmp.eq.s32.totalorder %s13, 0
    %p161 = por %p159, %p160
    %p162 = scmp.ne.s32.totalorder %s154, %s156
    %p163 = scmp.eq.s32.totalorder %s18, 1
    %p164 = por %p162, %p163
    %p165 = scmp.ne.s32.totalorder %s156, %s157
    %p166 = scmp.eq.s32.totalorder %s18, 0
    %p167 = por %p165, %p166
    %p168 = scmp.ne.s32.totalorder %s156, %s157
    %p169 = scmp.eq.s32.totalorder %s19, 1
    %p170 = por %p168, %p169
    %p172 = scmp.ne.s32.totalorder %s157, %s171
    %p173 = scmp.eq.s32.totalorder %s19, 0
    %p174 = por %p172, %p173
    %s175 = ssub.s32 %s20, %s32
    %s176 = ssub.s32 %s21, %s28
    %s177 = sor.u32 %s175, %s176
    %p178 = scmp.eq.s32.totalorder %s177, 0
    %s180 = sadd.s32 %s179, 1
    %s181 = scalar_select %p178, %s179, %s180
    %p184 = pneg %p178
    %p185 = scmp.eq.s32.totalorder %s13, 1
    %p186 = por %p184, %p185
    %p187 = scmp.ne.s32.totalorder %s179, %s182
    %p188 = scmp.eq.s32.totalorder %s13, 0
    %p189 = por %p187, %p188
    %p190 = scmp.ne.s32.totalorder %s179, %s182
    %p191 = scmp.eq.s32.totalorder %s18, 1
    %p192 = por %p190, %p191
    %p193 = scmp.ne.s32.totalorder %s182, %s183
    %p194 = scmp.eq.s32.totalorder %s18, 0
    %p195 = por %p193, %p194
    %p196 = scmp.ne.s32.totalorder %s182, %s183
    %p197 = scmp.eq.s32.totalorder %s19, 1
    %p198 = por %p196, %p197
    %p200 = scmp.ne.s32.totalorder %s183, %s199
    %p201 = scmp.eq.s32.totalorder %s19, 0
    %p202 = por %p200, %p201
    %s203 = sadd.s32 %s20, %s21
    %s204 = sadd.s32 %s32, %s28
    %s205 = ssub.s32 %s203, %s204
    %p206 = scmp.eq.s32.totalorder %s205, 0
    %s208 = sadd.s32 %s207, 1
    %s209 = scalar_select %p206, %s207, %s208
    %p212 = pneg %p206
    %p213 = scmp.eq.s32.totalorder %s13, 1
    %p214 = por %p212, %p213
    %p215 = scmp.ne.s32.totalorder %s207, %s210
    %p216 = scmp.eq.s32.totalorder %s13, 0
    %p217 = por %p215, %p216
    %p218 = scmp.ne.s32.totalorder %s207, %s210
    %p219 = scmp.eq.s32.totalorder %s18, 1
    %p220 = por %p218, %p219
    %p221 = scmp.ne.s32.totalorder %s210, %s211
    %p222 = scmp.eq.s32.totalorder %s18, 0
    %p223 = por %p221, %p222
    %p224 = scmp.ne.s32.totalorder %s210, %s211
    %p225 = scmp.eq.s32.totalorder %s19, 1
    %p226 = por %p224, %p225
    %p228 = scmp.ne.s32.totalorder %s211, %s227
    %p229 = scmp.eq.s32.totalorder %s19, 0
    %p230 = por %p228, %p229
    %p231 = scmp.le.s32.totalorder 1, %s13
    %p232 = scmp.lt.s32.totalorder %s13, 3
    %p233 = pnand %p231, %p232
    %p234 = pneg %p233
    // Predicated region
    $region9: #{down_forward.4} parent=5 // pred_check
      _
    $region10: #{down_forward.4} parent=5 // pred_check_branch
      %236 = sbr.rel (%p233) target = $region12
    $region11: #{down_forward.4} parent=5 // pred_region
      %s237 = ssub.s32 %s13, 1
      // Predicated region
      $region13: #{down_forward.4} parent=11 // pred_check
        %p238 = pneg %p146
      $region14: #{down_forward.4} parent=11 // pred_check_branch
        %240 = sbr.rel (%p238) target = $region16
      $region15: #{down_forward.4} parent=11 // pred_region
        _
      $region16: #{down_forward.4} parent=11 // pred_fallthru
        _
      // Predicated region
      $region17: #{down_forward.4} parent=11 // pred_check
        %p241 = pneg %p167
      $region18: #{down_forward.4} parent=11 // pred_check_branch
        %243 = sbr.rel (%p241) target = $region20
      $region19: #{down_forward.4} parent=11 // pred_region
        _
      $region20: #{down_forward.4} parent=11 // pred_fallthru
        _
    $region12: #{down_forward.4} parent=5 // pred_fallthru
      _
    %p244 = scmp.lt.s32.totalorder %s13, 2
    // Predicated region
    $region21: #{down_forward.4} parent=5 // pred_check
      %p245 = pneg %p244
    $region22: #{down_forward.4} parent=5 // pred_check_branch
      %247 = sbr.rel (%p245) target = $region24
    $region23: #{down_forward.4} parent=5 // pred_region
      // Predicated region
      $region25: #{down_forward.4} parent=23 // pred_check
        %p248 = pneg %p47
      $region26: #{down_forward.4} parent=23 // pred_check_branch
        %250 = sbr.rel (%p248) target = $region28
      $region27: #{down_forward.4} parent=23 // pred_region
        %s251 = smul.u32 8, %s21
        %p252 = scmp.lt.s32.totalorder %s20, 1
        %s253 = scalar_select %p252, %s20, 1
        %p254 = scmp.lt.s32.totalorder %s251, 7
        %s255 = scalar_select %p254, %s251, 7
        %s256 = smul.addr %s253, 8
        %s257 = sadd.s32 %s255, %s256
        %s258 = smul.addr %s257, 4
        %s259 = scalar_lea.vmem %s0, %s258
        %s260 = smul.u32 8, %s21
      $region28: #{down_forward.4} parent=23 // pred_fallthru
        _
      // Predicated region
      $region29: #{down_forward.4} parent=23 // pred_check
        %p261 = pneg %p83
      $region30: #{down_forward.4} parent=23 // pred_check_branch
        %263 = sbr.rel (%p261) target = $region32
      $region31: #{down_forward.4} parent=23 // pred_region
        %s264 = smul.u32 %s21, 8
        %s265 = ssub.s32 %s264, 1
        %p266 = scmp.gt.s32.totalorder %s265, 0
        %s267 = scalar_select %p266, %s265, 0
        %p268 = scmp.lt.s32.totalorder %s20, 1
        %s269 = scalar_select %p268, %s20, 1
        %p270 = scmp.lt.s32.totalorder %s267, 7
        %s271 = scalar_select %p270, %s267, 7
        %s272 = smul.addr %s269, 8
        %s273 = sadd.s32 %s271, %s272
        %s274 = smul.addr %s273, 4
        %s275 = scalar_lea.vmem %s1, %s274
        %s276 = smul.u32 %s21, 8
        %s277 = ssub.s32 %s276, 1
        %p278 = scmp.gt.s32.totalorder %s277, 0
        %s279 = scalar_select %p278, %s277, 0
      $region32: #{down_forward.4} parent=23 // pred_fallthru
        _
      // Predicated region
      $region33: #{down_forward.4} parent=23 // pred_check
        %p280 = pneg %p119
      $region34: #{down_forward.4} parent=23 // pred_check_branch
        %282 = sbr.rel (%p280) target = $region36
      $region35: #{down_forward.4} parent=23 // pred_region
        %s283 = smul.u32 %s21, 8
        %s284 = sadd.s32 %s283, 8
        %p285 = scmp.lt.s32.totalorder %s284, 7
        %s286 = scalar_select %p285, %s284, 7
        %p287 = scmp.lt.s32.totalorder %s20, 1
        %s288 = scalar_select %p287, %s20, 1
        %p289 = scmp.lt.s32.totalorder %s286, 7
        %s290 = scalar_select %p289, %s286, 7
        %s291 = smul.addr %s288, 8
        %s292 = sadd.s32 %s290, %s291
        %s293 = smul.addr %s292, 4
        %s294 = scalar_lea.vmem %s2, %s293
        %s295 = smul.u32 %s21, 8
        %s296 = sadd.s32 %s295, 8
        %p297 = scmp.lt.s32.totalorder %s296, 7
        %s298 = scalar_select %p297, %s296, 7
      $region36: #{down_forward.4} parent=23 // pred_fallthru
        _
    $region24: #{down_forward.4} parent=5 // pred_fallthru
      _
    %p299 = scmp.le.s32.totalorder 1, %s13
    %p300 = scmp.lt.s32.totalorder %s13, 3
    %p301 = pnand %p299, %p300
    %p302 = pneg %p301
    // Predicated region
    $region37: #{down_forward.4} parent=5 // pred_check
      _
    $region38: #{down_forward.4} parent=5 // pred_check_branch
      %304 = sbr.rel (%p301) target = $region40
    $region39: #{down_forward.4} parent=5 // pred_region
      %s305 = ssub.s32 %s13, 1
      %s306 = smul.u32 8, %s23
      %p307 = scmp.lt.s32.totalorder %s22, 1
      %s308 = scalar_select %p307, %s22, 1
      %p309 = scmp.lt.s32.totalorder %s306, 7
      %s310 = scalar_select %p309, %s306, 7
      %s311 = smul.addr %s308, 8
      %s312 = sadd.s32 %s310, %s311
      %s313 = smul.addr %s312, 4
      %s314 = scalar_lea.vmem %s0, %s313
      %p315 = pneg %p53
      %p316 = pneg %p50
      %s317 = smul.u32 %s23, 8
      %s318 = ssub.s32 %s317, 1
      %p319 = scmp.gt.s32.totalorder %s318, 0
      %s320 = scalar_select %p319, %s318, 0
      %p321 = scmp.lt.s32.totalorder %s22, 1
      %s322 = scalar_select %p321, %s22, 1
      %p323 = scmp.lt.s32.totalorder %s320, 7
      %s324 = scalar_select %p323, %s320, 7
      %s325 = smul.addr %s322, 8
      %s326 = sadd.s32 %s324, %s325
      %s327 = smul.addr %s326, 4
      %s328 = scalar_lea.vmem %s1, %s327
      %p329 = pneg %p89
      %p330 = pneg %p86
      %s331 = smul.u32 %s23, 8
      %s332 = sadd.s32 %s331, 8
      %p333 = scmp.lt.s32.totalorder %s332, 7
      %s334 = scalar_select %p333, %s332, 7
      %p335 = scmp.lt.s32.totalorder %s22, 1
      %s336 = scalar_select %p335, %s22, 1
      %p337 = scmp.lt.s32.totalorder %s334, 7
      %s338 = scalar_select %p337, %s334, 7
      %s339 = smul.addr %s336, 8
      %s340 = sadd.s32 %s338, %s339
      %s341 = smul.addr %s340, 4
      %s342 = scalar_lea.vmem %s2, %s341
      %p343 = pneg %p125
      %p344 = pneg %p122
      %p345 = pneg %p146
      %p346 = pneg %p143
      %p347 = pneg %p167
      %p348 = pneg %p164
      %p349 = pneg %p195
      %p350 = pneg %p192
      %s351 = smul.u32 8, %s23
      %p352 = scmp.lt.s32.totalorder %s22, 1
      %s353 = scalar_select %p352, %s22, 1
      %p354 = scmp.lt.s32.totalorder %s351, 7
      %s355 = scalar_select %p354, %s351, 7
      %s356 = smul.addr %s353, 8
      %s357 = sadd.s32 %s355, %s356
      %s358 = smul.addr %s357, 4
      %s359 = scalar_lea.vmem %s5, %s358
      %p360 = pneg %p223
      %p361 = pneg %p220
      %s362 = sadd.s32 %s22, %s23
      %p363 = scmp.lt.s32.totalorder %s362, 1
      %s364 = scalar_select %p363, %s362, 1
      %s365 = smul.addr %s364, 2
      %s366 = scalar_lea.vmem %s6, %s365
      %s367 = smul.u32 8, %s23
      %p368 = scmp.lt.s32.totalorder %s22, 1
      %s369 = scalar_select %p368, %s22, 1
      %p370 = scmp.lt.s32.totalorder %s367, 7
      %s371 = scalar_select %p370, %s367, 7
      %s372 = smul.addr %s369, 8
      %s373 = sadd.s32 %s371, %s372
      %s374 = smul.addr %s373, 4
      %s375 = scalar_lea.vmem %s0, %s374
      %s376 = smul.u32 8, %s23
      %s377 = smul.u32 %s23, 8
      %s378 = ssub.s32 %s377, 1
      %p379 = scmp.gt.s32.totalorder %s378, 0
      %s380 = scalar_select %p379, %s378, 0
      %p381 = scmp.lt.s32.totalorder %s22, 1
      %s382 = scalar_select %p381, %s22, 1
      %p383 = scmp.lt.s32.totalorder %s380, 7
      %s384 = scalar_select %p383, %s380, 7
      %s385 = smul.addr %s382, 8
      %s386 = sadd.s32 %s384, %s385
      %s387 = smul.addr %s386, 4
      %s388 = scalar_lea.vmem %s1, %s387
      %s389 = smul.u32 %s23, 8
      %s390 = ssub.s32 %s389, 1
      %p391 = scmp.gt.s32.totalorder %s390, 0
      %s392 = scalar_select %p391, %s390, 0
      %s393 = smul.u32 %s23, 8
      %s394 = sadd.s32 %s393, 8
      %p395 = scmp.lt.s32.totalorder %s394, 7
      %s396 = scalar_select %p395, %s394, 7
      %p397 = scmp.lt.s32.totalorder %s22, 1
      %s398 = scalar_select %p397, %s22, 1
      %p399 = scmp.lt.s32.totalorder %s396, 7
      %s400 = scalar_select %p399, %s396, 7
      %s401 = smul.addr %s398, 8
      %s402 = sadd.s32 %s400, %s401
      %s403 = smul.addr %s402, 4
      %s404 = scalar_lea.vmem %s2, %s403
      %s405 = smul.u32 %s23, 8
      %s406 = sadd.s32 %s405, 8
      %p407 = scmp.lt.s32.totalorder %s406, 7
      %s408 = scalar_select %p407, %s406, 7
      %s409 = smul.u32 8, %s23
      %p410 = scmp.lt.s32.totalorder %s22, 1
      %s411 = scalar_select %p410, %s22, 1
      %p412 = scmp.lt.s32.totalorder %s409, 7
      %s413 = scalar_select %p412, %s409, 7
      %s414 = smul.addr %s411, 8
      %s415 = sadd.s32 %s413, %s414
      %s416 = smul.addr %s415, 4
      %s417 = scalar_lea.vmem %s5, %s416
      %s418 = smul.u32 8, %s23
      %s419 = sadd.s32 %s22, %s23
      %p420 = scmp.lt.s32.totalorder %s419, 1
      %s421 = scalar_select %p420, %s419, 1
      %s422 = smul.addr %s421, 2
      %s423 = scalar_lea.vmem %s6, %s422
      %s424 = sadd.s32 %s22, %s23
      %v426 = vld [vmem:[%s3] sm:$0x1]
      %v427 = vld [vmem:[%s3 + $0x1] sm:$0x1]
      %v428 = vld [vmem:[%s375] sm:$0xf]
      %v429 = vld [vmem:[%s375 + $0x4] sm:$0xf]
      %v430 = vld [vmem:[%s375 + $0x8] sm:$0xf]
      %v431 = vld [vmem:[%s375 + $0xc] sm:$0xf]
      %v432 = vld [vmem:[%s375 + $0x10] sm:$0xf]
      %v433 = vld [vmem:[%s375 + $0x14] sm:$0xf]
      %v434 = vld [vmem:[%s375 + $0x18] sm:$0xf]
      %v435 = vld [vmem:[%s375 + $0x1c] sm:$0xf]
      %v436 = vunpack.c.l.bf16 %v428
      %v437 = vunpack.c.l.bf16 %v429
      %v438 = vunpack.c.l.bf16 %v430
      %v439 = vunpack.c.l.bf16 %v431
      %v440 = vunpack.c.l.bf16 %v432
      %v441 = vunpack.c.l.bf16 %v433
      %v442 = vunpack.c.l.bf16 %v434
      %v443 = vunpack.c.l.bf16 %v435
      %v444 = vlaneseq
      %v445 = vshrl.u32 %v444, 7
      %v446 = vsub.s32 0, %v445
      %v447 = vrot.slane %v426, %v446
      %v448 = vmul.f32 %v436, %v447
      %v449 = vmul.f32 %v437, %v447
      %v450 = vmul.f32 %v438, %v447
      %v451 = vmul.f32 %v439, %v447
      %v452 = vmul.f32 %v440, %v447
      %v453 = vmul.f32 %v441, %v447
      %v454 = vmul.f32 %v442, %v447
      %v455 = vmul.f32 %v443, %v447
      %v456 = vlaneseq
      %v457 = vshrl.u32 %v456, 7
      %v458 = vsub.s32 0, %v457
      %v459 = vrot.slane %v427, %v458
      %v460 = vadd.f32 %v448, %v459
      %v461 = vadd.f32 %v449, %v459
      %v462 = vadd.f32 %v450, %v459
      %v463 = vadd.f32 %v451, %v459
      %v464 = vadd.f32 %v452, %v459
      %v465 = vadd.f32 %v453, %v459
      %v466 = vadd.f32 %v454, %v459
      %v467 = vadd.f32 %v455, %v459
      %v468 = vmax.f32 %v460, 0.0
      %v469 = vmax.f32 %v461, 0.0
      %v470 = vmax.f32 %v462, 0.0
      %v471 = vmax.f32 %v463, 0.0
      %v472 = vmax.f32 %v464, 0.0
      %v473 = vmax.f32 %v465, 0.0
      %v474 = vmax.f32 %v466, 0.0
      %v475 = vmax.f32 %v467, 0.0
      %v476 = vpack.c.bf16 %v468, %v468
      %v477 = vpack.c.bf16 %v469, %v469
      %v478 = vpack.c.bf16 %v470, %v470
      %v479 = vpack.c.bf16 %v471, %v471
      %v480 = vpack.c.bf16 %v472, %v472
      %v481 = vpack.c.bf16 %v473, %v473
      %v482 = vpack.c.bf16 %v474, %v474
      %v483 = vpack.c.bf16 %v475, %v475
      %v492 = vunpack.c.l.b16 %v476
      %v493 = vunpack.c.l.b16 %v477
      %v494 = vunpack.c.l.b16 %v478
      %v495 = vunpack.c.l.b16 %v479
      %v496 = vunpack.c.l.b16 %v480
      %v497 = vunpack.c.l.b16 %v481
      %v498 = vunpack.c.l.b16 %v482
      %v499 = vunpack.c.l.b16 %v483
      %v500 = vpack.c.b16 %v492, %v492
      %v501 = vpack.c.b16 %v493, %v493
      %v502 = vpack.c.b16 %v494, %v494
      %v503 = vpack.c.b16 %v495, %v495
      %v504 = vpack.c.b16 %v496, %v496
      %v505 = vpack.c.b16 %v497, %v497
      %v506 = vpack.c.b16 %v498, %v498
      %v507 = vpack.c.b16 %v499, %v499
      %v509 = vshrl.u32 %v500, 16
      %v511 = vrot.slane %v509, 7
      %v512 = vshll.u32 %v500, 16
      %v514 = vor.u32 %v511, %v512
      %v515 = vrot.slane %v511, 4
      %v517 = vshrl.u32 %v501, 16
      %v519 = vrot.slane %v517, 7
      %v520 = vshll.u32 %v501, 16
      %v522 = vor.u32 %v519, %v520
      %v523 = vrot.slane %v519, 4
      %v525 = vshrl.u32 %v502, 16
      %v527 = vrot.slane %v525, 7
      %v528 = vshll.u32 %v502, 16
      %v530 = vor.u32 %v527, %v528
      %v531 = vrot.slane %v527, 4
      %v533 = vshrl.u32 %v503, 16
      %v535 = vrot.slane %v533, 7
      %v536 = vshll.u32 %v503, 16
      %v538 = vor.u32 %v535, %v536
      %v539 = vrot.slane %v535, 4
      %v541 = vshrl.u32 %v504, 16
      %v543 = vrot.slane %v541, 7
      %v544 = vshll.u32 %v504, 16
      %v546 = vor.u32 %v543, %v544
      %v547 = vrot.slane %v543, 4
      %v549 = vshrl.u32 %v505, 16
      %v551 = vrot.slane %v549, 7
      %v552 = vshll.u32 %v505, 16
      %v554 = vor.u32 %v551, %v552
      %v555 = vrot.slane %v551, 4
      %v557 = vshrl.u32 %v506, 16
      %v559 = vrot.slane %v557, 7
      %v560 = vshll.u32 %v506, 16
      %v562 = vor.u32 %v559, %v560
      %v563 = vrot.slane %v559, 4
      %v565 = vshrl.u32 %v507, 16
      %v567 = vrot.slane %v565, 7
      %v568 = vshll.u32 %v507, 16
      %v570 = vor.u32 %v567, %v568
      %v571 = vrot.slane %v567, 4
      %s588 = scalar_lea.vmem [#allocation2], 8
      %vm589 = vcmask 1043456
      %vm590 = vsmask.f32 7938
      %vm591 = vmand %vm589, %vm590
      %v592 = vld [vmem:[%s588] sm:$0xf]
      %v593 = vsel %vm591, %v514, %v592
      %594 = vst [vmem:[%s588] sm:$0xf] %v593
      %vm595 = vcmask 1040384
      %vm596 = vsmask.f32 256
      %vm597 = vmand %vm595, %vm596
      %v598 = vld [vmem:[%s588 + $0x4] sm:$0x1]
      %v599 = vsel %vm597, %v515, %v598
      %600 = vst [vmem:[%s588 + $0x4] sm:$0x1] %v599
      %v601 = vld [vmem:[%s588 + $0x8] sm:$0xf]
      %v602 = vsel %vm591, %v522, %v601
      %603 = vst [vmem:[%s588 + $0x8] sm:$0xf] %v602
      %v604 = vld [vmem:[%s588 + $0xc] sm:$0x1]
      %v605 = vsel %vm597, %v523, %v604
      %606 = vst [vmem:[%s588 + $0xc] sm:$0x1] %v605
      %v607 = vld [vmem:[%s588 + $0x10] sm:$0xf]
      %v608 = vsel %vm591, %v530, %v607
      %609 = vst [vmem:[%s588 + $0x10] sm:$0xf] %v608
      %v610 = vld [vmem:[%s588 + $0x14] sm:$0x1]
      %v611 = vsel %vm597, %v531, %v610
      %612 = vst [vmem:[%s588 + $0x14] sm:$0x1] %v611
      %v613 = vld [vmem:[%s588 + $0x18] sm:$0xf]
      %v614 = vsel %vm591, %v538, %v613
      %615 = vst [vmem:[%s588 + $0x18] sm:$0xf] %v614
      %v616 = vld [vmem:[%s588 + $0x1c] sm:$0x1]
      %v617 = vsel %vm597, %v539, %v616
      %618 = vst [vmem:[%s588 + $0x1c] sm:$0x1] %v617
      %v619 = vld [vmem:[%s588 + $0x20] sm:$0xf]
      %v620 = vsel %vm591, %v546, %v619
      %621 = vst [vmem:[%s588 + $0x20] sm:$0xf] %v620
      %v622 = vld [vmem:[%s588 + $0x24] sm:$0x1]
      %v623 = vsel %vm597, %v547, %v622
      %624 = vst [vmem:[%s588 + $0x24] sm:$0x1] %v623
      %v625 = vld [vmem:[%s588 + $0x28] sm:$0xf]
      %v626 = vsel %vm591, %v554, %v625
      %627 = vst [vmem:[%s588 + $0x28] sm:$0xf] %v626
      %v628 = vld [vmem:[%s588 + $0x2c] sm:$0x1]
      %v629 = vsel %vm597, %v555, %v628
      %630 = vst [vmem:[%s588 + $0x2c] sm:$0x1] %v629
      %v631 = vld [vmem:[%s588 + $0x30] sm:$0xf]
      %v632 = vsel %vm591, %v562, %v631
      %633 = vst [vmem:[%s588 + $0x30] sm:$0xf] %v632
      %v634 = vld [vmem:[%s588 + $0x34] sm:$0x1]
      %v635 = vsel %vm597, %v563, %v634
      %636 = vst [vmem:[%s588 + $0x34] sm:$0x1] %v635
      %v637 = vld [vmem:[%s588 + $0x38] sm:$0xf]
      %v638 = vsel %vm591, %v570, %v637
      %639 = vst [vmem:[%s588 + $0x38] sm:$0xf] %v638
      %v640 = vld [vmem:[%s588 + $0x3c] sm:$0x1]
      %v641 = vsel %vm597, %v571, %v640
      %642 = vst [vmem:[%s588 + $0x3c] sm:$0x1] %v641
      %v643 = vld [vmem:[#allocation2] sm:$0xf]
      %v644 = vsel %vm591, 0, %v643
      %645 = vst [vmem:[#allocation2] sm:$0xf] %v644
      %v646 = vld [vmem:[#allocation2 + $0x4] sm:$0x1]
      %v647 = vsel %vm597, 0, %v646
      %648 = vst [vmem:[#allocation2 + $0x4] sm:$0x1] %v647
      %s649 = scalar_lea.vmem [#allocation2], 72
      %v650 = vld [vmem:[%s649] sm:$0xf]
      %v651 = vsel %vm591, 0, %v650
      %652 = vst [vmem:[%s649] sm:$0xf] %v651
      %v653 = vld [vmem:[%s649 + $0x4] sm:$0x1]
      %v654 = vsel %vm597, 0, %v653
      %655 = vst [vmem:[%s649 + $0x4] sm:$0x1] %v654
      %p656 = scmp.gt.s32.totalorder %s23, 0
      // Predicated region
      $region41: #{down_forward.4} parent=39 // pred_check
        %p657 = pneg %p656
      $region42: #{down_forward.4} parent=39 // pred_check_branch
        %659 = sbr.rel (%p657) target = $region44
      $region43: #{down_forward.4} parent=39 // pred_region
        %v660 = vld [vmem:[%s388] sm:$0xf]
        %v661 = vunpack.c.l.bf16 %v660
        %v662 = vmul.f32 %v661, %v447
        %v663 = vadd.f32 %v662, %v459
        %v664 = vmax.f32 %v663, 0.0
        %v665 = vpack.c.bf16 %v664, %v664
        %v667 = vunpack.c.l.b16 %v665
        %v668 = vpack.c.b16 %v667, %v667
        %v670 = vshrl.u32 %v668, 16
        %v672 = vrot.slane %v670, 7
        %v673 = vshll.u32 %v668, 16
        %v675 = vor.u32 %v672, %v673
        %v676 = vrot.slane %v672, 4
        %v679 = vld [vmem:[#allocation2] sm:$0xf]
        %v680 = vsel %vm591, %v675, %v679
        %681 = vst [vmem:[#allocation2] sm:$0xf] %v680
        %v682 = vld [vmem:[#allocation2 + $0x4] sm:$0x1]
        %v683 = vsel %vm597, %v676, %v682
        %684 = vst [vmem:[#allocation2 + $0x4] sm:$0x1] %v683
      $region44: #{down_forward.4} parent=39 // pred_fallthru
        _
      %p685 = scmp.lt.s32.totalorder %s23, 0
      // Predicated region
      $region45: #{down_forward.4} parent=39 // pred_check
        %p686 = pneg %p685
      $region46: #{down_forward.4} parent=39 // pred_check_branch
        %688 = sbr.rel (%p686) target = $region48
      $region47: #{down_forward.4} parent=39 // pred_region
        %v689 = vld [vmem:[%s404] sm:$0xf]
        %v690 = vunpack.c.l.bf16 %v689
        %v691 = vmul.f32 %v690, %v447
        %v692 = vadd.f32 %v691, %v459
        %v693 = vmax.f32 %v692, 0.0
        %v694 = vpack.c.bf16 %v693, %v693
        %v696 = vunpack.c.l.b16 %v694
        %v697 = vpack.c.b16 %v696, %v696
        %v699 = vshrl.u32 %v697, 16
        %v701 = vrot.slane %v699, 7
        %v702 = vshll.u32 %v697, 16
        %v704 = vor.u32 %v701, %v702
        %v705 = vrot.slane %v701, 4
        %v708 = vld [vmem:[%s649] sm:$0xf]
        %v709 = vsel %vm591, %v704, %v708
        %710 = vst [vmem:[%s649] sm:$0xf] %v709
        %v711 = vld [vmem:[%s649 + $0x4] sm:$0x1]
        %v712 = vsel %vm597, %v705, %v711
        %713 = vst [vmem:[%s649 + $0x4] sm:$0x1] %v712
      $region48: #{down_forward.4} parent=39 // pred_fallthru
        _
      %v714 = vld [vmem:[#allocation2] sm:$0x1]
      %v715 = vsel %vm597, 0, %v714
      %716 = vst [vmem:[#allocation2] sm:$0x1] %v715
      %v717 = vld [vmem:[#allocation2 + $0x8] sm:$0x1]
      %v718 = vsel %vm597, 0, %v717
      %719 = vst [vmem:[#allocation2 + $0x8] sm:$0x1] %v718
      %v720 = vld [vmem:[#allocation2 + $0x10] sm:$0x1]
      %v721 = vsel %vm597, 0, %v720
      %722 = vst [vmem:[#allocation2 + $0x10] sm:$0x1] %v721
      %v723 = vld [vmem:[#allocation2 + $0x18] sm:$0x1]
      %v724 = vsel %vm597, 0, %v723
      %725 = vst [vmem:[#allocation2 + $0x18] sm:$0x1] %v724
      %v726 = vld [vmem:[#allocation2 + $0x20] sm:$0x1]
      %v727 = vsel %vm597, 0, %v726
      %728 = vst [vmem:[#allocation2 + $0x20] sm:$0x1] %v727
      %v729 = vld [vmem:[#allocation2 + $0x28] sm:$0x1]
      %v730 = vsel %vm597, 0, %v729
      %731 = vst [vmem:[#allocation2 + $0x28] sm:$0x1] %v730
      %v732 = vld [vmem:[#allocation2 + $0x30] sm:$0x1]
      %v733 = vsel %vm597, 0, %v732
      %734 = vst [vmem:[#allocation2 + $0x30] sm:$0x1] %v733
      %v735 = vld [vmem:[#allocation2 + $0x38] sm:$0x1]
      %v736 = vsel %vm597, 0, %v735
      %737 = vst [vmem:[#allocation2 + $0x38] sm:$0x1] %v736
      %v738 = vld [vmem:[#allocation2 + $0x40] sm:$0x1]
      %v739 = vsel %vm597, 0, %v738
      %740 = vst [vmem:[#allocation2 + $0x40] sm:$0x1] %v739
      %v741 = vld [vmem:[#allocation2 + $0x48] sm:$0x1]
      %v742 = vsel %vm597, 0, %v741
      %743 = vst [vmem:[#allocation2 + $0x48] sm:$0x1] %v742
      %vm744 = vmand %vm595, %vm590
      %v745 = vld [vmem:[#allocation2 + $0x4] sm:$0x1]
      %v746 = vsel %vm744, 0, %v745
      %747 = vst [vmem:[#allocation2 + $0x4] sm:$0x1] %v746
      %v748 = vld [vmem:[#allocation2 + $0xc] sm:$0x1]
      %v749 = vsel %vm744, 0, %v748
      %750 = vst [vmem:[#allocation2 + $0xc] sm:$0x1] %v749
      %v751 = vld [vmem:[#allocation2 + $0x14] sm:$0x1]
      %v752 = vsel %vm744, 0, %v751
      %753 = vst [vmem:[#allocation2 + $0x14] sm:$0x1] %v752
      %v754 = vld [vmem:[#allocation2 + $0x1c] sm:$0x1]
      %v755 = vsel %vm744, 0, %v754
      %756 = vst [vmem:[#allocation2 + $0x1c] sm:$0x1] %v755
      %v757 = vld [vmem:[#allocation2 + $0x24] sm:$0x1]
      %v758 = vsel %vm744, 0, %v757
      %759 = vst [vmem:[#allocation2 + $0x24] sm:$0x1] %v758
      %v760 = vld [vmem:[#allocation2 + $0x2c] sm:$0x1]
      %v761 = vsel %vm744, 0, %v760
      %762 = vst [vmem:[#allocation2 + $0x2c] sm:$0x1] %v761
      %v763 = vld [vmem:[#allocation2 + $0x34] sm:$0x1]
      %v764 = vsel %vm744, 0, %v763
      %765 = vst [vmem:[#allocation2 + $0x34] sm:$0x1] %v764
      %v766 = vld [vmem:[#allocation2 + $0x3c] sm:$0x1]
      %v767 = vsel %vm744, 0, %v766
      %768 = vst [vmem:[#allocation2 + $0x3c] sm:$0x1] %v767
      %v769 = vld [vmem:[#allocation2 + $0x44] sm:$0x1]
      %v770 = vsel %vm744, 0, %v769
      %771 = vst [vmem:[#allocation2 + $0x44] sm:$0x1] %v770
      %v772 = vld [vmem:[#allocation2 + $0x4c] sm:$0x1]
      %v773 = vsel %vm744, 0, %v772
      %774 = vst [vmem:[#allocation2 + $0x4c] sm:$0x1] %v773
      %v775 = vld [vmem:[#allocation2] sm:$0xf]
      %v776 = vld [vmem:[#allocation2 + $0x8] sm:$0xf]
      %v777 = vld [vmem:[#allocation2 + $0x10] sm:$0xf]
      %v778 = vld [vmem:[#allocation2 + $0x18] sm:$0xf]
      %v779 = vld [vmem:[#allocation2 + $0x20] sm:$0xf]
      %v780 = vld [vmem:[#allocation2 + $0x28] sm:$0xf]
      %v781 = vld [vmem:[#allocation2 + $0x30] sm:$0xf]
      %v782 = vld [vmem:[#allocation2 + $0x38] sm:$0xf]
      %v783 = vld [vmem:[%s4] sm:$0xf]
      %v784 = vld [vmem:[%s4 + $0x4] sm:$0xf]
      %v785 = vld [vmem:[%s4 + $0x8] sm:$0xf]
      %v786 = vld [vmem:[%s4 + $0xc] sm:$0xf]
      %v787 = vld [vmem:[%s4 + $0x10] sm:$0xf]
      %v788 = vld [vmem:[%s4 + $0x14] sm:$0xf]
      %v789 = vld [vmem:[%s4 + $0x18] sm:$0xf]
      %v790 = vld [vmem:[%s4 + $0x1c] sm:$0xf]
      %v791 = vld [vmem:[%s4 + $0x20] sm:$0xf]
      %v792 = vld [vmem:[%s4 + $0x24] sm:$0xf]
      %v793 = vld [vmem:[%s4 + $0x28] sm:$0xf]
      %v794 = vld [vmem:[%s4 + $0x2c] sm:$0xf]
      %v795 = vld [vmem:[%s4 + $0x30] sm:$0xf]
      %v796 = vld [vmem:[%s4 + $0x34] sm:$0xf]
      %v797 = vld [vmem:[%s4 + $0x38] sm:$0xf]
      %v798 = vld [vmem:[%s4 + $0x3c] sm:$0xf]
      %v799 = vld [vmem:[#allocation2 + $0x4] sm:$0x1]
      %v800 = vld [vmem:[#allocation2 + $0xc] sm:$0x1]
      %v801 = vld [vmem:[#allocation2 + $0x14] sm:$0x1]
      %v802 = vld [vmem:[#allocation2 + $0x1c] sm:$0x1]
      %v803 = vld [vmem:[#allocation2 + $0x24] sm:$0x1]
      %v804 = vld [vmem:[#allocation2 + $0x2c] sm:$0x1]
      %v805 = vld [vmem:[#allocation2 + $0x34] sm:$0x1]
      %v806 = vld [vmem:[#allocation2 + $0x3c] sm:$0x1]
      %vm807 = vsmask.f32 3328
      %vm808 = vsmask.f32 7440
      %vm809 = vmor %vm807, %vm808
      %v811 = vshrl.u32 %v775, 16
      %v813 = vrot.slane %v811, 4
      %v814 = vshll.u32 %v775, 16
      %v816 = vrot.slane %v814, 5
      %v817 = vor.u32 %v813, %v816
      %v818 = vrot.slane %v817, 4
      %v820 = vshll.u32 %v799, 16
      %v822 = vrot.slane %v820, 5
      %v823 = vsel %vm809, %v818, %v822
      %v825 = vshrl.u32 %v776, 16
      %v827 = vrot.slane %v825, 4
      %v828 = vshll.u32 %v776, 16
      %v830 = vrot.slane %v828, 5
      %v831 = vor.u32 %v827, %v830
      %v832 = vrot.slane %v831, 4
      %v834 = vshll.u32 %v800, 16
      %v836 = vrot.slane %v834, 5
      %v837 = vsel %vm809, %v832, %v836
      %v839 = vshrl.u32 %v777, 16
      %v841 = vrot.slane %v839, 4
      %v842 = vshll.u32 %v777, 16
      %v844 = vrot.slane %v842, 5
      %v845 = vor.u32 %v841, %v844
      %v846 = vrot.slane %v845, 4
      %v848 = vshll.u32 %v801, 16
      %v850 = vrot.slane %v848, 5
      %v851 = vsel %vm809, %v846, %v850
      %v853 = vshrl.u32 %v778, 16
      %v855 = vrot.slane %v853, 4
      %v856 = vshll.u32 %v778, 16
      %v858 = vrot.slane %v856, 5
      %v859 = vor.u32 %v855, %v858
      %v860 = vrot.slane %v859, 4
      %v862 = vshll.u32 %v802, 16
      %v864 = vrot.slane %v862, 5
      %v865 = vsel %vm809, %v860, %v864
      %v867 = vshrl.u32 %v779, 16
      %v869 = vrot.slane %v867, 4
      %v870 = vshll.u32 %v779, 16
      %v872 = vrot.slane %v870, 5
      %v873 = vor.u32 %v869, %v872
      %v874 = vrot.slane %v873, 4
      %v876 = vshll.u32 %v803, 16
      %v878 = vrot.slane %v876, 5
      %v879 = vsel %vm809, %v874, %v878
      %v881 = vshrl.u32 %v780, 16
      %v883 = vrot.slane %v881, 4
      %v884 = vshll.u32 %v780, 16
      %v886 = vrot.slane %v884, 5
      %v887 = vor.u32 %v883, %v886
      %v888 = vrot.slane %v887, 4
      %v890 = vshll.u32 %v804, 16
      %v892 = vrot.slane %v890, 5
      %v893 = vsel %vm809, %v888, %v892
      %v895 = vshrl.u32 %v781, 16
      %v897 = vrot.slane %v895, 4
      %v898 = vshll.u32 %v781, 16
      %v900 = vrot.slane %v898, 5
      %v901 = vor.u32 %v897, %v900
      %v902 = vrot.slane %v901, 4
      %v904 = vshll.u32 %v805, 16
      %v906 = vrot.slane %v904, 5
      %v907 = vsel %vm809, %v902, %v906
      %v909 = vshrl.u32 %v782, 16
      %v911 = vrot.slane %v909, 4
      %v912 = vshll.u32 %v782, 16
      %v914 = vrot.slane %v912, 5
      %v915 = vor.u32 %v911, %v914
      %v916 = vrot.slane %v915, 4
      %v918 = vshll.u32 %v806, 16
      %v920 = vrot.slane %v918, 5
      %v921 = vsel %vm809, %v916, %v920
      %v922 = vld [vmem:[%s4 + $0x40] sm:$0xf]
      %v923 = vld [vmem:[%s4 + $0x44] sm:$0xf]
      %v924 = vld [vmem:[%s4 + $0x48] sm:$0xf]
      %v925 = vld [vmem:[%s4 + $0x4c] sm:$0xf]
      %v926 = vld [vmem:[%s4 + $0x50] sm:$0xf]
      %v927 = vld [vmem:[%s4 + $0x54] sm:$0xf]
      %v928 = vld [vmem:[%s4 + $0x58] sm:$0xf]
      %v929 = vld [vmem:[%s4 + $0x5c] sm:$0xf]
      %v930 = vld [vmem:[%s4 + $0x60] sm:$0xf]
      %v931 = vld [vmem:[%s4 + $0x64] sm:$0xf]
      %v932 = vld [vmem:[%s4 + $0x68] sm:$0xf]
      %v933 = vld [vmem:[%s4 + $0x6c] sm:$0xf]
      %v934 = vld [vmem:[%s4 + $0x70] sm:$0xf]
      %v935 = vld [vmem:[%s4 + $0x74] sm:$0xf]
      %v936 = vld [vmem:[%s4 + $0x78] sm:$0xf]
      %v937 = vld [vmem:[%s4 + $0x7c] sm:$0xf]
      %v938 = vunpack.c.l.b16 %v823
      %v939 = vunpack.c.l.b16 %v837
      %v940 = vunpack.c.l.b16 %v851
      %v941 = vunpack.c.l.b16 %v865
      %v942 = vunpack.c.l.b16 %v879
      %v943 = vunpack.c.l.b16 %v893
      %v944 = vunpack.c.l.b16 %v907
      %v945 = vunpack.c.l.b16 %v921
      %v946 = vpack.c.b16 %v939, %v938
      %v947 = vpack.c.b16 %v941, %v940
      %v948 = vpack.c.b16 %v943, %v942
      %v949 = vpack.c.b16 %v945, %v944
      %v970 = vunpack.c.l.b16 %v922
      %v971 = vunpack.c.l.b16 %v923
      %v972 = vunpack.c.l.b16 %v924
      %v973 = vunpack.c.l.b16 %v925
      %v974 = vunpack.c.l.b16 %v926
      %v975 = vunpack.c.l.b16 %v927
      %v976 = vunpack.c.l.b16 %v928
      %v977 = vunpack.c.l.b16 %v929
      %v978 = vunpack.c.l.b16 %v930
      %v979 = vunpack.c.l.b16 %v931
      %v980 = vunpack.c.l.b16 %v932
      %v981 = vunpack.c.l.b16 %v933
      %v982 = vunpack.c.l.b16 %v934
      %v983 = vunpack.c.l.b16 %v935
      %v984 = vunpack.c.l.b16 %v936
      %v985 = vunpack.c.l.b16 %v937
      %v986 = vpack.c.b16 %v971, %v970
      %v987 = vpack.c.b16 %v973, %v972
      %v988 = vpack.c.b16 %v975, %v974
      %v989 = vpack.c.b16 %v977, %v976
      %v990 = vpack.c.b16 %v979, %v978
      %v991 = vpack.c.b16 %v981, %v980
      %v992 = vpack.c.b16 %v983, %v982
      %v993 = vpack.c.b16 %v985, %v984
      %1002 = vmatprep.subr.bf16.mxu0 0
      %1003 = vmatpush1.bf16.msra.mxu0 %v986
      %1004 = vmatprep.subr.bf16.mxu0 0
      %1005 = vmatpush1.bf16.msra.mxu0 %v987
      %1006 = vmatprep.subr.bf16.mxu0 0
      %1007 = vmatpush1.bf16.msra.mxu0 %v988
      %1008 = vmatprep.subr.bf16.mxu0 0
      %1009 = vmatpush1.bf16.msra.mxu0 %v989
      %1010 = vmatprep.subr.bf16.mxu0 0
      %1011 = vmatpush1.bf16.msra.mxu0 %v990
      %1012 = vmatprep.subr.bf16.mxu0 0
      %1013 = vmatpush1.bf16.msra.mxu0 %v991
      %1014 = vmatprep.subr.bf16.mxu0 0
      %1015 = vmatpush1.bf16.msra.mxu0 %v992
      %1016 = vmatprep.subr.bf16.mxu0 0
      %1017 = vmatpush1.bf16.msra.mxu0 %v993
      %1018 = vmatprep.subr.bf16.mxu0 0
      %1019 = vmatpush1.bf16.msra.mxu0 0
      %1020 = vmatprep.subr.bf16.mxu0 0
      %1021 = vmatpush1.bf16.msra.mxu0 0
      %1022 = vmatprep.subr.bf16.mxu0 0
      %1023 = vmatpush1.bf16.msra.mxu0 0
      %1024 = vmatprep.subr.bf16.mxu0 0
      %1025 = vmatpush1.bf16.msra.mxu0 0
      %1026 = vmatprep.subr.bf16.mxu0 0
      %1027 = vmatpush1.bf16.msra.mxu0 0
      %1028 = vmatprep.subr.bf16.mxu0 0
      %1029 = vmatpush1.bf16.msra.mxu0 0
      %1030 = vmatprep.subr.bf16.mxu0 0
      %1031 = vmatpush1.bf16.msra.mxu0 0
      %1032 = vmatprep.subr.bf16.mxu0 0
      %1033 = vmatpush1.bf16.msra.mxu0 0
      %1034 = vmatprep.mubr.bf16.mxu0 0
      %1035 = vmatmul.mubr.bf16.gmra.mrb[0].mxu0 %v946
      %v1036 = vpop.f32.mrb[0].mxu0
      %v1037 = vadd.f32 0.0, %v1036
      %v1038 = vpop.f32.mrb[0].mxu0
      %v1039 = vpop.f32.mrb[0].mxu0
      %v1040 = vadd.f32 0.0, %v1039
      %v1041 = vpop.f32.mrb[0].mxu0
      %1042 = vmatprep.mubr.bf16.mxu0 0
      %1043 = vmatmul.mubr.bf16.gmra.mrb[0].mxu0 %v947
      %v1044 = vpop.f32.mrb[0].mxu0
      %v1045 = vadd.f32 0.0, %v1044
      %v1046 = vpop.f32.mrb[0].mxu0
      %v1047 = vpop.f32.mrb[0].mxu0
      %v1048 = vadd.f32 0.0, %v1047
      %v1049 = vpop.f32.mrb[0].mxu0
      %1050 = vmatprep.mubr.bf16.mxu0 0
      %1051 = vmatmul.mubr.bf16.gmra.mrb[0].mxu0 %v948
      %v1052 = vpop.f32.mrb[0].mxu0
      %v1053 = vadd.f32 0.0, %v1052
      %v1054 = vpop.f32.mrb[0].mxu0
      %v1055 = vpop.f32.mrb[0].mxu0
      %v1056 = vadd.f32 0.0, %v1055
      %v1057 = vpop.f32.mrb[0].mxu0
      %1058 = vmatprep.mubr.bf16.mxu0 0
      %1059 = vmatmul.mubr.bf16.gmra.mrb[0].mxu0 %v949
      %v1060 = vpop.f32.mrb[0].mxu0
      %v1061 = vadd.f32 0.0, %v1060
      %v1062 = vpop.f32.mrb[0].mxu0
      %v1063 = vpop.f32.mrb[0].mxu0
      %v1064 = vadd.f32 0.0, %v1063
      %v1065 = vpop.f32.mrb[0].mxu0
      %1066 = vdwg.mxu0
      %v1075 = vunpack.c.l.b16 %v775
      %v1076 = vunpack.c.l.b16 %v776
      %v1077 = vunpack.c.l.b16 %v777
      %v1078 = vunpack.c.l.b16 %v778
      %v1079 = vunpack.c.l.b16 %v779
      %v1080 = vunpack.c.l.b16 %v780
      %v1081 = vunpack.c.l.b16 %v781
      %v1082 = vunpack.c.l.b16 %v782
      %v1083 = vpack.c.b16 %v1076, %v1075
      %v1084 = vpack.c.b16 %v1078, %v1077
      %v1085 = vpack.c.b16 %v1080, %v1079
      %v1086 = vpack.c.b16 %v1082, %v1081
      %v1107 = vunpack.c.l.b16 %v783
      %v1108 = vunpack.c.l.b16 %v784
      %v1109 = vunpack.c.l.b16 %v785
      %v1110 = vunpack.c.l.b16 %v786
      %v1111 = vunpack.c.l.b16 %v787
      %v1112 = vunpack.c.l.b16 %v788
      %v1113 = vunpack.c.l.b16 %v789
      %v1114 = vunpack.c.l.b16 %v790
      %v1115 = vunpack.c.l.b16 %v791
      %v1116 = vunpack.c.l.b16 %v792
      %v1117 = vunpack.c.l.b16 %v793
      %v1118 = vunpack.c.l.b16 %v794
      %v1119 = vunpack.c.l.b16 %v795
      %v1120 = vunpack.c.l.b16 %v796
      %v1121 = vunpack.c.l.b16 %v797
      %v1122 = vunpack.c.l.b16 %v798
      %v1123 = vpack.c.b16 %v1108, %v1107
      %v1124 = vpack.c.b16 %v1110, %v1109
      %v1125 = vpack.c.b16 %v1112, %v1111
      %v1126 = vpack.c.b16 %v1114, %v1113
      %v1127 = vpack.c.b16 %v1116, %v1115
      %v1128 = vpack.c.b16 %v1118, %v1117
      %v1129 = vpack.c.b16 %v1120, %v1119
      %v1130 = vpack.c.b16 %v1122, %v1121
      %1139 = vmatprep.subr.bf16.mxu0 0
      %1140 = vmatpush1.bf16.msra.mxu0 %v1123
      %1141 = vmatprep.subr.bf16.mxu0 0
      %1142 = vmatpush1.bf16.msra.mxu0 %v1124
      %1143 = vmatprep.subr.bf16.mxu0 0
      %1144 = vmatpush1.bf16.msra.mxu0 %v1125
      %1145 = vmatprep.subr.bf16.mxu0 0
      %1146 = vmatpush1.bf16.msra.mxu0 %v1126
      %1147 = vmatprep.subr.bf16.mxu0 0
      %1148 = vmatpush1.bf16.msra.mxu0 %v1127
      %1149 = vmatprep.subr.bf16.mxu0 0
      %1150 = vmatpush1.bf16.msra.mxu0 %v1128
      %1151 = vmatprep.subr.bf16.mxu0 0
      %1152 = vmatpush1.bf16.msra.mxu0 %v1129
      %1153 = vmatprep.subr.bf16.mxu0 0
      %1154 = vmatpush1.bf16.msra.mxu0 %v1130
      %1155 = vmatprep.subr.bf16.mxu0 0
      %1156 = vmatpush1.bf16.msra.mxu0 0
      %1157 = vmatprep.subr.bf16.mxu0 0
      %1158 = vmatpush1.bf16.msra.mxu0 0
      %1159 = vmatprep.subr.bf16.mxu0 0
      %1160 = vmatpush1.bf16.msra.mxu0 0
      %1161 = vmatprep.subr.bf16.mxu0 0
      %1162 = vmatpush1.bf16.msra.mxu0 0
      %1163 = vmatprep.subr.bf16.mxu0 0
      %1164 = vmatpush1.bf16.msra.mxu0 0
      %1165 = vmatprep.subr.bf16.mxu0 0
      %1166 = vmatpush1.bf16.msra.mxu0 0
      %1167 = vmatprep.subr.bf16.mxu0 0
      %1168 = vmatpush1.bf16.msra.mxu0 0
      %1169 = vmatprep.subr.bf16.mxu0 0
      %1170 = vmatpush1.bf16.msra.mxu0 0
      %1171 = vmatprep.mubr.bf16.mxu0 0
      %1172 = vmatmul.mubr.bf16.gmra.mrb[0].mxu0 %v1083
      %v1173 = vpop.f32.mrb[0].mxu0
      %v1174 = vadd.f32 %v1037, %v1173
      %v1175 = vpop.f32.mrb[0].mxu0
      %v1176 = vpop.f32.mrb[0].mxu0
      %v1177 = vadd.f32 %v1040, %v1176
      %v1178 = vpop.f32.mrb[0].mxu0
      %1179 = vmatprep.mubr.bf16.mxu0 0
      %1180 = vmatmul.mubr.bf16.gmra.mrb[0].mxu0 %v1084
      %v1181 = vpop.f32.mrb[0].mxu0
      %v1182 = vadd.f32 %v1045, %v1181
      %v1183 = vpop.f32.mrb[0].mxu0
      %v1184 = vpop.f32.mrb[0].mxu0
      %v1185 = vadd.f32 %v1048, %v1184
      %v1186 = vpop.f32.mrb[0].mxu0
      %1187 = vmatprep.mubr.bf16.mxu0 0
      %1188 = vmatmul.mubr.bf16.gmra.mrb[0].mxu0 %v1085
      %v1189 = vpop.f32.mrb[0].mxu0
      %v1190 = vadd.f32 %v1053, %v1189
      %v1191 = vpop.f32.mrb[0].mxu0
      %v1192 = vpop.f32.mrb[0].mxu0
      %v1193 = vadd.f32 %v1056, %v1192
      %v1194 = vpop.f32.mrb[0].mxu0
      %1195 = vmatprep.mubr.bf16.mxu0 0
      %1196 = vmatmul.mubr.bf16.gmra.mrb[0].mxu0 %v1086
      %v1197 = vpop.f32.mrb[0].mxu0
      %v1198 = vadd.f32 %v1061, %v1197
      %v1199 = vpop.f32.mrb[0].mxu0
      %v1200 = vpop.f32.mrb[0].mxu0
      %v1201 = vadd.f32 %v1064, %v1200
      %v1202 = vpop.f32.mrb[0].mxu0
      %1203 = vdwg.mxu0
      %v1204 = vld [vmem:[#allocation2] sm:$0xe]
      %v1205 = vld [vmem:[#allocation2 + $0x8] sm:$0xe]
      %v1206 = vld [vmem:[#allocation2 + $0x10] sm:$0xe]
      %v1207 = vld [vmem:[#allocation2 + $0x18] sm:$0xe]
      %v1208 = vld [vmem:[#allocation2 + $0x20] sm:$0xe]
      %v1209 = vld [vmem:[#allocation2 + $0x28] sm:$0xe]
      %v1210 = vld [vmem:[#allocation2 + $0x30] sm:$0xe]
      %v1211 = vld [vmem:[#allocation2 + $0x38] sm:$0xe]
      %vm1228 = vcmask 1042432
      %vm1229 = vcmask 1046532
      %vm1230 = vmor %vm1228, %vm1229
      %v1231 = vrot.slane %v1204, 5
      %v1232 = vrot.slane %v1231, 4
      %v1233 = vrot.slane %v799, 5
      %v1234 = vsel %vm1230, %v1232, %v1233
      %v1235 = vrot.slane %v1205, 5
      %v1236 = vrot.slane %v1235, 4
      %v1237 = vrot.slane %v800, 5
      %v1238 = vsel %vm1230, %v1236, %v1237
      %v1239 = vrot.slane %v1206, 5
      %v1240 = vrot.slane %v1239, 4
      %v1241 = vrot.slane %v801, 5
      %v1242 = vsel %vm1230, %v1240, %v1241
      %v1243 = vrot.slane %v1207, 5
      %v1244 = vrot.slane %v1243, 4
      %v1245 = vrot.slane %v802, 5
      %v1246 = vsel %vm1230, %v1244, %v1245
      %v1247 = vrot.slane %v1208, 5
      %v1248 = vrot.slane %v1247, 4
      %v1249 = vrot.slane %v803, 5
      %v1250 = vsel %vm1230, %v1248, %v1249
      %v1251 = vrot.slane %v1209, 5
      %v1252 = vrot.slane %v1251, 4
      %v1253 = vrot.slane %v804, 5
      %v1254 = vsel %vm1230, %v1252, %v1253
      %v1255 = vrot.slane %v1210, 5
      %v1256 = vrot.slane %v1255, 4
      %v1257 = vrot.slane %v805, 5
      %v1258 = vsel %vm1230, %v1256, %v1257
      %v1259 = vrot.slane %v1211, 5
      %v1260 = vrot.slane %v1259, 4
      %v1261 = vrot.slane %v806, 5
      %v1262 = vsel %vm1230, %v1260, %v1261
      %v1263 = vld [vmem:[%s4 + $0x80] sm:$0xf]
      %v1264 = vld [vmem:[%s4 + $0x84] sm:$0xf]
      %v1265 = vld [vmem:[%s4 + $0x88] sm:$0xf]
      %v1266 = vld [vmem:[%s4 + $0x8c] sm:$0xf]
      %v1267 = vld [vmem:[%s4 + $0x90] sm:$0xf]
      %v1268 = vld [vmem:[%s4 + $0x94] sm:$0xf]
      %v1269 = vld [vmem:[%s4 + $0x98] sm:$0xf]
      %v1270 = vld [vmem:[%s4 + $0x9c] sm:$0xf]
      %v1271 = vld [vmem:[%s4 + $0xa0] sm:$0xf]
      %v1272 = vld [vmem:[%s4 + $0xa4] sm:$0xf]
      %v1273 = vld [vmem:[%s4 + $0xa8] sm:$0xf]
      %v1274 = vld [vmem:[%s4 + $0xac] sm:$0xf]
      %v1275 = vld [vmem:[%s4 + $0xb0] sm:$0xf]
      %v1276 = vld [vmem:[%s4 + $0xb4] sm:$0xf]
      %v1277 = vld [vmem:[%s4 + $0xb8] sm:$0xf]
      %v1278 = vld [vmem:[%s4 + $0xbc] sm:$0xf]
      %v1279 = vunpack.c.l.b16 %v1234
      %v1280 = vunpack.c.l.b16 %v1238
      %v1281 = vunpack.c.l.b16 %v1242
      %v1282 = vunpack.c.l.b16 %v1246
      %v1283 = vunpack.c.l.b16 %v1250
      %v1284 = vunpack.c.l.b16 %v1254
      %v1285 = vunpack.c.l.b16 %v1258
      %v1286 = vunpack.c.l.b16 %v1262
      %v1287 = vpack.c.b16 %v1280, %v1279
      %v1288 = vpack.c.b16 %v1282, %v1281
      %v1289 = vpack.c.b16 %v1284, %v1283
      %v1290 = vpack.c.b16 %v1286, %v1285
      %v1311 = vunpack.c.l.b16 %v1263
      %v1312 = vunpack.c.l.b16 %v1264
      %v1313 = vunpack.c.l.b16 %v1265
      %v1314 = vunpack.c.l.b16 %v1266
      %v1315 = vunpack.c.l.b16 %v1267
      %v1316 = vunpack.c.l.b16 %v1268
      %v1317 = vunpack.c.l.b16 %v1269
      %v1318 = vunpack.c.l.b16 %v1270
      %v1319 = vunpack.c.l.b16 %v1271
      %v1320 = vunpack.c.l.b16 %v1272
      %v1321 = vunpack.c.l.b16 %v1273
      %v1322 = vunpack.c.l.b16 %v1274
      %v1323 = vunpack.c.l.b16 %v1275
      %v1324 = vunpack.c.l.b16 %v1276
      %v1325 = vunpack.c.l.b16 %v1277
      %v1326 = vunpack.c.l.b16 %v1278
      %v1327 = vpack.c.b16 %v1312, %v1311
      %v1328 = vpack.c.b16 %v1314, %v1313
      %v1329 = vpack.c.b16 %v1316, %v1315
      %v1330 = vpack.c.b16 %v1318, %v1317
      %v1331 = vpack.c.b16 %v1320, %v1319
      %v1332 = vpack.c.b16 %v1322, %v1321
      %v1333 = vpack.c.b16 %v1324, %v1323
      %v1334 = vpack.c.b16 %v1326, %v1325
      %1343 = vmatprep.subr.bf16.mxu0 0
      %1344 = vmatpush1.bf16.msra.mxu0 %v1327
      %1345 = vmatprep.subr.bf16.mxu0 0
      %1346 = vmatpush1.bf16.msra.mxu0 %v1328
      %1347 = vmatprep.subr.bf16.mxu0 0
      %1348 = vmatpush1.bf16.msra.mxu0 %v1329
      %1349 = vmatprep.subr.bf16.mxu0 0
      %1350 = vmatpush1.bf16.msra.mxu0 %v1330
      %1351 = vmatprep.subr.bf16.mxu0 0
      %1352 = vmatpush1.bf16.msra.mxu0 %v1331
      %1353 = vmatprep.subr.bf16.mxu0 0
      %1354 = vmatpush1.bf16.msra.mxu0 %v1332
      %1355 = vmatprep.subr.bf16.mxu0 0
      %1356 = vmatpush1.bf16.msra.mxu0 %v1333
      %1357 = vmatprep.subr.bf16.mxu0 0
      %1358 = vmatpush1.bf16.msra.mxu0 %v1334
      %1359 = vmatprep.subr.bf16.mxu0 0
      %1360 = vmatpush1.bf16.msra.mxu0 0
      %1361 = vmatprep.subr.bf16.mxu0 0
      %1362 = vmatpush1.bf16.msra.mxu0 0
      %1363 = vmatprep.subr.bf16.mxu0 0
      %1364 = vmatpush1.bf16.msra.mxu0 0
      %1365 = vmatprep.subr.bf16.mxu0 0
      %1366 = vmatpush1.bf16.msra.mxu0 0
      %1367 = vmatprep.subr.bf16.mxu0 0
      %1368 = vmatpush1.bf16.msra.mxu0 0
      %1369 = vmatprep.subr.bf16.mxu0 0
      %1370 = vmatpush1.bf16.msra.mxu0 0
      %1371 = vmatprep.subr.bf16.mxu0 0
      %1372 = vmatpush1.bf16.msra.mxu0 0
      %1373 = vmatprep.subr.bf16.mxu0 0
      %1374 = vmatpush1.bf16.msra.mxu0 0
      %1375 = vmatprep.mubr.bf16.mxu0 0
      %1376 = vmatmul.mubr.bf16.gmra.mrb[0].mxu0 %v1287
      %v1377 = vpop.f32.mrb[0].mxu0
      %v1378 = vadd.f32 0.0, %v1377
      %v1379 = vpop.f32.mrb[0].mxu0
      %v1380 = vpop.f32.mrb[0].mxu0
      %v1381 = vadd.f32 0.0, %v1380
      %v1382 = vpop.f32.mrb[0].mxu0
      %1383 = vmatprep.mubr.bf16.mxu0 0
      %1384 = vmatmul.mubr.bf16.gmra.mrb[0].mxu0 %v1288
      %v1385 = vpop.f32.mrb[0].mxu0
      %v1386 = vadd.f32 0.0, %v1385
      %v1387 = vpop.f32.mrb[0].mxu0
      %v1388 = vpop.f32.mrb[0].mxu0
      %v1389 = vadd.f32 0.0, %v1388
      %v1390 = vpop.f32.mrb[0].mxu0
      %1391 = vmatprep.mubr.bf16.mxu0 0
      %1392 = vmatmul.mubr.bf16.gmra.mrb[0].mxu0 %v1289
      %v1393 = vpop.f32.mrb[0].mxu0
      %v1394 = vadd.f32 0.0, %v1393
      %v1395 = vpop.f32.mrb[0].mxu0
      %v1396 = vpop.f32.mrb[0].mxu0
      %v1397 = vadd.f32 0.0, %v1396
      %v1398 = vpop.f32.mrb[0].mxu0
      %1399 = vmatprep.mubr.bf16.mxu0 0
      %1400 = vmatmul.mubr.bf16.gmra.mrb[0].mxu0 %v1290
      %v1401 = vpop.f32.mrb[0].mxu0
      %v1402 = vadd.f32 0.0, %v1401
      %v1403 = vpop.f32.mrb[0].mxu0
      %v1404 = vpop.f32.mrb[0].mxu0
      %v1405 = vadd.f32 0.0, %v1404
      %v1406 = vpop.f32.mrb[0].mxu0
      %1407 = vdwg.mxu0
      %v1408 = vadd.f32 %v1174, %v1378
      %v1409 = vadd.f32 %v1177, %v1381
      %v1410 = vadd.f32 %v1182, %v1386
      %v1411 = vadd.f32 %v1185, %v1389
      %v1412 = vadd.f32 %v1190, %v1394
      %v1413 = vadd.f32 %v1193, %v1397
      %v1414 = vadd.f32 %v1198, %v1402
      %v1415 = vadd.f32 %v1201, %v1405
      %v1416 = vld [vmem:[%s588] sm:$0xf]
      %v1417 = vld [vmem:[%s588 + $0x8] sm:$0xf]
      %v1418 = vld [vmem:[%s588 + $0x10] sm:$0xf]
      %v1419 = vld [vmem:[%s588 + $0x18] sm:$0xf]
      %v1420 = vld [vmem:[%s588 + $0x20] sm:$0xf]
      %v1421 = vld [vmem:[%s588 + $0x28] sm:$0xf]
      %v1422 = vld [vmem:[%s588 + $0x30] sm:$0xf]
      %v1423 = vld [vmem:[%s588 + $0x38] sm:$0xf]
      %v1424 = vld [vmem:[%s4 + $0xc0] sm:$0xf]
      %v1425 = vld [vmem:[%s4 + $0xc4] sm:$0xf]
      %v1426 = vld [vmem:[%s4 + $0xc8] sm:$0xf]
      %v1427 = vld [vmem:[%s4 + $0xcc] sm:$0xf]
      %v1428 = vld [vmem:[%s4 + $0xd0] sm:$0xf]
      %v1429 = vld [vmem:[%s4 + $0xd4] sm:$0xf]
      %v1430 = vld [vmem:[%s4 + $0xd8] sm:$0xf]
      %v1431 = vld [vmem:[%s4 + $0xdc] sm:$0xf]
      %v1432 = vld [vmem:[%s4 + $0xe0] sm:$0xf]
      %v1433 = vld [vmem:[%s4 + $0xe4] sm:$0xf]
      %v1434 = vld [vmem:[%s4 + $0xe8] sm:$0xf]
      %v1435 = vld [vmem:[%s4 + $0xec] sm:$0xf]
      %v1436 = vld [vmem:[%s4 + $0xf0] sm:$0xf]
      %v1437 = vld [vmem:[%s4 + $0xf4] sm:$0xf]
      %v1438 = vld [vmem:[%s4 + $0xf8] sm:$0xf]
      %v1439 = vld [vmem:[%s4 + $0xfc] sm:$0xf]
      %v1448 = vunpack.c.l.b16 %v1416
      %v1449 = vunpack.c.l.b16 %v1417
      %v1450 = vunpack.c.l.b16 %v1418
      %v1451 = vunpack.c.l.b16 %v1419
      %v1452 = vunpack.c.l.b16 %v1420
      %v1453 = vunpack.c.l.b16 %v1421
      %v1454 = vunpack.c.l.b16 %v1422
      %v1455 = vunpack.c.l.b16 %v1423
      %v1456 = vpack.c.b16 %v1449, %v1448
      %v1457 = vpack.c.b16 %v1451, %v1450
      %v1458 = vpack.c.b16 %v1453, %v1452
      %v1459 = vpack.c.b16 %v1455, %v1454
      %v1480 = vunpack.c.l.b16 %v1424
      %v1481 = vunpack.c.l.b16 %v1425
      %v1482 = vunpack.c.l.b16 %v1426
      %v1483 = vunpack.c.l.b16 %v1427
      %v1484 = vunpack.c.l.b16 %v1428
      %v1485 = vunpack.c.l.b16 %v1429
      %v1486 = vunpack.c.l.b16 %v1430
      %v1487 = vunpack.c.l.b16 %v1431
      %v1488 = vunpack.c.l.b16 %v1432
      %v1489 = vunpack.c.l.b16 %v1433
      %v1490 = vunpack.c.l.b16 %v1434
      %v1491 = vunpack.c.l.b16 %v1435
      %v1492 = vunpack.c.l.b16 %v1436
      %v1493 = vunpack.c.l.b16 %v1437
      %v1494 = vunpack.c.l.b16 %v1438
      %v1495 = vunpack.c.l.b16 %v1439
      %v1496 = vpack.c.b16 %v1481, %v1480
      %v1497 = vpack.c.b16 %v1483, %v1482
      %v1498 = vpack.c.b16 %v1485, %v1484
      %v1499 = vpack.c.b16 %v1487, %v1486
      %v1500 = vpack.c.b16 %v1489, %v1488
      %v1501 = vpack.c.b16 %v1491, %v1490
      %v1502 = vpack.c.b16 %v1493, %v1492
      %v1503 = vpack.c.b16 %v1495, %v1494
      %1512 = vmatprep.subr.bf16.mxu0 0
      %1513 = vmatpush1.bf16.msra.mxu0 %v1496
      %1514 = vmatprep.subr.bf16.mxu0 0
      %1515 = vmatpush1.bf16.msra.mxu0 %v1497
      %1516 = vmatprep.subr.bf16.mxu0 0
      %1517 = vmatpush1.bf16.msra.mxu0 %v1498
      %1518 = vmatprep.subr.bf16.mxu0 0
      %1519 = vmatpush1.bf16.msra.mxu0 %v1499
      %1520 = vmatprep.subr.bf16.mxu0 0
      %1521 = vmatpush1.bf16.msra.mxu0 %v1500
      %1522 = vmatprep.subr.bf16.mxu0 0
      %1523 = vmatpush1.bf16.msra.mxu0 %v1501
      %1524 = vmatprep.subr.bf16.mxu0 0
      %1525 = vmatpush1.bf16.msra.mxu0 %v1502
      %1526 = vmatprep.subr.bf16.mxu0 0
      %1527 = vmatpush1.bf16.msra.mxu0 %v1503
      %1528 = vmatprep.subr.bf16.mxu0 0
      %1529 = vmatpush1.bf16.msra.mxu0 0
      %1530 = vmatprep.subr.bf16.mxu0 0
      %1531 = vmatpush1.bf16.msra.mxu0 0
      %1532 = vmatprep.subr.bf16.mxu0 0
      %1533 = vmatpush1.bf16.msra.mxu0 0
      %1534 = vmatprep.subr.bf16.mxu0 0
      %1535 = vmatpush1.bf16.msra.mxu0 0
      %1536 = vmatprep.subr.bf16.mxu0 0
      %1537 = vmatpush1.bf16.msra.mxu0 0
      %1538 = vmatprep.subr.bf16.mxu0 0
      %1539 = vmatpush1.bf16.msra.mxu0 0
      %1540 = vmatprep.subr.bf16.mxu0 0
      %1541 = vmatpush1.bf16.msra.mxu0 0
      %1542 = vmatprep.subr.bf16.mxu0 0
      %1543 = vmatpush1.bf16.msra.mxu0 0
      %1544 = vmatprep.mubr.bf16.mxu0 0
      %1545 = vmatmul.mubr.bf16.gmra.mrb[0].mxu0 %v1456
      %v1546 = vpop.f32.mrb[0].mxu0
      %v1547 = vadd.f32 0.0, %v1546
      %v1548 = vpop.f32.mrb[0].mxu0
      %v1549 = vpop.f32.mrb[0].mxu0
      %v1550 = vadd.f32 0.0, %v1549
      %v1551 = vpop.f32.mrb[0].mxu0
      %1552 = vmatprep.mubr.bf16.mxu0 0
      %1553 = vmatmul.mubr.bf16.gmra.mrb[0].mxu0 %v1457
      %v1554 = vpop.f32.mrb[0].mxu0
      %v1555 = vadd.f32 0.0, %v1554
      %v1556 = vpop.f32.mrb[0].mxu0
      %v1557 = vpop.f32.mrb[0].mxu0
      %v1558 = vadd.f32 0.0, %v1557
      %v1559 = vpop.f32.mrb[0].mxu0
      %1560 = vmatprep.mubr.bf16.mxu0 0
      %1561 = vmatmul.mubr.bf16.gmra.mrb[0].mxu0 %v1458
      %v1562 = vpop.f32.mrb[0].mxu0
      %v1563 = vadd.f32 0.0, %v1562
      %v1564 = vpop.f32.mrb[0].mxu0
      %v1565 = vpop.f32.mrb[0].mxu0
      %v1566 = vadd.f32 0.0, %v1565
      %v1567 = vpop.f32.mrb[0].mxu0
      %1568 = vmatprep.mubr.bf16.mxu0 0
      %1569 = vmatmul.mubr.bf16.gmra.mrb[0].mxu0 %v1459
      %v1570 = vpop.f32.mrb[0].mxu0
      %v1571 = vadd.f32 0.0, %v1570
      %v1572 = vpop.f32.mrb[0].mxu0
      %v1573 = vpop.f32.mrb[0].mxu0
      %v1574 = vadd.f32 0.0, %v1573
      %v1575 = vpop.f32.mrb[0].mxu0
      %1576 = vdwg.mxu0
      %v1577 = vadd.f32 %v1408, %v1547
      %v1578 = vadd.f32 %v1409, %v1550
      %v1579 = vadd.f32 %v1410, %v1555
      %v1580 = vadd.f32 %v1411, %v1558
      %v1581 = vadd.f32 %v1412, %v1563
      %v1582 = vadd.f32 %v1413, %v1566
      %v1583 = vadd.f32 %v1414, %v1571
      %v1584 = vadd.f32 %v1415, %v1574
      %v1585 = vld [vmem:[%s588] sm:$0xf]
      %v1586 = vld [vmem:[%s588 + $0x4] sm:$0x1]
      %v1587 = vld [vmem:[%s588 + $0x8] sm:$0xf]
      %v1588 = vld [vmem:[%s588 + $0xc] sm:$0x1]
      %v1589 = vld [vmem:[%s588 + $0x10] sm:$0xf]
      %v1590 = vld [vmem:[%s588 + $0x14] sm:$0x1]
      %v1591 = vld [vmem:[%s588 + $0x18] sm:$0xf]
      %v1592 = vld [vmem:[%s588 + $0x1c] sm:$0x1]
      %v1593 = vld [vmem:[%s588 + $0x20] sm:$0xf]
      %v1594 = vld [vmem:[%s588 + $0x24] sm:$0x1]
      %v1595 = vld [vmem:[%s588 + $0x28] sm:$0xf]
      %v1596 = vld [vmem:[%s588 + $0x2c] sm:$0x1]
      %v1597 = vld [vmem:[%s588 + $0x30] sm:$0xf]
      %v1598 = vld [vmem:[%s588 + $0x34] sm:$0x1]
      %v1599 = vld [vmem:[%s588 + $0x38] sm:$0xf]
      %v1600 = vld [vmem:[%s588 + $0x3c] sm:$0x1]
      %v1602 = vshrl.u32 %v1585, 16
      %v1604 = vrot.slane %v1602, 4
      %v1605 = vshll.u32 %v1585, 16
      %v1607 = vrot.slane %v1605, 5
      %v1608 = vor.u32 %v1604, %v1607
      %v1609 = vrot.slane %v1608, 4
      %v1611 = vshll.u32 %v1586, 16
      %v1613 = vrot.slane %v1611, 5
      %v1614 = vsel %vm809, %v1609, %v1613
      %v1616 = vshrl.u32 %v1587, 16
      %v1618 = vrot.slane %v1616, 4
      %v1619 = vshll.u32 %v1587, 16
      %v1621 = vrot.slane %v1619, 5
      %v1622 = vor.u32 %v1618, %v1621
      %v1623 = vrot.slane %v1622, 4
      %v1625 = vshll.u32 %v1588, 16
      %v1627 = vrot.slane %v1625, 5
      %v1628 = vsel %vm809, %v1623, %v1627
      %v1630 = vshrl.u32 %v1589, 16
      %v1632 = vrot.slane %v1630, 4
      %v1633 = vshll.u32 %v1589, 16
      %v1635 = vrot.slane %v1633, 5
      %v1636 = vor.u32 %v1632, %v1635
      %v1637 = vrot.slane %v1636, 4
      %v1639 = vshll.u32 %v1590, 16
      %v1641 = vrot.slane %v1639, 5
      %v1642 = vsel %vm809, %v1637, %v1641
      %v1644 = vshrl.u32 %v1591, 16
      %v1646 = vrot.slane %v1644, 4
      %v1647 = vshll.u32 %v1591, 16
      %v1649 = vrot.slane %v1647, 5
      %v1650 = vor.u32 %v1646, %v1649
      %v1651 = vrot.slane %v1650, 4
      %v1653 = vshll.u32 %v1592, 16
      %v1655 = vrot.slane %v1653, 5
      %v1656 = vsel %vm809, %v1651, %v1655
      %v1658 = vshrl.u32 %v1593, 16
      %v1660 = vrot.slane %v1658, 4
      %v1661 = vshll.u32 %v1593, 16
      %v1663 = vrot.slane %v1661, 5
      %v1664 = vor.u32 %v1660, %v1663
      %v1665 = vrot.slane %v1664, 4
      %v1667 = vshll.u32 %v1594, 16
      %v1669 = vrot.slane %v1667, 5
      %v1670 = vsel %vm809, %v1665, %v1669
      %v1672 = vshrl.u32 %v1595, 16
      %v1674 = vrot.slane %v1672, 4
      %v1675 = vshll.u32 %v1595, 16
      %v1677 = vrot.slane %v1675, 5
      %v1678 = vor.u32 %v1674, %v1677
      %v1679 = vrot.slane %v1678, 4
      %v1681 = vshll.u32 %v1596, 16
      %v1683 = vrot.slane %v1681, 5
      %v1684 = vsel %vm809, %v1679, %v1683
      %v1686 = vshrl.u32 %v1597, 16
      %v1688 = vrot.slane %v1686, 4
      %v1689 = vshll.u32 %v1597, 16
      %v1691 = vrot.slane %v1689, 5
      %v1692 = vor.u32 %v1688, %v1691
      %v1693 = vrot.slane %v1692, 4
      %v1695 = vshll.u32 %v1598, 16
      %v1697 = vrot.slane %v1695, 5
      %v1698 = vsel %vm809, %v1693, %v1697
      %v1700 = vshrl.u32 %v1599, 16
      %v1702 = vrot.slane %v1700, 4
      %v1703 = vshll.u32 %v1599, 16
      %v1705 = vrot.slane %v1703, 5
      %v1706 = vor.u32 %v1702, %v1705
      %v1707 = vrot.slane %v1706, 4
      %v1709 = vshll.u32 %v1600, 16
      %v1711 = vrot.slane %v1709, 5
      %v1712 = vsel %vm809, %v1707, %v1711
      %v1713 = vld [vmem:[%s4 + $0x100] sm:$0xf]
      %v1714 = vld [vmem:[%s4 + $0x104] sm:$0xf]
      %v1715 = vld [vmem:[%s4 + $0x108] sm:$0xf]
      %v1716 = vld [vmem:[%s4 + $0x10c] sm:$0xf]
      %v1717 = vld [vmem:[%s4 + $0x110] sm:$0xf]
      %v1718 = vld [vmem:[%s4 + $0x114] sm:$0xf]
      %v1719 = vld [vmem:[%s4 + $0x118] sm:$0xf]
      %v1720 = vld [vmem:[%s4 + $0x11c] sm:$0xf]
      %v1721 = vld [vmem:[%s4 + $0x120] sm:$0xf]
      %v1722 = vld [vmem:[%s4 + $0x124] sm:$0xf]
      %v1723 = vld [vmem:[%s4 + $0x128] sm:$0xf]
      %v1724 = vld [vmem:[%s4 + $0x12c] sm:$0xf]
      %v1725 = vld [vmem:[%s4 + $0x130] sm:$0xf]
      %v1726 = vld [vmem:[%s4 + $0x134] sm:$0xf]
      %v1727 = vld [vmem:[%s4 + $0x138] sm:$0xf]
      %v1728 = vld [vmem:[%s4 + $0x13c] sm:$0xf]
      %v1729 = vunpack.c.l.b16 %v1614
      %v1730 = vunpack.c.l.b16 %v1628
      %v1731 = vunpack.c.l.b16 %v1642
      %v1732 = vunpack.c.l.b16 %v1656
      %v1733 = vunpack.c.l.b16 %v1670
      %v1734 = vunpack.c.l.b16 %v1684
      %v1735 = vunpack.c.l.b16 %v1698
      %v1736 = vunpack.c.l.b16 %v1712
      %v1737 = vpack.c.b16 %v1730, %v1729
      %v1738 = vpack.c.b16 %v1732, %v1731
      %v1739 = vpack.c.b16 %v1734, %v1733
      %v1740 = vpack.c.b16 %v1736, %v1735
      %v1761 = vunpack.c.l.b16 %v1713
      %v1762 = vunpack.c.l.b16 %v1714
      %v1763 = vunpack.c.l.b16 %v1715
      %v1764 = vunpack.c.l.b16 %v1716
      %v1765 = vunpack.c.l.b16 %v1717
      %v1766 = vunpack.c.l.b16 %v1718
      %v1767 = vunpack.c.l.b16 %v1719
      %v1768 = vunpack.c.l.b16 %v1720
      %v1769 = vunpack.c.l.b16 %v1721
      %v1770 = vunpack.c.l.b16 %v1722
      %v1771 = vunpack.c.l.b16 %v1723
      %v1772 = vunpack.c.l.b16 %v1724
      %v1773 = vunpack.c.l.b16 %v1725
      %v1774 = vunpack.c.l.b16 %v1726
      %v1775 = vunpack.c.l.b16 %v1727
      %v1776 = vunpack.c.l.b16 %v1728
      %v1777 = vpack.c.b16 %v1762, %v1761
      %v1778 = vpack.c.b16 %v1764, %v1763
      %v1779 = vpack.c.b16 %v1766, %v1765
      %v1780 = vpack.c.b16 %v1768, %v1767
      %v1781 = vpack.c.b16 %v1770, %v1769
      %v1782 = vpack.c.b16 %v1772, %v1771
      %v1783 = vpack.c.b16 %v1774, %v1773
      %v1784 = vpack.c.b16 %v1776, %v1775
      %1793 = vmatprep.subr.bf16.mxu0 0
      %1794 = vmatpush1.bf16.msra.mxu0 %v1777
      %1795 = vmatprep.subr.bf16.mxu0 0
      %1796 = vmatpush1.bf16.msra.mxu0 %v1778
      %1797 = vmatprep.subr.bf16.mxu0 0
      %1798 = vmatpush1.bf16.msra.mxu0 %v1779
      %1799 = vmatprep.subr.bf16.mxu0 0
      %1800 = vmatpush1.bf16.msra.mxu0 %v1780
      %1801 = vmatprep.subr.bf16.mxu0 0
      %1802 = vmatpush1.bf16.msra.mxu0 %v1781
      %1803 = vmatprep.subr.bf16.mxu0 0
      %1804 = vmatpush1.bf16.msra.mxu0 %v1782
      %1805 = vmatprep.subr.bf16.mxu0 0
      %1806 = vmatpush1.bf16.msra.mxu0 %v1783
      %1807 = vmatprep.subr.bf16.mxu0 0
      %1808 = vmatpush1.bf16.msra.mxu0 %v1784
      %1809 = vmatprep.subr.bf16.mxu0 0
      %1810 = vmatpush1.bf16.msra.mxu0 0
      %1811 = vmatprep.subr.bf16.mxu0 0
      %1812 = vmatpush1.bf16.msra.mxu0 0
      %1813 = vmatprep.subr.bf16.mxu0 0
      %1814 = vmatpush1.bf16.msra.mxu0 0
      %1815 = vmatprep.subr.bf16.mxu0 0
      %1816 = vmatpush1.bf16.msra.mxu0 0
      %1817 = vmatprep.subr.bf16.mxu0 0
      %1818 = vmatpush1.bf16.msra.mxu0 0
      %1819 = vmatprep.subr.bf16.mxu0 0
      %1820 = vmatpush1.bf16.msra.mxu0 0
      %1821 = vmatprep.subr.bf16.mxu0 0
      %1822 = vmatpush1.bf16.msra.mxu0 0
      %1823 = vmatprep.subr.bf16.mxu0 0
      %1824 = vmatpush1.bf16.msra.mxu0 0
      %1825 = vmatprep.mubr.bf16.mxu0 0
      %1826 = vmatmul.mubr.bf16.gmra.mrb[0].mxu0 %v1737
      %v1827 = vpop.f32.mrb[0].mxu0
      %v1828 = vadd.f32 0.0, %v1827
      %v1829 = vpop.f32.mrb[0].mxu0
      %v1830 = vpop.f32.mrb[0].mxu0
      %v1831 = vadd.f32 0.0, %v1830
      %v1832 = vpop.f32.mrb[0].mxu0
      %1833 = vmatprep.mubr.bf16.mxu0 0
      %1834 = vmatmul.mubr.bf16.gmra.mrb[0].mxu0 %v1738
      %v1835 = vpop.f32.mrb[0].mxu0
      %v1836 = vadd.f32 0.0, %v1835
      %v1837 = vpop.f32.mrb[0].mxu0
      %v1838 = vpop.f32.mrb[0].mxu0
      %v1839 = vadd.f32 0.0, %v1838
      %v1840 = vpop.f32.mrb[0].mxu0
      %1841 = vmatprep.mubr.bf16.mxu0 0
      %1842 = vmatmul.mubr.bf16.gmra.mrb[0].mxu0 %v1739
      %v1843 = vpop.f32.mrb[0].mxu0
      %v1844 = vadd.f32 0.0, %v1843
      %v1845 = vpop.f32.mrb[0].mxu0
      %v1846 = vpop.f32.mrb[0].mxu0
      %v1847 = vadd.f32 0.0, %v1846
      %v1848 = vpop.f32.mrb[0].mxu0
      %1849 = vmatprep.mubr.bf16.mxu0 0
      %1850 = vmatmul.mubr.bf16.gmra.mrb[0].mxu0 %v1740
      %v1851 = vpop.f32.mrb[0].mxu0
      %v1852 = vadd.f32 0.0, %v1851
      %v1853 = vpop.f32.mrb[0].mxu0
      %v1854 = vpop.f32.mrb[0].mxu0
      %v1855 = vadd.f32 0.0, %v1854
      %v1856 = vpop.f32.mrb[0].mxu0
      %1857 = vdwg.mxu0
      %v1858 = vadd.f32 %v1577, %v1828
      %v1859 = vadd.f32 %v1578, %v1831
      %v1860 = vadd.f32 %v1579, %v1836
      %v1861 = vadd.f32 %v1580, %v1839
      %v1862 = vadd.f32 %v1581, %v1844
      %v1863 = vadd.f32 %v1582, %v1847
      %v1864 = vadd.f32 %v1583, %v1852
      %v1865 = vadd.f32 %v1584, %v1855
      %v1866 = vld [vmem:[%s588] sm:$0xe]
      %v1867 = vld [vmem:[%s588 + $0x8] sm:$0xe]
      %v1868 = vld [vmem:[%s588 + $0x10] sm:$0xe]
      %v1869 = vld [vmem:[%s588 + $0x18] sm:$0xe]
      %v1870 = vld [vmem:[%s588 + $0x20] sm:$0xe]
      %v1871 = vld [vmem:[%s588 + $0x28] sm:$0xe]
      %v1872 = vld [vmem:[%s588 + $0x30] sm:$0xe]
      %v1873 = vld [vmem:[%s588 + $0x38] sm:$0xe]
      %v1890 = vrot.slane %v1866, 5
      %v1891 = vrot.slane %v1890, 4
      %v1892 = vrot.slane %v1586, 5
      %v1893 = vsel %vm1230, %v1891, %v1892
      %v1894 = vrot.slane %v1867, 5
      %v1895 = vrot.slane %v1894, 4
      %v1896 = vrot.slane %v1588, 5
      %v1897 = vsel %vm1230, %v1895, %v1896
      %v1898 = vrot.slane %v1868, 5
      %v1899 = vrot.slane %v1898, 4
      %v1900 = vrot.slane %v1590, 5
      %v1901 = vsel %vm1230, %v1899, %v1900
      %v1902 = vrot.slane %v1869, 5
      %v1903 = vrot.slane %v1902, 4
      %v1904 = vrot.slane %v1592, 5
      %v1905 = vsel %vm1230, %v1903, %v1904
      %v1906 = vrot.slane %v1870, 5
      %v1907 = vrot.slane %v1906, 4
      %v1908 = vrot.slane %v1594, 5
      %v1909 = vsel %vm1230, %v1907, %v1908
      %v1910 = vrot.slane %v1871, 5
      %v1911 = vrot.slane %v1910, 4
      %v1912 = vrot.slane %v1596, 5
      %v1913 = vsel %vm1230, %v1911, %v1912
      %v1914 = vrot.slane %v1872, 5
      %v1915 = vrot.slane %v1914, 4
      %v1916 = vrot.slane %v1598, 5
      %v1917 = vsel %vm1230, %v1915, %v1916
      %v1918 = vrot.slane %v1873, 5
      %v1919 = vrot.slane %v1918, 4
      %v1920 = vrot.slane %v1600, 5
      %v1921 = vsel %vm1230, %v1919, %v1920
      %v1922 = vld [vmem:[%s4 + $0x140] sm:$0xf]
      %v1923 = vld [vmem:[%s4 + $0x144] sm:$0xf]
      %v1924 = vld [vmem:[%s4 + $0x148] sm:$0xf]
      %v1925 = vld [vmem:[%s4 + $0x14c] sm:$0xf]
      %v1926 = vld [vmem:[%s4 + $0x150] sm:$0xf]
      %v1927 = vld [vmem:[%s4 + $0x154] sm:$0xf]
      %v1928 = vld [vmem:[%s4 + $0x158] sm:$0xf]
      %v1929 = vld [vmem:[%s4 + $0x15c] sm:$0xf]
      %v1930 = vld [vmem:[%s4 + $0x160] sm:$0xf]
      %v1931 = vld [vmem:[%s4 + $0x164] sm:$0xf]
      %v1932 = vld [vmem:[%s4 + $0x168] sm:$0xf]
      %v1933 = vld [vmem:[%s4 + $0x16c] sm:$0xf]
      %v1934 = vld [vmem:[%s4 + $0x170] sm:$0xf]
      %v1935 = vld [vmem:[%s4 + $0x174] sm:$0xf]
      %v1936 = vld [vmem:[%s4 + $0x178] sm:$0xf]
      %v1937 = vld [vmem:[%s4 + $0x17c] sm:$0xf]
      %v1938 = vunpack.c.l.b16 %v1893
      %v1939 = vunpack.c.l.b16 %v1897
      %v1940 = vunpack.c.l.b16 %v1901
      %v1941 = vunpack.c.l.b16 %v1905
      %v1942 = vunpack.c.l.b16 %v1909
      %v1943 = vunpack.c.l.b16 %v1913
      %v1944 = vunpack.c.l.b16 %v1917
      %v1945 = vunpack.c.l.b16 %v1921
      %v1946 = vpack.c.b16 %v1939, %v1938
      %v1947 = vpack.c.b16 %v1941, %v1940
      %v1948 = vpack.c.b16 %v1943, %v1942
      %v1949 = vpack.c.b16 %v1945, %v1944
      %v1970 = vunpack.c.l.b16 %v1922
      %v1971 = vunpack.c.l.b16 %v1923
      %v1972 = vunpack.c.l.b16 %v1924
      %v1973 = vunpack.c.l.b16 %v1925
      %v1974 = vunpack.c.l.b16 %v1926
      %v1975 = vunpack.c.l.b16 %v1927
      %v1976 = vunpack.c.l.b16 %v1928
      %v1977 = vunpack.c.l.b16 %v1929
      %v1978 = vunpack.c.l.b16 %v1930
      %v1979 = vunpack.c.l.b16 %v1931
      %v1980 = vunpack.c.l.b16 %v1932
      %v1981 = vunpack.c.l.b16 %v1933
      %v1982 = vunpack.c.l.b16 %v1934
      %v1983 = vunpack.c.l.b16 %v1935
      %v1984 = vunpack.c.l.b16 %v1936
      %v1985 = vunpack.c.l.b16 %v1937
      %v1986 = vpack.c.b16 %v1971, %v1970
      %v1987 = vpack.c.b16 %v1973, %v1972
      %v1988 = vpack.c.b16 %v1975, %v1974
      %v1989 = vpack.c.b16 %v1977, %v1976
      %v1990 = vpack.c.b16 %v1979, %v1978
      %v1991 = vpack.c.b16 %v1981, %v1980
      %v1992 = vpack.c.b16 %v1983, %v1982
      %v1993 = vpack.c.b16 %v1985, %v1984
      %2002 = vmatprep.subr.bf16.mxu0 0
      %2003 = vmatpush1.bf16.msra.mxu0 %v1986
      %2004 = vmatprep.subr.bf16.mxu0 0
      %2005 = vmatpush1.bf16.msra.mxu0 %v1987
      %2006 = vmatprep.subr.bf16.mxu0 0
      %2007 = vmatpush1.bf16.msra.mxu0 %v1988
      %2008 = vmatprep.subr.bf16.mxu0 0
      %2009 = vmatpush1.bf16.msra.mxu0 %v1989
      %2010 = vmatprep.subr.bf16.mxu0 0
      %2011 = vmatpush1.bf16.msra.mxu0 %v1990
      %2012 = vmatprep.subr.bf16.mxu0 0
      %2013 = vmatpush1.bf16.msra.mxu0 %v1991
      %2014 = vmatprep.subr.bf16.mxu0 0
      %2015 = vmatpush1.bf16.msra.mxu0 %v1992
      %2016 = vmatprep.subr.bf16.mxu0 0
      %2017 = vmatpush1.bf16.msra.mxu0 %v1993
      %2018 = vmatprep.subr.bf16.mxu0 0
      %2019 = vmatpush1.bf16.msra.mxu0 0
      %2020 = vmatprep.subr.bf16.mxu0 0
      %2021 = vmatpush1.bf16.msra.mxu0 0
      %2022 = vmatprep.subr.bf16.mxu0 0
      %2023 = vmatpush1.bf16.msra.mxu0 0
      %2024 = vmatprep.subr.bf16.mxu0 0
      %2025 = vmatpush1.bf16.msra.mxu0 0
      %2026 = vmatprep.subr.bf16.mxu0 0
      %2027 = vmatpush1.bf16.msra.mxu0 0
      %2028 = vmatprep.subr.bf16.mxu0 0
      %2029 = vmatpush1.bf16.msra.mxu0 0
      %2030 = vmatprep.subr.bf16.mxu0 0
      %2031 = vmatpush1.bf16.msra.mxu0 0
      %2032 = vmatprep.subr.bf16.mxu0 0
      %2033 = vmatpush1.bf16.msra.mxu0 0
      %2034 = vmatprep.mubr.bf16.mxu0 0
      %2035 = vmatmul.mubr.bf16.gmra.mrb[0].mxu0 %v1946
      %v2036 = vpop.f32.mrb[0].mxu0
      %v2037 = vadd.f32 0.0, %v2036
      %v2038 = vpop.f32.mrb[0].mxu0
      %v2039 = vpop.f32.mrb[0].mxu0
      %v2040 = vadd.f32 0.0, %v2039
      %v2041 = vpop.f32.mrb[0].mxu0
      %2042 = vmatprep.mubr.bf16.mxu0 0
      %2043 = vmatmul.mubr.bf16.gmra.mrb[0].mxu0 %v1947
      %v2044 = vpop.f32.mrb[0].mxu0
      %v2045 = vadd.f32 0.0, %v2044
      %v2046 = vpop.f32.mrb[0].mxu0
      %v2047 = vpop.f32.mrb[0].mxu0
      %v2048 = vadd.f32 0.0, %v2047
      %v2049 = vpop.f32.mrb[0].mxu0
      %2050 = vmatprep.mubr.bf16.mxu0 0
      %2051 = vmatmul.mubr.bf16.gmra.mrb[0].mxu0 %v1948
      %v2052 = vpop.f32.mrb[0].mxu0
      %v2053 = vadd.f32 0.0, %v2052
      %v2054 = vpop.f32.mrb[0].mxu0
      %v2055 = vpop.f32.mrb[0].mxu0
      %v2056 = vadd.f32 0.0, %v2055
      %v2057 = vpop.f32.mrb[0].mxu0
      %2058 = vmatprep.mubr.bf16.mxu0 0
      %2059 = vmatmul.mubr.bf16.gmra.mrb[0].mxu0 %v1949
      %v2060 = vpop.f32.mrb[0].mxu0
      %v2061 = vadd.f32 0.0, %v2060
      %v2062 = vpop.f32.mrb[0].mxu0
      %v2063 = vpop.f32.mrb[0].mxu0
      %v2064 = vadd.f32 0.0, %v2063
      %v2065 = vpop.f32.mrb[0].mxu0
      %2066 = vdwg.mxu0
      %v2067 = vadd.f32 %v1858, %v2037
      %v2068 = vadd.f32 %v1859, %v2040
      %v2069 = vadd.f32 %v1860, %v2045
      %v2070 = vadd.f32 %v1861, %v2048
      %v2071 = vadd.f32 %v1862, %v2053
      %v2072 = vadd.f32 %v1863, %v2056
      %v2073 = vadd.f32 %v1864, %v2061
      %v2074 = vadd.f32 %v1865, %v2064
      %s2075 = scalar_lea.vmem [#allocation2], 16
      %v2076 = vld [vmem:[%s2075] sm:$0xf]
      %v2077 = vld [vmem:[%s2075 + $0x8] sm:$0xf]
      %v2078 = vld [vmem:[%s2075 + $0x10] sm:$0xf]
      %v2079 = vld [vmem:[%s2075 + $0x18] sm:$0xf]
      %v2080 = vld [vmem:[%s2075 + $0x20] sm:$0xf]
      %v2081 = vld [vmem:[%s2075 + $0x28] sm:$0xf]
      %v2082 = vld [vmem:[%s2075 + $0x30] sm:$0xf]
      %v2083 = vld [vmem:[%s2075 + $0x38] sm:$0xf]
      %v2084 = vld [vmem:[%s4 + $0x180] sm:$0xf]
      %v2085 = vld [vmem:[%s4 + $0x184] sm:$0xf]
      %v2086 = vld [vmem:[%s4 + $0x188] sm:$0xf]
      %v2087 = vld [vmem:[%s4 + $0x18c] sm:$0xf]
      %v2088 = vld [vmem:[%s4 + $0x190] sm:$0xf]
      %v2089 = vld [vmem:[%s4 + $0x194] sm:$0xf]
      %v2090 = vld [vmem:[%s4 + $0x198] sm:$0xf]
      %v2091 = vld [vmem:[%s4 + $0x19c] sm:$0xf]
      %v2092 = vld [vmem:[%s4 + $0x1a0] sm:$0xf]
      %v2093 = vld [vmem:[%s4 + $0x1a4] sm:$0xf]
      %v2094 = vld [vmem:[%s4 + $0x1a8] sm:$0xf]
      %v2095 = vld [vmem:[%s4 + $0x1ac] sm:$0xf]
      %v2096 = vld [vmem:[%s4 + $0x1b0] sm:$0xf]
      %v2097 = vld [vmem:[%s4 + $0x1b4] sm:$0xf]
      %v2098 = vld [vmem:[%s4 + $0x1b8] sm:$0xf]
      %v2099 = vld [vmem:[%s4 + $0x1bc] sm:$0xf]
      %v2108 = vunpack.c.l.b16 %v2076
      %v2109 = vunpack.c.l.b16 %v2077
      %v2110 = vunpack.c.l.b16 %v2078
      %v2111 = vunpack.c.l.b16 %v2079
      %v2112 = vunpack.c.l.b16 %v2080
      %v2113 = vunpack.c.l.b16 %v2081
      %v2114 = vunpack.c.l.b16 %v2082
      %v2115 = vunpack.c.l.b16 %v2083
      %v2116 = vpack.c.b16 %v2109, %v2108
      %v2117 = vpack.c.b16 %v2111, %v2110
      %v2118 = vpack.c.b16 %v2113, %v2112
      %v2119 = vpack.c.b16 %v2115, %v2114
      %v2140 = vunpack.c.l.b16 %v2084
      %v2141 = vunpack.c.l.b16 %v2085
      %v2142 = vunpack.c.l.b16 %v2086
      %v2143 = vunpack.c.l.b16 %v2087
      %v2144 = vunpack.c.l.b16 %v2088
      %v2145 = vunpack.c.l.b16 %v2089
      %v2146 = vunpack.c.l.b16 %v2090
      %v2147 = vunpack.c.l.b16 %v2091
      %v2148 = vunpack.c.l.b16 %v2092
      %v2149 = vunpack.c.l.b16 %v2093
      %v2150 = vunpack.c.l.b16 %v2094
      %v2151 = vunpack.c.l.b16 %v2095
      %v2152 = vunpack.c.l.b16 %v2096
      %v2153 = vunpack.c.l.b16 %v2097
      %v2154 = vunpack.c.l.b16 %v2098
      %v2155 = vunpack.c.l.b16 %v2099
      %v2156 = vpack.c.b16 %v2141, %v2140
      %v2157 = vpack.c.b16 %v2143, %v2142
      %v2158 = vpack.c.b16 %v2145, %v2144
      %v2159 = vpack.c.b16 %v2147, %v2146
      %v2160 = vpack.c.b16 %v2149, %v2148
      %v2161 = vpack.c.b16 %v2151, %v2150
      %v2162 = vpack.c.b16 %v2153, %v2152
      %v2163 = vpack.c.b16 %v2155, %v2154
      %2172 = vmatprep.subr.bf16.mxu0 0
      %2173 = vmatpush1.bf16.msra.mxu0 %v2156
      %2174 = vmatprep.subr.bf16.mxu0 0
      %2175 = vmatpush1.bf16.msra.mxu0 %v2157
      %2176 = vmatprep.subr.bf16.mxu0 0
      %2177 = vmatpush1.bf16.msra.mxu0 %v2158
      %2178 = vmatprep.subr.bf16.mxu0 0
      %2179 = vmatpush1.bf16.msra.mxu0 %v2159
      %2180 = vmatprep.subr.bf16.mxu0 0
      %2181 = vmatpush1.bf16.msra.mxu0 %v2160
      %2182 = vmatprep.subr.bf16.mxu0 0
      %2183 = vmatpush1.bf16.msra.mxu0 %v2161
      %2184 = vmatprep.subr.bf16.mxu0 0
      %2185 = vmatpush1.bf16.msra.mxu0 %v2162
      %2186 = vmatprep.subr.bf16.mxu0 0
      %2187 = vmatpush1.bf16.msra.mxu0 %v2163
      %2188 = vmatprep.subr.bf16.mxu0 0
      %2189 = vmatpush1.bf16.msra.mxu0 0
      %2190 = vmatprep.subr.bf16.mxu0 0
      %2191 = vmatpush1.bf16.msra.mxu0 0
      %2192 = vmatprep.subr.bf16.mxu0 0
      %2193 = vmatpush1.bf16.msra.mxu0 0
      %2194 = vmatprep.subr.bf16.mxu0 0
      %2195 = vmatpush1.bf16.msra.mxu0 0
      %2196 = vmatprep.subr.bf16.mxu0 0
      %2197 = vmatpush1.bf16.msra.mxu0 0
      %2198 = vmatprep.subr.bf16.mxu0 0
      %2199 = vmatpush1.bf16.msra.mxu0 0
      %2200 = vmatprep.subr.bf16.mxu0 0
      %2201 = vmatpush1.bf16.msra.mxu0 0
      %2202 = vmatprep.subr.bf16.mxu0 0
      %2203 = vmatpush1.bf16.msra.mxu0 0
      %2204 = vmatprep.mubr.bf16.mxu0 0
      %2205 = vmatmul.mubr.bf16.gmra.mrb[0].mxu0 %v2116
      %v2206 = vpop.f32.mrb[0].mxu0
      %v2207 = vadd.f32 0.0, %v2206
      %v2208 = vpop.f32.mrb[0].mxu0
      %v2209 = vpop.f32.mrb[0].mxu0
      %v2210 = vadd.f32 0.0, %v2209
      %v2211 = vpop.f32.mrb[0].mxu0
      %2212 = vmatprep.mubr.bf16.mxu0 0
      %2213 = vmatmul.mubr.bf16.gmra.mrb[0].mxu0 %v2117
      %v2214 = vpop.f32.mrb[0].mxu0
      %v2215 = vadd.f32 0.0, %v2214
      %v2216 = vpop.f32.mrb[0].mxu0
      %v2217 = vpop.f32.mrb[0].mxu0
      %v2218 = vadd.f32 0.0, %v2217
      %v2219 = vpop.f32.mrb[0].mxu0
      %2220 = vmatprep.mubr.bf16.mxu0 0
      %2221 = vmatmul.mubr.bf16.gmra.mrb[0].mxu0 %v2118
      %v2222 = vpop.f32.mrb[0].mxu0
      %v2223 = vadd.f32 0.0, %v2222
      %v2224 = vpop.f32.mrb[0].mxu0
      %v2225 = vpop.f32.mrb[0].mxu0
      %v2226 = vadd.f32 0.0, %v2225
      %v2227 = vpop.f32.mrb[0].mxu0
      %2228 = vmatprep.mubr.bf16.mxu0 0
      %2229 = vmatmul.mubr.bf16.gmra.mrb[0].mxu0 %v2119
      %v2230 = vpop.f32.mrb[0].mxu0
      %v2231 = vadd.f32 0.0, %v2230
      %v2232 = vpop.f32.mrb[0].mxu0
      %v2233 = vpop.f32.mrb[0].mxu0
      %v2234 = vadd.f32 0.0, %v2233
      %v2235 = vpop.f32.mrb[0].mxu0
      %2236 = vdwg.mxu0
      %v2237 = vadd.f32 %v2067, %v2207
      %v2238 = vadd.f32 %v2068, %v2210
      %v2239 = vadd.f32 %v2069, %v2215
      %v2240 = vadd.f32 %v2070, %v2218
      %v2241 = vadd.f32 %v2071, %v2223
      %v2242 = vadd.f32 %v2072, %v2226
      %v2243 = vadd.f32 %v2073, %v2231
      %v2244 = vadd.f32 %v2074, %v2234
      %v2245 = vld [vmem:[%s2075] sm:$0xf]
      %v2246 = vld [vmem:[%s2075 + $0x4] sm:$0x1]
      %v2247 = vld [vmem:[%s2075 + $0x8] sm:$0xf]
      %v2248 = vld [vmem:[%s2075 + $0xc] sm:$0x1]
      %v2249 = vld [vmem:[%s2075 + $0x10] sm:$0xf]
      %v2250 = vld [vmem:[%s2075 + $0x14] sm:$0x1]
      %v2251 = vld [vmem:[%s2075 + $0x18] sm:$0xf]
      %v2252 = vld [vmem:[%s2075 + $0x1c] sm:$0x1]
      %v2253 = vld [vmem:[%s2075 + $0x20] sm:$0xf]
      %v2254 = vld [vmem:[%s2075 + $0x24] sm:$0x1]
      %v2255 = vld [vmem:[%s2075 + $0x28] sm:$0xf]
      %v2256 = vld [vmem:[%s2075 + $0x2c] sm:$0x1]
      %v2257 = vld [vmem:[%s2075 + $0x30] sm:$0xf]
      %v2258 = vld [vmem:[%s2075 + $0x34] sm:$0x1]
      %v2259 = vld [vmem:[%s2075 + $0x38] sm:$0xf]
      %v2260 = vld [vmem:[%s2075 + $0x3c] sm:$0x1]
      %v2262 = vshrl.u32 %v2245, 16
      %v2264 = vrot.slane %v2262, 4
      %v2265 = vshll.u32 %v2245, 16
      %v2267 = vrot.slane %v2265, 5
      %v2268 = vor.u32 %v2264, %v2267
      %v2269 = vrot.slane %v2268, 4
      %v2271 = vshll.u32 %v2246, 16
      %v2273 = vrot.slane %v2271, 5
      %v2274 = vsel %vm809, %v2269, %v2273
      %v2276 = vshrl.u32 %v2247, 16
      %v2278 = vrot.slane %v2276, 4
      %v2279 = vshll.u32 %v2247, 16
      %v2281 = vrot.slane %v2279, 5
      %v2282 = vor.u32 %v2278, %v2281
      %v2283 = vrot.slane %v2282, 4
      %v2285 = vshll.u32 %v2248, 16
      %v2287 = vrot.slane %v2285, 5
      %v2288 = vsel %vm809, %v2283, %v2287
      %v2290 = vshrl.u32 %v2249, 16
      %v2292 = vrot.slane %v2290, 4
      %v2293 = vshll.u32 %v2249, 16
      %v2295 = vrot.slane %v2293, 5
      %v2296 = vor.u32 %v2292, %v2295
      %v2297 = vrot.slane %v2296, 4
      %v2299 = vshll.u32 %v2250, 16
      %v2301 = vrot.slane %v2299, 5
      %v2302 = vsel %vm809, %v2297, %v2301
      %v2304 = vshrl.u32 %v2251, 16
      %v2306 = vrot.slane %v2304, 4
      %v2307 = vshll.u32 %v2251, 16
      %v2309 = vrot.slane %v2307, 5
      %v2310 = vor.u32 %v2306, %v2309
      %v2311 = vrot.slane %v2310, 4
      %v2313 = vshll.u32 %v2252, 16
      %v2315 = vrot.slane %v2313, 5
      %v2316 = vsel %vm809, %v2311, %v2315
      %v2318 = vshrl.u32 %v2253, 16
      %v2320 = vrot.slane %v2318, 4
      %v2321 = vshll.u32 %v2253, 16
      %v2323 = vrot.slane %v2321, 5
      %v2324 = vor.u32 %v2320, %v2323
      %v2325 = vrot.slane %v2324, 4
      %v2327 = vshll.u32 %v2254, 16
      %v2329 = vrot.slane %v2327, 5
      %v2330 = vsel %vm809, %v2325, %v2329
      %v2332 = vshrl.u32 %v2255, 16
      %v2334 = vrot.slane %v2332, 4
      %v2335 = vshll.u32 %v2255, 16
      %v2337 = vrot.slane %v2335, 5
      %v2338 = vor.u32 %v2334, %v2337
      %v2339 = vrot.slane %v2338, 4
      %v2341 = vshll.u32 %v2256, 16
      %v2343 = vrot.slane %v2341, 5
      %v2344 = vsel %vm809, %v2339, %v2343
      %v2346 = vshrl.u32 %v2257, 16
      %v2348 = vrot.slane %v2346, 4
      %v2349 = vshll.u32 %v2257, 16
      %v2351 = vrot.slane %v2349, 5
      %v2352 = vor.u32 %v2348, %v2351
      %v2353 = vrot.slane %v2352, 4
      %v2355 = vshll.u32 %v2258, 16
      %v2357 = vrot.slane %v2355, 5
      %v2358 = vsel %vm809, %v2353, %v2357
      %v2360 = vshrl.u32 %v2259, 16
      %v2362 = vrot.slane %v2360, 4
      %v2363 = vshll.u32 %v2259, 16
      %v2365 = vrot.slane %v2363, 5
      %v2366 = vor.u32 %v2362, %v2365
      %v2367 = vrot.slane %v2366, 4
      %v2369 = vshll.u32 %v2260, 16
      %v2371 = vrot.slane %v2369, 5
      %v2372 = vsel %vm809, %v2367, %v2371
      %v2373 = vld [vmem:[%s4 + $0x1c0] sm:$0xf]
      %v2374 = vld [vmem:[%s4 + $0x1c4] sm:$0xf]
      %v2375 = vld [vmem:[%s4 + $0x1c8] sm:$0xf]
      %v2376 = vld [vmem:[%s4 + $0x1cc] sm:$0xf]
      %v2377 = vld [vmem:[%s4 + $0x1d0] sm:$0xf]
      %v2378 = vld [vmem:[%s4 + $0x1d4] sm:$0xf]
      %v2379 = vld [vmem:[%s4 + $0x1d8] sm:$0xf]
      %v2380 = vld [vmem:[%s4 + $0x1dc] sm:$0xf]
      %v2381 = vld [vmem:[%s4 + $0x1e0] sm:$0xf]
      %v2382 = vld [vmem:[%s4 + $0x1e4] sm:$0xf]
      %v2383 = vld [vmem:[%s4 + $0x1e8] sm:$0xf]
      %v2384 = vld [vmem:[%s4 + $0x1ec] sm:$0xf]
      %v2385 = vld [vmem:[%s4 + $0x1f0] sm:$0xf]
      %v2386 = vld [vmem:[%s4 + $0x1f4] sm:$0xf]
      %v2387 = vld [vmem:[%s4 + $0x1f8] sm:$0xf]
      %v2388 = vld [vmem:[%s4 + $0x1fc] sm:$0xf]
      %v2389 = vunpack.c.l.b16 %v2274
      %v2390 = vunpack.c.l.b16 %v2288
      %v2391 = vunpack.c.l.b16 %v2302
      %v2392 = vunpack.c.l.b16 %v2316
      %v2393 = vunpack.c.l.b16 %v2330
      %v2394 = vunpack.c.l.b16 %v2344
      %v2395 = vunpack.c.l.b16 %v2358
      %v2396 = vunpack.c.l.b16 %v2372
      %v2397 = vpack.c.b16 %v2390, %v2389
      %v2398 = vpack.c.b16 %v2392, %v2391
      %v2399 = vpack.c.b16 %v2394, %v2393
      %v2400 = vpack.c.b16 %v2396, %v2395
      %v2421 = vunpack.c.l.b16 %v2373
      %v2422 = vunpack.c.l.b16 %v2374
      %v2423 = vunpack.c.l.b16 %v2375
      %v2424 = vunpack.c.l.b16 %v2376
      %v2425 = vunpack.c.l.b16 %v2377
      %v2426 = vunpack.c.l.b16 %v2378
      %v2427 = vunpack.c.l.b16 %v2379
      %v2428 = vunpack.c.l.b16 %v2380
      %v2429 = vunpack.c.l.b16 %v2381
      %v2430 = vunpack.c.l.b16 %v2382
      %v2431 = vunpack.c.l.b16 %v2383
      %v2432 = vunpack.c.l.b16 %v2384
      %v2433 = vunpack.c.l.b16 %v2385
      %v2434 = vunpack.c.l.b16 %v2386
      %v2435 = vunpack.c.l.b16 %v2387
      %v2436 = vunpack.c.l.b16 %v2388
      %v2437 = vpack.c.b16 %v2422, %v2421
      %v2438 = vpack.c.b16 %v2424, %v2423
      %v2439 = vpack.c.b16 %v2426, %v2425
      %v2440 = vpack.c.b16 %v2428, %v2427
      %v2441 = vpack.c.b16 %v2430, %v2429
      %v2442 = vpack.c.b16 %v2432, %v2431
      %v2443 = vpack.c.b16 %v2434, %v2433
      %v2444 = vpack.c.b16 %v2436, %v2435
      %2453 = vmatprep.subr.bf16.mxu0 0
      %2454 = vmatpush1.bf16.msra.mxu0 %v2437
      %2455 = vmatprep.subr.bf16.mxu0 0
      %2456 = vmatpush1.bf16.msra.mxu0 %v2438
      %2457 = vmatprep.subr.bf16.mxu0 0
      %2458 = vmatpush1.bf16.msra.mxu0 %v2439
      %2459 = vmatprep.subr.bf16.mxu0 0
      %2460 = vmatpush1.bf16.msra.mxu0 %v2440
      %2461 = vmatprep.subr.bf16.mxu0 0
      %2462 = vmatpush1.bf16.msra.mxu0 %v2441
      %2463 = vmatprep.subr.bf16.mxu0 0
      %2464 = vmatpush1.bf16.msra.mxu0 %v2442
      %2465 = vmatprep.subr.bf16.mxu0 0
      %2466 = vmatpush1.bf16.msra.mxu0 %v2443
      %2467 = vmatprep.subr.bf16.mxu0 0
      %2468 = vmatpush1.bf16.msra.mxu0 %v2444
      %2469 = vmatprep.subr.bf16.mxu0 0
      %2470 = vmatpush1.bf16.msra.mxu0 0
      %2471 = vmatprep.subr.bf16.mxu0 0
      %2472 = vmatpush1.bf16.msra.mxu0 0
      %2473 = vmatprep.subr.bf16.mxu0 0
      %2474 = vmatpush1.bf16.msra.mxu0 0
      %2475 = vmatprep.subr.bf16.mxu0 0
      %2476 = vmatpush1.bf16.msra.mxu0 0
      %2477 = vmatprep.subr.bf16.mxu0 0
      %2478 = vmatpush1.bf16.msra.mxu0 0
      %2479 = vmatprep.subr.bf16.mxu0 0
      %2480 = vmatpush1.bf16.msra.mxu0 0
      %2481 = vmatprep.subr.bf16.mxu0 0
      %2482 = vmatpush1.bf16.msra.mxu0 0
      %2483 = vmatprep.subr.bf16.mxu0 0
      %2484 = vmatpush1.bf16.msra.mxu0 0
      %2485 = vmatprep.mubr.bf16.mxu0 0
      %2486 = vmatmul.mubr.bf16.gmra.mrb[0].mxu0 %v2397
      %v2487 = vpop.f32.mrb[0].mxu0
      %v2488 = vadd.f32 0.0, %v2487
      %v2489 = vpop.f32.mrb[0].mxu0
      %v2490 = vpop.f32.mrb[0].mxu0
      %v2491 = vadd.f32 0.0, %v2490
      %v2492 = vpop.f32.mrb[0].mxu0
      %2493 = vmatprep.mubr.bf16.mxu0 0
      %2494 = vmatmul.mubr.bf16.gmra.mrb[0].mxu0 %v2398
      %v2495 = vpop.f32.mrb[0].mxu0
      %v2496 = vadd.f32 0.0, %v2495
      %v2497 = vpop.f32.mrb[0].mxu0
      %v2498 = vpop.f32.mrb[0].mxu0
      %v2499 = vadd.f32 0.0, %v2498
      %v2500 = vpop.f32.mrb[0].mxu0
      %2501 = vmatprep.mubr.bf16.mxu0 0
      %2502 = vmatmul.mubr.bf16.gmra.mrb[0].mxu0 %v2399
      %v2503 = vpop.f32.mrb[0].mxu0
      %v2504 = vadd.f32 0.0, %v2503
      %v2505 = vpop.f32.mrb[0].mxu0
      %v2506 = vpop.f32.mrb[0].mxu0
      %v2507 = vadd.f32 0.0, %v2506
      %v2508 = vpop.f32.mrb[0].mxu0
      %2509 = vmatprep.mubr.bf16.mxu0 0
      %2510 = vmatmul.mubr.bf16.gmra.mrb[0].mxu0 %v2400
      %v2511 = vpop.f32.mrb[0].mxu0
      %v2512 = vadd.f32 0.0, %v2511
      %v2513 = vpop.f32.mrb[0].mxu0
      %v2514 = vpop.f32.mrb[0].mxu0
      %v2515 = vadd.f32 0.0, %v2514
      %v2516 = vpop.f32.mrb[0].mxu0
      %2517 = vdwg.mxu0
      %v2518 = vadd.f32 %v2237, %v2488
      %v2519 = vadd.f32 %v2238, %v2491
      %v2520 = vadd.f32 %v2239, %v2496
      %v2521 = vadd.f32 %v2240, %v2499
      %v2522 = vadd.f32 %v2241, %v2504
      %v2523 = vadd.f32 %v2242, %v2507
      %v2524 = vadd.f32 %v2243, %v2512
      %v2525 = vadd.f32 %v2244, %v2515
      %v2526 = vld [vmem:[%s2075] sm:$0xe]
      %v2527 = vld [vmem:[%s2075 + $0x8] sm:$0xe]
      %v2528 = vld [vmem:[%s2075 + $0x10] sm:$0xe]
      %v2529 = vld [vmem:[%s2075 + $0x18] sm:$0xe]
      %v2530 = vld [vmem:[%s2075 + $0x20] sm:$0xe]
      %v2531 = vld [vmem:[%s2075 + $0x28] sm:$0xe]
      %v2532 = vld [vmem:[%s2075 + $0x30] sm:$0xe]
      %v2533 = vld [vmem:[%s2075 + $0x38] sm:$0xe]
      %v2550 = vrot.slane %v2526, 5
      %v2551 = vrot.slane %v2550, 4
      %v2552 = vrot.slane %v2246, 5
      %v2553 = vsel %vm1230, %v2551, %v2552
      %v2554 = vrot.slane %v2527, 5
      %v2555 = vrot.slane %v2554, 4
      %v2556 = vrot.slane %v2248, 5
      %v2557 = vsel %vm1230, %v2555, %v2556
      %v2558 = vrot.slane %v2528, 5
      %v2559 = vrot.slane %v2558, 4
      %v2560 = vrot.slane %v2250, 5
      %v2561 = vsel %vm1230, %v2559, %v2560
      %v2562 = vrot.slane %v2529, 5
      %v2563 = vrot.slane %v2562, 4
      %v2564 = vrot.slane %v2252, 5
      %v2565 = vsel %vm1230, %v2563, %v2564
      %v2566 = vrot.slane %v2530, 5
      %v2567 = vrot.slane %v2566, 4
      %v2568 = vrot.slane %v2254, 5
      %v2569 = vsel %vm1230, %v2567, %v2568
      %v2570 = vrot.slane %v2531, 5
      %v2571 = vrot.slane %v2570, 4
      %v2572 = vrot.slane %v2256, 5
      %v2573 = vsel %vm1230, %v2571, %v2572
      %v2574 = vrot.slane %v2532, 5
      %v2575 = vrot.slane %v2574, 4
      %v2576 = vrot.slane %v2258, 5
      %v2577 = vsel %vm1230, %v2575, %v2576
      %v2578 = vrot.slane %v2533, 5
      %v2579 = vrot.slane %v2578, 4
      %v2580 = vrot.slane %v2260, 5
      %v2581 = vsel %vm1230, %v2579, %v2580
      %v2582 = vld [vmem:[%s4 + $0x200] sm:$0xf]
      %v2583 = vld [vmem:[%s4 + $0x204] sm:$0xf]
      %v2584 = vld [vmem:[%s4 + $0x208] sm:$0xf]
      %v2585 = vld [vmem:[%s4 + $0x20c] sm:$0xf]
      %v2586 = vld [vmem:[%s4 + $0x210] sm:$0xf]
      %v2587 = vld [vmem:[%s4 + $0x214] sm:$0xf]
      %v2588 = vld [vmem:[%s4 + $0x218] sm:$0xf]
      %v2589 = vld [vmem:[%s4 + $0x21c] sm:$0xf]
      %v2590 = vld [vmem:[%s4 + $0x220] sm:$0xf]
      %v2591 = vld [vmem:[%s4 + $0x224] sm:$0xf]
      %v2592 = vld [vmem:[%s4 + $0x228] sm:$0xf]
      %v2593 = vld [vmem:[%s4 + $0x22c] sm:$0xf]
      %v2594 = vld [vmem:[%s4 + $0x230] sm:$0xf]
      %v2595 = vld [vmem:[%s4 + $0x234] sm:$0xf]
      %v2596 = vld [vmem:[%s4 + $0x238] sm:$0xf]
      %v2597 = vld [vmem:[%s4 + $0x23c] sm:$0xf]
      %v2598 = vunpack.c.l.b16 %v2553
      %v2599 = vunpack.c.l.b16 %v2557
      %v2600 = vunpack.c.l.b16 %v2561
      %v2601 = vunpack.c.l.b16 %v2565
      %v2602 = vunpack.c.l.b16 %v2569
      %v2603 = vunpack.c.l.b16 %v2573
      %v2604 = vunpack.c.l.b16 %v2577
      %v2605 = vunpack.c.l.b16 %v2581
      %v2606 = vpack.c.b16 %v2599, %v2598
      %v2607 = vpack.c.b16 %v2601, %v2600
      %v2608 = vpack.c.b16 %v2603, %v2602
      %v2609 = vpack.c.b16 %v2605, %v2604
      %v2630 = vunpack.c.l.b16 %v2582
      %v2631 = vunpack.c.l.b16 %v2583
      %v2632 = vunpack.c.l.b16 %v2584
      %v2633 = vunpack.c.l.b16 %v2585
      %v2634 = vunpack.c.l.b16 %v2586
      %v2635 = vunpack.c.l.b16 %v2587
      %v2636 = vunpack.c.l.b16 %v2588
      %v2637 = vunpack.c.l.b16 %v2589
      %v2638 = vunpack.c.l.b16 %v2590
      %v2639 = vunpack.c.l.b16 %v2591
      %v2640 = vunpack.c.l.b16 %v2592
      %v2641 = vunpack.c.l.b16 %v2593
      %v2642 = vunpack.c.l.b16 %v2594
      %v2643 = vunpack.c.l.b16 %v2595
      %v2644 = vunpack.c.l.b16 %v2596
      %v2645 = vunpack.c.l.b16 %v2597
      %v2646 = vpack.c.b16 %v2631, %v2630
      %v2647 = vpack.c.b16 %v2633, %v2632
      %v2648 = vpack.c.b16 %v2635, %v2634
      %v2649 = vpack.c.b16 %v2637, %v2636
      %v2650 = vpack.c.b16 %v2639, %v2638
      %v2651 = vpack.c.b16 %v2641, %v2640
      %v2652 = vpack.c.b16 %v2643, %v2642
      %v2653 = vpack.c.b16 %v2645, %v2644
      %2662 = vmatprep.subr.bf16.mxu0 0
      %2663 = vmatpush1.bf16.msra.mxu0 %v2646
      %2664 = vmatprep.subr.bf16.mxu0 0
      %2665 = vmatpush1.bf16.msra.mxu0 %v2647
      %2666 = vmatprep.subr.bf16.mxu0 0
      %2667 = vmatpush1.bf16.msra.mxu0 %v2648
      %2668 = vmatprep.subr.bf16.mxu0 0
      %2669 = vmatpush1.bf16.msra.mxu0 %v2649
      %2670 = vmatprep.subr.bf16.mxu0 0
      %2671 = vmatpush1.bf16.msra.mxu0 %v2650
      %2672 = vmatprep.subr.bf16.mxu0 0
      %2673 = vmatpush1.bf16.msra.mxu0 %v2651
      %2674 = vmatprep.subr.bf16.mxu0 0
      %2675 = vmatpush1.bf16.msra.mxu0 %v2652
      %2676 = vmatprep.subr.bf16.mxu0 0
      %2677 = vmatpush1.bf16.msra.mxu0 %v2653
      %2678 = vmatprep.subr.bf16.mxu0 0
      %2679 = vmatpush1.bf16.msra.mxu0 0
      %2680 = vmatprep.subr.bf16.mxu0 0
      %2681 = vmatpush1.bf16.msra.mxu0 0
      %2682 = vmatprep.subr.bf16.mxu0 0
      %2683 = vmatpush1.bf16.msra.mxu0 0
      %2684 = vmatprep.subr.bf16.mxu0 0
      %2685 = vmatpush1.bf16.msra.mxu0 0
      %2686 = vmatprep.subr.bf16.mxu0 0
      %2687 = vmatpush1.bf16.msra.mxu0 0
      %2688 = vmatprep.subr.bf16.mxu0 0
      %2689 = vmatpush1.bf16.msra.mxu0 0
      %2690 = vmatprep.subr.bf16.mxu0 0
      %2691 = vmatpush1.bf16.msra.mxu0 0
      %2692 = vmatprep.subr.bf16.mxu0 0
      %2693 = vmatpush1.bf16.msra.mxu0 0
      %2694 = vmatprep.mubr.bf16.mxu0 0
      %2695 = vmatmul.mubr.bf16.gmra.mrb[0].mxu0 %v2606
      %v2696 = vpop.f32.mrb[0].mxu0
      %v2697 = vadd.f32 0.0, %v2696
      %v2698 = vpop.f32.mrb[0].mxu0
      %v2699 = vpop.f32.mrb[0].mxu0
      %v2700 = vadd.f32 0.0, %v2699
      %v2701 = vpop.f32.mrb[0].mxu0
      %2702 = vmatprep.mubr.bf16.mxu0 0
      %2703 = vmatmul.mubr.bf16.gmra.mrb[0].mxu0 %v2607
      %v2704 = vpop.f32.mrb[0].mxu0
      %v2705 = vadd.f32 0.0, %v2704
      %v2706 = vpop.f32.mrb[0].mxu0
      %v2707 = vpop.f32.mrb[0].mxu0
      %v2708 = vadd.f32 0.0, %v2707
      %v2709 = vpop.f32.mrb[0].mxu0
      %2710 = vmatprep.mubr.bf16.mxu0 0
      %2711 = vmatmul.mubr.bf16.gmra.mrb[0].mxu0 %v2608
      %v2712 = vpop.f32.mrb[0].mxu0
      %v2713 = vadd.f32 0.0, %v2712
      %v2714 = vpop.f32.mrb[0].mxu0
      %v2715 = vpop.f32.mrb[0].mxu0
      %v2716 = vadd.f32 0.0, %v2715
      %v2717 = vpop.f32.mrb[0].mxu0
      %2718 = vmatprep.mubr.bf16.mxu0 0
      %2719 = vmatmul.mubr.bf16.gmra.mrb[0].mxu0 %v2609
      %v2720 = vpop.f32.mrb[0].mxu0
      %v2721 = vadd.f32 0.0, %v2720
      %v2722 = vpop.f32.mrb[0].mxu0
      %v2723 = vpop.f32.mrb[0].mxu0
      %v2724 = vadd.f32 0.0, %v2723
      %v2725 = vpop.f32.mrb[0].mxu0
      %2726 = vdwg.mxu0
      %v2727 = vadd.f32 %v2518, %v2697
      %v2728 = vadd.f32 %v2519, %v2700
      %v2729 = vadd.f32 %v2520, %v2705
      %v2730 = vadd.f32 %v2521, %v2708
      %v2731 = vadd.f32 %v2522, %v2713
      %v2732 = vadd.f32 %v2523, %v2716
      %v2733 = vadd.f32 %v2524, %v2721
      %v2734 = vadd.f32 %v2525, %v2724
      %v2735 = vpack.c.bf16 %v2727, %v2727
      %v2736 = vpack.c.bf16 %v2728, %v2728
      %v2737 = vpack.c.bf16 %v2729, %v2729
      %v2738 = vpack.c.bf16 %v2730, %v2730
      %v2739 = vpack.c.bf16 %v2731, %v2731
      %v2740 = vpack.c.bf16 %v2732, %v2732
      %v2741 = vpack.c.bf16 %v2733, %v2733
      %v2742 = vpack.c.bf16 %v2734, %v2734
      %2743 = vst [vmem:[%s417] sm:$0xf] %v2735
      %2744 = vst [vmem:[%s417 + $0x4] sm:$0xf] %v2736
      %2745 = vst [vmem:[%s417 + $0x8] sm:$0xf] %v2737
      %2746 = vst [vmem:[%s417 + $0xc] sm:$0xf] %v2738
      %2747 = vst [vmem:[%s417 + $0x10] sm:$0xf] %v2739
      %2748 = vst [vmem:[%s417 + $0x14] sm:$0xf] %v2740
      %2749 = vst [vmem:[%s417 + $0x18] sm:$0xf] %v2741
      %2750 = vst [vmem:[%s417 + $0x1c] sm:$0xf] %v2742
      %v2751 = vadd.f32 %v2727, %v2728
      %v2752 = vadd.f32 %v2751, %v2729
      %v2753 = vadd.f32 %v2752, %v2730
      %v2754 = vadd.f32 %v2753, %v2731
      %v2755 = vadd.f32 %v2754, %v2732
      %v2756 = vadd.f32 %v2755, %v2733
      %v2757 = vadd.f32 %v2756, %v2734
      %v2758 = vrot.slane %v2757, 4
      %v2759 = vadd.f32 %v2757, %v2758
      %v2760 = vrot.slane %v2759, 2
      %v2761 = vadd.f32 %v2759, %v2760
      %v2762 = vrot.slane %v2761, 1
      %v2763 = vadd.f32 %v2761, %v2762
      %2764 = vst [vmem:[%s423] sm:$0x1] %v2763
      %v2765 = vmul.f32 %v2727, %v2727
      %v2766 = vmul.f32 %v2728, %v2728
      %v2767 = vmul.f32 %v2729, %v2729
      %v2768 = vmul.f32 %v2730, %v2730
      %v2769 = vmul.f32 %v2731, %v2731
      %v2770 = vmul.f32 %v2732, %v2732
      %v2771 = vmul.f32 %v2733, %v2733
      %v2772 = vmul.f32 %v2734, %v2734
      %v2773 = vadd.f32 %v2765, %v2766
      %v2774 = vadd.f32 %v2773, %v2767
      %v2775 = vadd.f32 %v2774, %v2768
      %v2776 = vadd.f32 %v2775, %v2769
      %v2777 = vadd.f32 %v2776, %v2770
      %v2778 = vadd.f32 %v2777, %v2771
      %v2779 = vadd.f32 %v2778, %v2772
      %v2780 = vrot.slane %v2779, 4
      %v2781 = vadd.f32 %v2779, %v2780
      %v2782 = vrot.slane %v2781, 2
      %v2783 = vadd.f32 %v2781, %v2782
      %v2784 = vrot.slane %v2783, 1
      %v2785 = vadd.f32 %v2783, %v2784
      %2786 = vst [vmem:[%s423 + $0x1] sm:$0x1] %v2785
      %s2787 = smul.u32 8, %s23
      %p2788 = scmp.lt.s32.totalorder %s22, 1
      %s2789 = scalar_select %p2788, %s22, 1
      %p2790 = scmp.lt.s32.totalorder %s2787, 7
      %s2791 = scalar_select %p2790, %s2787, 7
      %s2792 = smul.addr %s2789, 8
      %s2793 = sadd.s32 %s2791, %s2792
      %s2794 = smul.addr %s2793, 4
      %s2795 = scalar_lea.vmem %s5, %s2794
      %s2796 = sadd.s32 %s22, %s23
      %p2797 = scmp.lt.s32.totalorder %s2796, 1
      %s2798 = scalar_select %p2797, %s2796, 1
      %s2799 = smul.addr %s2798, 2
      %s2800 = scalar_lea.vmem %s6, %s2799
      // Predicated region
      $region49: #{down_forward.4} parent=39 // pred_check
        %p2801 = pneg %p192
      $region50: #{down_forward.4} parent=39 // pred_check_branch
        %2803 = sbr.rel (%p2801) target = $region52
      $region51: #{down_forward.4} parent=39 // pred_region
        %s2804 = smul.u32 8, %s23
      $region52: #{down_forward.4} parent=39 // pred_fallthru
        _
      // Predicated region
      $region53: #{down_forward.4} parent=39 // pred_check
        %p2805 = pneg %p220
      $region54: #{down_forward.4} parent=39 // pred_check_branch
        %2807 = sbr.rel (%p2805) target = $region56
      $region55: #{down_forward.4} parent=39 // pred_region
        %s2808 = sadd.s32 %s22, %s23
      $region56: #{down_forward.4} parent=39 // pred_fallthru
        _
    $region40: #{down_forward.4} parent=5 // pred_fallthru
      _
    %p2809 = scmp.le.s32.totalorder 2, %s13
    // Predicated region
    $region57: #{down_forward.4} parent=5 // pred_check
      %p2810 = pneg %p2809
    $region58: #{down_forward.4} parent=5 // pred_check_branch
      %2812 = sbr.rel (%p2810) target = $region60
    $region59: #{down_forward.4} parent=5 // pred_region
      %s2813 = ssub.s32 %s13, 2
      // Predicated region
      $region61: #{down_forward.4} parent=59 // pred_check
        %p2814 = pneg %p198
      $region62: #{down_forward.4} parent=59 // pred_check_branch
        %2816 = sbr.rel (%p2814) target = $region64
      $region63: #{down_forward.4} parent=59 // pred_region
        %s2817 = smul.u32 8, %s25
        %p2818 = scmp.lt.s32.totalorder %s24, 1
        %s2819 = scalar_select %p2818, %s24, 1
        %p2820 = scmp.lt.s32.totalorder %s2817, 7
        %s2821 = scalar_select %p2820, %s2817, 7
        %s2822 = smul.addr %s2819, 8
        %s2823 = sadd.s32 %s2821, %s2822
        %s2824 = smul.addr %s2823, 4
        %s2825 = scalar_lea.vmem %s5, %s2824
      $region64: #{down_forward.4} parent=59 // pred_fallthru
        _
      // Predicated region
      $region65: #{down_forward.4} parent=59 // pred_check
        %p2826 = pneg %p226
      $region66: #{down_forward.4} parent=59 // pred_check_branch
        %2828 = sbr.rel (%p2826) target = $region68
      $region67: #{down_forward.4} parent=59 // pred_region
        %s2829 = sadd.s32 %s24, %s25
        %p2830 = scmp.lt.s32.totalorder %s2829, 1
        %s2831 = scalar_select %p2830, %s2829, 1
        %s2832 = smul.addr %s2831, 2
        %s2833 = scalar_lea.vmem %s6, %s2832
      $region68: #{down_forward.4} parent=59 // pred_fallthru
        _
    $region60: #{down_forward.4} parent=5 // pred_fallthru
      _
  $region6: #{down_forward.4} parent=0 // loop_footer
    %s17 = sadd.s32 1, %s13
  $region7: #{down_forward.4} parent=0 // loop_footer_branch
    %12 = sbr.rel target = $region3
  $region8: #{down_forward.4} parent=0 // loop_exit
    _

// kernel: down_forward.3
$region0: #{down_forward.3}
  #allocation0 [shape = 'u32[]', space=smem, size = 0x4, offset = 0x4, fixed_abs, tag = 'smem constant byte address 0x4 - core index']
  #allocation1 [shape = 'u32[144,128]{1,0:T(1,128)}', space=vmem, size = 0x12000, scoped, tag = 'internal scratch']
  #allocation2 [shape = 'bf16[10,10,128]{2,1,0:T(8,128)(2,1)}', space=vmem, size = 0xa000, scoped, tag = 'scratch operand']
  %s0 = inlined_call_operand.vmem [shape: bf16[2,8,2,8,256], index: 0, kind: input, shape index: {}, may-alias: {0,1,2}]
  %s1 = inlined_call_operand.vmem [shape: bf16[2,8,2,8,256], index: 1, kind: input, shape index: {}, may-alias: {0,1,2}]
  %s2 = inlined_call_operand.vmem [shape: bf16[2,8,2,8,256], index: 2, kind: input, shape index: {}, may-alias: {0,1,2}]
  %s3 = inlined_call_operand.vmem [shape: bf16[1152,128], index: 3, kind: input, shape index: {}]
  %s4 = inlined_call_operand.vmem [shape: bf16[2,8,8,128], index: 4, kind: output, shape index: {0}]
  %s5 = inlined_call_operand.vmem [shape: f32[2,2,128], index: 5, kind: output, shape index: {1}]
  %6 = xla_tuple %s4, %s5
  %s7 = sld [smem:[#allocation0]]
  $region65: #{down_forward.3} parent=0
    _
  %s9 = ssub.s32 1, %s7
  %s10 = scalar_select 0, %s9, %s7
  loop: start=0, step=1, limit=4
  $region2: #{down_forward.3} parent=0 // loop_pre_header
    _
  $region3: #{down_forward.3} parent=0 // loop_header
    %s12 = sphi 0, %s16
    %p13 = scmp.ge.s32.totalorder %s12, 4
    %s19 = sphi 0, %s31
    %s20 = sphi 0, %s27
    %s21 = sphi 0, %s19
    %s22 = sphi 0, %s20
    %s23 = sphi 0, %s21
    %s24 = sphi 0, %s22
    %s36 = sphi 0, %s38
    %s39 = sphi 0, %s36
    %s40 = sphi 0, %s39
    %s56 = sphi 0, %s40
    %s72 = sphi 0, %s74
    %s75 = sphi 0, %s72
    %s76 = sphi 0, %s75
    %s92 = sphi 0, %s76
    %s108 = sphi 0, %s110
    %s111 = sphi 0, %s108
    %s112 = sphi 0, %s111
    %s128 = sphi 0, %s112
    %s132 = sphi 0, %s132
    %s134 = sphi 0, %s132
    %s135 = sphi 0, %s134
    %s149 = sphi 0, %s135
    %s157 = sphi 0, %s159
    %s160 = sphi 0, %s157
    %s161 = sphi 0, %s160
    %s177 = sphi 0, %s161
    %s185 = sphi 0, %s187
    %s188 = sphi 0, %s185
    %s189 = sphi 0, %s188
    %s205 = sphi 0, %s189
  $region4: #{down_forward.3} parent=0 // loop_header_branch
    %15 = sbr.rel (%p13) target = $region8
  $region5: #{down_forward.3} parent=0 // loop_body
    %s17 = ssub.s32 %s12, 1
    %s18 = ssub.s32 %s12, 2
    %s25 = sadd.s32 1, %s20
    %p26 = scmp.ge.s32.totalorder %s25, 1
    %s27 = scalar_select %p26, 0, %s25
    %s28 = sadd.s32 1, %s19
    %s29 = scalar_select %p26, %s28, %s19
    %p30 = scmp.ge.s32.totalorder %s29, 2
    %s31 = scalar_select %p30, 0, %s29
    %s32 = ssub.s32 %s19, %s31
    %s33 = ssub.s32 %s20, %s27
    %s34 = sor.u32 %s32, %s33
    %p35 = scmp.eq.s32.totalorder %s34, 0
    %s37 = sadd.s32 %s36, 1
    %s38 = scalar_select %p35, %s36, %s37
    %p41 = pneg %p35
    %p42 = scmp.eq.s32.totalorder %s12, 1
    %p43 = por %p41, %p42
    %p44 = scmp.ne.s32.totalorder %s36, %s39
    %p45 = scmp.eq.s32.totalorder %s12, 0
    %p46 = por %p44, %p45
    %p47 = scmp.ne.s32.totalorder %s36, %s39
    %p48 = scmp.eq.s32.totalorder %s17, 1
    %p49 = por %p47, %p48
    %p50 = scmp.ne.s32.totalorder %s39, %s40
    %p51 = scmp.eq.s32.totalorder %s17, 0
    %p52 = por %p50, %p51
    %p53 = scmp.ne.s32.totalorder %s39, %s40
    %p54 = scmp.eq.s32.totalorder %s18, 1
    %p55 = por %p53, %p54
    %p57 = scmp.ne.s32.totalorder %s40, %s56
    %p58 = scmp.eq.s32.totalorder %s18, 0
    %p59 = por %p57, %p58
    %s60 = smul.u32 %s20, 8
    %s61 = ssub.s32 %s60, 1
    %p62 = scmp.gt.s32.totalorder %s61, 0
    %s63 = scalar_select %p62, %s61, 0
    %s64 = smul.u32 %s27, 8
    %s65 = ssub.s32 %s64, 1
    %p66 = scmp.gt.s32.totalorder %s65, 0
    %s67 = scalar_select %p66, %s65, 0
    %s68 = ssub.s32 %s19, %s31
    %s69 = ssub.s32 %s63, %s67
    %s70 = sor.u32 %s68, %s69
    %p71 = scmp.eq.s32.totalorder %s70, 0
    %s73 = sadd.s32 %s72, 1
    %s74 = scalar_select %p71, %s72, %s73
    %p77 = pneg %p71
    %p78 = scmp.eq.s32.totalorder %s12, 1
    %p79 = por %p77, %p78
    %p80 = scmp.ne.s32.totalorder %s72, %s75
    %p81 = scmp.eq.s32.totalorder %s12, 0
    %p82 = por %p80, %p81
    %p83 = scmp.ne.s32.totalorder %s72, %s75
    %p84 = scmp.eq.s32.totalorder %s17, 1
    %p85 = por %p83, %p84
    %p86 = scmp.ne.s32.totalorder %s75, %s76
    %p87 = scmp.eq.s32.totalorder %s17, 0
    %p88 = por %p86, %p87
    %p89 = scmp.ne.s32.totalorder %s75, %s76
    %p90 = scmp.eq.s32.totalorder %s18, 1
    %p91 = por %p89, %p90
    %p93 = scmp.ne.s32.totalorder %s76, %s92
    %p94 = scmp.eq.s32.totalorder %s18, 0
    %p95 = por %p93, %p94
    %s96 = smul.u32 %s20, 8
    %s97 = sadd.s32 %s96, 8
    %p98 = scmp.lt.s32.totalorder %s97, 7
    %s99 = scalar_select %p98, %s97, 7
    %s100 = smul.u32 %s27, 8
    %s101 = sadd.s32 %s100, 8
    %p102 = scmp.lt.s32.totalorder %s101, 7
    %s103 = scalar_select %p102, %s101, 7
    %s104 = ssub.s32 %s19, %s31
    %s105 = ssub.s32 %s99, %s103
    %s106 = sor.u32 %s104, %s105
    %p107 = scmp.eq.s32.totalorder %s106, 0
    %s109 = sadd.s32 %s108, 1
    %s110 = scalar_select %p107, %s108, %s109
    %p113 = pneg %p107
    %p114 = scmp.eq.s32.totalorder %s12, 1
    %p115 = por %p113, %p114
    %p116 = scmp.ne.s32.totalorder %s108, %s111
    %p117 = scmp.eq.s32.totalorder %s12, 0
    %p118 = por %p116, %p117
    %p119 = scmp.ne.s32.totalorder %s108, %s111
    %p120 = scmp.eq.s32.totalorder %s17, 1
    %p121 = por %p119, %p120
    %p122 = scmp.ne.s32.totalorder %s111, %s112
    %p123 = scmp.eq.s32.totalorder %s17, 0
    %p124 = por %p122, %p123
    %p125 = scmp.ne.s32.totalorder %s111, %s112
    %p126 = scmp.eq.s32.totalorder %s18, 1
    %p127 = por %p125, %p126
    %p129 = scmp.ne.s32.totalorder %s112, %s128
    %p130 = scmp.eq.s32.totalorder %s18, 0
    %p131 = por %p129, %p130
    %s133 = sadd.s32 %s132, 1
    %p136 = scmp.eq.s32.totalorder %s12, 1
    %p137 = scmp.ne.s32.totalorder %s132, %s134
    %p138 = scmp.eq.s32.totalorder %s12, 0
    %p139 = por %p137, %p138
    %p140 = scmp.ne.s32.totalorder %s132, %s134
    %p141 = scmp.eq.s32.totalorder %s17, 1
    %p142 = por %p140, %p141
    %p143 = scmp.ne.s32.totalorder %s134, %s135
    %p144 = scmp.eq.s32.totalorder %s17, 0
    %p145 = por %p143, %p144
    %p146 = scmp.ne.s32.totalorder %s134, %s135
    %p147 = scmp.eq.s32.totalorder %s18, 1
    %p148 = por %p146, %p147
    %p150 = scmp.ne.s32.totalorder %s135, %s149
    %p151 = scmp.eq.s32.totalorder %s18, 0
    %p152 = por %p150, %p151
    %s153 = ssub.s32 %s19, %s31
    %s154 = ssub.s32 %s20, %s27
    %s155 = sor.u32 %s153, %s154
    %p156 = scmp.eq.s32.totalorder %s155, 0
    %s158 = sadd.s32 %s157, 1
    %s159 = scalar_select %p156, %s157, %s158
    %p162 = pneg %p156
    %p163 = scmp.eq.s32.totalorder %s12, 1
    %p164 = por %p162, %p163
    %p165 = scmp.ne.s32.totalorder %s157, %s160
    %p166 = scmp.eq.s32.totalorder %s12, 0
    %p167 = por %p165, %p166
    %p168 = scmp.ne.s32.totalorder %s157, %s160
    %p169 = scmp.eq.s32.totalorder %s17, 1
    %p170 = por %p168, %p169
    %p171 = scmp.ne.s32.totalorder %s160, %s161
    %p172 = scmp.eq.s32.totalorder %s17, 0
    %p173 = por %p171, %p172
    %p174 = scmp.ne.s32.totalorder %s160, %s161
    %p175 = scmp.eq.s32.totalorder %s18, 1
    %p176 = por %p174, %p175
    %p178 = scmp.ne.s32.totalorder %s161, %s177
    %p179 = scmp.eq.s32.totalorder %s18, 0
    %p180 = por %p178, %p179
    %s181 = sadd.s32 %s19, %s20
    %s182 = sadd.s32 %s31, %s27
    %s183 = ssub.s32 %s181, %s182
    %p184 = scmp.eq.s32.totalorder %s183, 0
    %s186 = sadd.s32 %s185, 1
    %s187 = scalar_select %p184, %s185, %s186
    %p190 = pneg %p184
    %p191 = scmp.eq.s32.totalorder %s12, 1
    %p192 = por %p190, %p191
    %p193 = scmp.ne.s32.totalorder %s185, %s188
    %p194 = scmp.eq.s32.totalorder %s12, 0
    %p195 = por %p193, %p194
    %p196 = scmp.ne.s32.totalorder %s185, %s188
    %p197 = scmp.eq.s32.totalorder %s17, 1
    %p198 = por %p196, %p197
    %p199 = scmp.ne.s32.totalorder %s188, %s189
    %p200 = scmp.eq.s32.totalorder %s17, 0
    %p201 = por %p199, %p200
    %p202 = scmp.ne.s32.totalorder %s188, %s189
    %p203 = scmp.eq.s32.totalorder %s18, 1
    %p204 = por %p202, %p203
    %p206 = scmp.ne.s32.totalorder %s189, %s205
    %p207 = scmp.eq.s32.totalorder %s18, 0
    %p208 = por %p206, %p207
    %p209 = scmp.le.s32.totalorder 1, %s12
    %p210 = scmp.lt.s32.totalorder %s12, 3
    %p211 = pnand %p209, %p210
    %p212 = pneg %p211
    // Predicated region
    $region9: #{down_forward.3} parent=5 // pred_check
      _
    $region10: #{down_forward.3} parent=5 // pred_check_branch
      %214 = sbr.rel (%p211) target = $region12
    $region11: #{down_forward.3} parent=5 // pred_region
      %s215 = ssub.s32 %s12, 1
      // Predicated region
      $region13: #{down_forward.3} parent=11 // pred_check
        %p216 = pneg %p145
      $region14: #{down_forward.3} parent=11 // pred_check_branch
        %218 = sbr.rel (%p216) target = $region16
      $region15: #{down_forward.3} parent=11 // pred_region
        _
      $region16: #{down_forward.3} parent=11 // pred_fallthru
        _
    $region12: #{down_forward.3} parent=5 // pred_fallthru
      _
    %p219 = scmp.lt.s32.totalorder %s12, 2
    // Predicated region
    $region17: #{down_forward.3} parent=5 // pred_check
      %p220 = pneg %p219
    $region18: #{down_forward.3} parent=5 // pred_check_branch
      %222 = sbr.rel (%p220) target = $region20
    $region19: #{down_forward.3} parent=5 // pred_region
      // Predicated region
      $region21: #{down_forward.3} parent=19 // pred_check
        %p223 = pneg %p46
      $region22: #{down_forward.3} parent=19 // pred_check_branch
        %225 = sbr.rel (%p223) target = $region24
      $region23: #{down_forward.3} parent=19 // pred_region
        %s226 = smul.u32 8, %s20
        %p227 = scmp.lt.s32.totalorder %s19, 1
        %s228 = scalar_select %p227, %s19, 1
        %p229 = scmp.lt.s32.totalorder %s226, 7
        %s230 = scalar_select %p229, %s226, 7
        %s231 = smul.addr %s230, 4
        %s232 = smul.addr %s228, 32
        %s233 = sadd.s32 %s231, %s232
        %s234 = smul.addr %s233, 4
        %s235 = scalar_lea.vmem %s0, %s234
        %s236 = smul.u32 8, %s20
      $region24: #{down_forward.3} parent=19 // pred_fallthru
        _
      // Predicated region
      $region25: #{down_forward.3} parent=19 // pred_check
        %p237 = pneg %p82
      $region26: #{down_forward.3} parent=19 // pred_check_branch
        %239 = sbr.rel (%p237) target = $region28
      $region27: #{down_forward.3} parent=19 // pred_region
        %s240 = smul.u32 %s20, 8
        %s241 = ssub.s32 %s240, 1
        %p242 = scmp.gt.s32.totalorder %s241, 0
        %s243 = scalar_select %p242, %s241, 0
        %p244 = scmp.lt.s32.totalorder %s19, 1
        %s245 = scalar_select %p244, %s19, 1
        %p246 = scmp.lt.s32.totalorder %s243, 7
        %s247 = scalar_select %p246, %s243, 7
        %s248 = smul.addr %s247, 4
        %s249 = smul.addr %s245, 32
        %s250 = sadd.s32 %s248, %s249
        %s251 = smul.addr %s250, 4
        %s252 = scalar_lea.vmem %s1, %s251
        %s253 = smul.u32 %s20, 8
        %s254 = ssub.s32 %s253, 1
        %p255 = scmp.gt.s32.totalorder %s254, 0
        %s256 = scalar_select %p255, %s254, 0
      $region28: #{down_forward.3} parent=19 // pred_fallthru
        _
      // Predicated region
      $region29: #{down_forward.3} parent=19 // pred_check
        %p257 = pneg %p118
      $region30: #{down_forward.3} parent=19 // pred_check_branch
        %259 = sbr.rel (%p257) target = $region32
      $region31: #{down_forward.3} parent=19 // pred_region
        %s260 = smul.u32 %s20, 8
        %s261 = sadd.s32 %s260, 8
        %p262 = scmp.lt.s32.totalorder %s261, 7
        %s263 = scalar_select %p262, %s261, 7
        %p264 = scmp.lt.s32.totalorder %s19, 1
        %s265 = scalar_select %p264, %s19, 1
        %p266 = scmp.lt.s32.totalorder %s263, 7
        %s267 = scalar_select %p266, %s263, 7
        %s268 = smul.addr %s267, 4
        %s269 = smul.addr %s265, 32
        %s270 = sadd.s32 %s268, %s269
        %s271 = smul.addr %s270, 4
        %s272 = scalar_lea.vmem %s2, %s271
        %s273 = smul.u32 %s20, 8
        %s274 = sadd.s32 %s273, 8
        %p275 = scmp.lt.s32.totalorder %s274, 7
        %s276 = scalar_select %p275, %s274, 7
      $region32: #{down_forward.3} parent=19 // pred_fallthru
        _
    $region20: #{down_forward.3} parent=5 // pred_fallthru
      _
    %p277 = scmp.le.s32.totalorder 1, %s12
    %p278 = scmp.lt.s32.totalorder %s12, 3
    %p279 = pnand %p277, %p278
    %p280 = pneg %p279
    // Predicated region
    $region33: #{down_forward.3} parent=5 // pred_check
      _
    $region34: #{down_forward.3} parent=5 // pred_check_branch
      %282 = sbr.rel (%p279) target = $region36
    $region35: #{down_forward.3} parent=5 // pred_region
      %s283 = ssub.s32 %s12, 1
      %s284 = smul.u32 8, %s22
      %p285 = scmp.lt.s32.totalorder %s21, 1
      %s286 = scalar_select %p285, %s21, 1
      %p287 = scmp.lt.s32.totalorder %s284, 7
      %s288 = scalar_select %p287, %s284, 7
      %s289 = smul.addr %s288, 4
      %s290 = smul.addr %s286, 32
      %s291 = sadd.s32 %s289, %s290
      %s292 = smul.addr %s291, 4
      %s293 = scalar_lea.vmem %s0, %s292
      %p294 = pneg %p52
      %p295 = pneg %p49
      %s296 = smul.u32 %s22, 8
      %s297 = ssub.s32 %s296, 1
      %p298 = scmp.gt.s32.totalorder %s297, 0
      %s299 = scalar_select %p298, %s297, 0
      %p300 = scmp.lt.s32.totalorder %s21, 1
      %s301 = scalar_select %p300, %s21, 1
      %p302 = scmp.lt.s32.totalorder %s299, 7
      %s303 = scalar_select %p302, %s299, 7
      %s304 = smul.addr %s303, 4
      %s305 = smul.addr %s301, 32
      %s306 = sadd.s32 %s304, %s305
      %s307 = smul.addr %s306, 4
      %s308 = scalar_lea.vmem %s1, %s307
      %p309 = pneg %p88
      %p310 = pneg %p85
      %s311 = smul.u32 %s22, 8
      %s312 = sadd.s32 %s311, 8
      %p313 = scmp.lt.s32.totalorder %s312, 7
      %s314 = scalar_select %p313, %s312, 7
      %p315 = scmp.lt.s32.totalorder %s21, 1
      %s316 = scalar_select %p315, %s21, 1
      %p317 = scmp.lt.s32.totalorder %s314, 7
      %s318 = scalar_select %p317, %s314, 7
      %s319 = smul.addr %s318, 4
      %s320 = smul.addr %s316, 32
      %s321 = sadd.s32 %s319, %s320
      %s322 = smul.addr %s321, 4
      %s323 = scalar_lea.vmem %s2, %s322
      %p324 = pneg %p124
      %p325 = pneg %p121
      %p326 = pneg %p145
      %p327 = pneg %p142
      %p328 = pneg %p173
      %p329 = pneg %p170
      %s330 = smul.u32 8, %s22
      %p331 = scmp.lt.s32.totalorder %s21, 1
      %s332 = scalar_select %p331, %s21, 1
      %p333 = scmp.lt.s32.totalorder %s330, 7
      %s334 = scalar_select %p333, %s330, 7
      %s335 = smul.addr %s332, 8
      %s336 = sadd.s32 %s334, %s335
      %s337 = smul.addr %s336, 4
      %s338 = scalar_lea.vmem %s4, %s337
      %p339 = pneg %p201
      %p340 = pneg %p198
      %s341 = sadd.s32 %s21, %s22
      %p342 = scmp.lt.s32.totalorder %s341, 1
      %s343 = scalar_select %p342, %s341, 1
      %s344 = smul.addr %s343, 2
      %s345 = scalar_lea.vmem %s5, %s344
      %s346 = smul.u32 8, %s22
      %p347 = scmp.lt.s32.totalorder %s21, 1
      %s348 = scalar_select %p347, %s21, 1
      %p349 = scmp.lt.s32.totalorder %s346, 7
      %s350 = scalar_select %p349, %s346, 7
      %s351 = smul.addr %s350, 4
      %s352 = smul.addr %s348, 32
      %s353 = sadd.s32 %s351, %s352
      %s354 = smul.addr %s353, 4
      %s355 = scalar_lea.vmem %s0, %s354
      %s356 = smul.u32 8, %s22
      %s357 = smul.u32 %s22, 8
      %s358 = ssub.s32 %s357, 1
      %p359 = scmp.gt.s32.totalorder %s358, 0
      %s360 = scalar_select %p359, %s358, 0
      %p361 = scmp.lt.s32.totalorder %s21, 1
      %s362 = scalar_select %p361, %s21, 1
      %p363 = scmp.lt.s32.totalorder %s360, 7
      %s364 = scalar_select %p363, %s360, 7
      %s365 = smul.addr %s364, 4
      %s366 = smul.addr %s362, 32
      %s367 = sadd.s32 %s365, %s366
      %s368 = smul.addr %s367, 4
      %s369 = scalar_lea.vmem %s1, %s368
      %s370 = smul.u32 %s22, 8
      %s371 = ssub.s32 %s370, 1
      %p372 = scmp.gt.s32.totalorder %s371, 0
      %s373 = scalar_select %p372, %s371, 0
      %s374 = smul.u32 %s22, 8
      %s375 = sadd.s32 %s374, 8
      %p376 = scmp.lt.s32.totalorder %s375, 7
      %s377 = scalar_select %p376, %s375, 7
      %p378 = scmp.lt.s32.totalorder %s21, 1
      %s379 = scalar_select %p378, %s21, 1
      %p380 = scmp.lt.s32.totalorder %s377, 7
      %s381 = scalar_select %p380, %s377, 7
      %s382 = smul.addr %s381, 4
      %s383 = smul.addr %s379, 32
      %s384 = sadd.s32 %s382, %s383
      %s385 = smul.addr %s384, 4
      %s386 = scalar_lea.vmem %s2, %s385
      %s387 = smul.u32 %s22, 8
      %s388 = sadd.s32 %s387, 8
      %p389 = scmp.lt.s32.totalorder %s388, 7
      %s390 = scalar_select %p389, %s388, 7
      %s391 = smul.u32 8, %s22
      %p392 = scmp.lt.s32.totalorder %s21, 1
      %s393 = scalar_select %p392, %s21, 1
      %p394 = scmp.lt.s32.totalorder %s391, 7
      %s395 = scalar_select %p394, %s391, 7
      %s396 = smul.addr %s393, 8
      %s397 = sadd.s32 %s395, %s396
      %s398 = smul.addr %s397, 4
      %s399 = scalar_lea.vmem %s4, %s398
      %s400 = smul.u32 8, %s22
      %s401 = sadd.s32 %s21, %s22
      %p402 = scmp.lt.s32.totalorder %s401, 1
      %s403 = scalar_select %p402, %s401, 1
      %s404 = smul.addr %s403, 2
      %s405 = scalar_lea.vmem %s5, %s404
      %s406 = sadd.s32 %s21, %s22
      %v408 = vld [vmem:[%s355] sm:$0xff]
      %v409 = vld [vmem:[%s355 + $0x8] sm:$0xff]
      %v410 = vld [vmem:[%s355 + $0x10] sm:$0xff]
      %v411 = vld [vmem:[%s355 + $0x18] sm:$0xff]
      %v412 = vld [vmem:[%s355 + $0x20] sm:$0xff]
      %v413 = vld [vmem:[%s355 + $0x28] sm:$0xff]
      %v414 = vld [vmem:[%s355 + $0x30] sm:$0xff]
      %v415 = vld [vmem:[%s355 + $0x38] sm:$0xff]
      %v416 = vld [vmem:[%s355 + $0x40] sm:$0xff]
      %v417 = vld [vmem:[%s355 + $0x48] sm:$0xff]
      %v418 = vld [vmem:[%s355 + $0x50] sm:$0xff]
      %v419 = vld [vmem:[%s355 + $0x58] sm:$0xff]
      %v420 = vld [vmem:[%s355 + $0x60] sm:$0xff]
      %v421 = vld [vmem:[%s355 + $0x68] sm:$0xff]
      %v422 = vld [vmem:[%s355 + $0x70] sm:$0xff]
      %v423 = vld [vmem:[%s355 + $0x78] sm:$0xff]
      %v424 = vmax.bf16 %v408, %v409
      %v425 = vmax.bf16 %v410, %v411
      %v426 = vmax.bf16 %v412, %v413
      %v427 = vmax.bf16 %v414, %v415
      %v428 = vmax.bf16 %v416, %v417
      %v429 = vmax.bf16 %v418, %v419
      %v430 = vmax.bf16 %v420, %v421
      %v431 = vmax.bf16 %v422, %v423
      %v440 = vrot.slane %v424, 4
      %v441 = vrot.slane %v425, 4
      %v442 = vrot.slane %v426, 4
      %v443 = vrot.slane %v427, 4
      %v444 = vrot.slane %v428, 4
      %v445 = vrot.slane %v429, 4
      %v446 = vrot.slane %v430, 4
      %v447 = vrot.slane %v431, 4
      %v456 = vmax.bf16 %v424, %v440
      %v457 = vmax.bf16 %v425, %v441
      %v458 = vmax.bf16 %v426, %v442
      %v459 = vmax.bf16 %v427, %v443
      %v460 = vmax.bf16 %v428, %v444
      %v461 = vmax.bf16 %v429, %v445
      %v462 = vmax.bf16 %v430, %v446
      %v463 = vmax.bf16 %v431, %v447
      %v465 = vshrl.u32 %v456, 16
      %v467 = vrot.slane %v465, 7
      %v468 = vshll.u32 %v456, 16
      %v470 = vor.u32 %v467, %v468
      %v471 = vrot.slane %v467, 4
      %v473 = vshrl.u32 %v457, 16
      %v475 = vrot.slane %v473, 7
      %v476 = vshll.u32 %v457, 16
      %v478 = vor.u32 %v475, %v476
      %v479 = vrot.slane %v475, 4
      %v481 = vshrl.u32 %v458, 16
      %v483 = vrot.slane %v481, 7
      %v484 = vshll.u32 %v458, 16
      %v486 = vor.u32 %v483, %v484
      %v487 = vrot.slane %v483, 4
      %v489 = vshrl.u32 %v459, 16
      %v491 = vrot.slane %v489, 7
      %v492 = vshll.u32 %v459, 16
      %v494 = vor.u32 %v491, %v492
      %v495 = vrot.slane %v491, 4
      %v497 = vshrl.u32 %v460, 16
      %v499 = vrot.slane %v497, 7
      %v500 = vshll.u32 %v460, 16
      %v502 = vor.u32 %v499, %v500
      %v503 = vrot.slane %v499, 4
      %v505 = vshrl.u32 %v461, 16
      %v507 = vrot.slane %v505, 7
      %v508 = vshll.u32 %v461, 16
      %v510 = vor.u32 %v507, %v508
      %v511 = vrot.slane %v507, 4
      %v513 = vshrl.u32 %v462, 16
      %v515 = vrot.slane %v513, 7
      %v516 = vshll.u32 %v462, 16
      %v518 = vor.u32 %v515, %v516
      %v519 = vrot.slane %v515, 4
      %v521 = vshrl.u32 %v463, 16
      %v523 = vrot.slane %v521, 7
      %v524 = vshll.u32 %v463, 16
      %v526 = vor.u32 %v523, %v524
      %v527 = vrot.slane %v523, 4
      %s544 = scalar_lea.vmem [#allocation2], 8
      %vm545 = vcmask 1043456
      %vm546 = vsmask.f32 7938
      %vm547 = vmand %vm545, %vm546
      %v548 = vld [vmem:[%s544] sm:$0xf]
      %v549 = vsel %vm547, %v470, %v548
      %550 = vst [vmem:[%s544] sm:$0xf] %v549
      %vm551 = vcmask 1040384
      %vm552 = vsmask.f32 256
      %vm553 = vmand %vm551, %vm552
      %v554 = vld [vmem:[%s544 + $0x4] sm:$0x1]
      %v555 = vsel %vm553, %v471, %v554
      %556 = vst [vmem:[%s544 + $0x4] sm:$0x1] %v555
      %v557 = vld [vmem:[%s544 + $0x8] sm:$0xf]
      %v558 = vsel %vm547, %v478, %v557
      %559 = vst [vmem:[%s544 + $0x8] sm:$0xf] %v558
      %v560 = vld [vmem:[%s544 + $0xc] sm:$0x1]
      %v561 = vsel %vm553, %v479, %v560
      %562 = vst [vmem:[%s544 + $0xc] sm:$0x1] %v561
      %v563 = vld [vmem:[%s544 + $0x10] sm:$0xf]
      %v564 = vsel %vm547, %v486, %v563
      %565 = vst [vmem:[%s544 + $0x10] sm:$0xf] %v564
      %v566 = vld [vmem:[%s544 + $0x14] sm:$0x1]
      %v567 = vsel %vm553, %v487, %v566
      %568 = vst [vmem:[%s544 + $0x14] sm:$0x1] %v567
      %v569 = vld [vmem:[%s544 + $0x18] sm:$0xf]
      %v570 = vsel %vm547, %v494, %v569
      %571 = vst [vmem:[%s544 + $0x18] sm:$0xf] %v570
      %v572 = vld [vmem:[%s544 + $0x1c] sm:$0x1]
      %v573 = vsel %vm553, %v495, %v572
      %574 = vst [vmem:[%s544 + $0x1c] sm:$0x1] %v573
      %v575 = vld [vmem:[%s544 + $0x20] sm:$0xf]
      %v576 = vsel %vm547, %v502, %v575
      %577 = vst [vmem:[%s544 + $0x20] sm:$0xf] %v576
      %v578 = vld [vmem:[%s544 + $0x24] sm:$0x1]
      %v579 = vsel %vm553, %v503, %v578
      %580 = vst [vmem:[%s544 + $0x24] sm:$0x1] %v579
      %v581 = vld [vmem:[%s544 + $0x28] sm:$0xf]
      %v582 = vsel %vm547, %v510, %v581
      %583 = vst [vmem:[%s544 + $0x28] sm:$0xf] %v582
      %v584 = vld [vmem:[%s544 + $0x2c] sm:$0x1]
      %v585 = vsel %vm553, %v511, %v584
      %586 = vst [vmem:[%s544 + $0x2c] sm:$0x1] %v585
      %v587 = vld [vmem:[%s544 + $0x30] sm:$0xf]
      %v588 = vsel %vm547, %v518, %v587
      %589 = vst [vmem:[%s544 + $0x30] sm:$0xf] %v588
      %v590 = vld [vmem:[%s544 + $0x34] sm:$0x1]
      %v591 = vsel %vm553, %v519, %v590
      %592 = vst [vmem:[%s544 + $0x34] sm:$0x1] %v591
      %v593 = vld [vmem:[%s544 + $0x38] sm:$0xf]
      %v594 = vsel %vm547, %v526, %v593
      %595 = vst [vmem:[%s544 + $0x38] sm:$0xf] %v594
      %v596 = vld [vmem:[%s544 + $0x3c] sm:$0x1]
      %v597 = vsel %vm553, %v527, %v596
      %598 = vst [vmem:[%s544 + $0x3c] sm:$0x1] %v597
      %v599 = vld [vmem:[#allocation2] sm:$0xf]
      %v600 = vsel %vm547, 0, %v599
      %601 = vst [vmem:[#allocation2] sm:$0xf] %v600
      %v602 = vld [vmem:[#allocation2 + $0x4] sm:$0x1]
      %v603 = vsel %vm553, 0, %v602
      %604 = vst [vmem:[#allocation2 + $0x4] sm:$0x1] %v603
      %s605 = scalar_lea.vmem [#allocation2], 72
      %v606 = vld [vmem:[%s605] sm:$0xf]
      %v607 = vsel %vm547, 0, %v606
      %608 = vst [vmem:[%s605] sm:$0xf] %v607
      %v609 = vld [vmem:[%s605 + $0x4] sm:$0x1]
      %v610 = vsel %vm553, 0, %v609
      %611 = vst [vmem:[%s605 + $0x4] sm:$0x1] %v610
      %p612 = scmp.gt.s32.totalorder %s22, 0
      // Predicated region
      $region37: #{down_forward.3} parent=35 // pred_check
        %p613 = pneg %p612
      $region38: #{down_forward.3} parent=35 // pred_check_branch
        %615 = sbr.rel (%p613) target = $region40
      $region39: #{down_forward.3} parent=35 // pred_region
        %v616 = vld [vmem:[%s369] sm:$0xff]
        %v617 = vld [vmem:[%s369 + $0x8] sm:$0xff]
        %v618 = vmax.bf16 %v616, %v617
        %v620 = vrot.slane %v618, 4
        %v622 = vmax.bf16 %v618, %v620
        %v624 = vshrl.u32 %v622, 16
        %v626 = vrot.slane %v624, 7
        %v627 = vshll.u32 %v622, 16
        %v629 = vor.u32 %v626, %v627
        %v630 = vrot.slane %v626, 4
        %v633 = vld [vmem:[#allocation2] sm:$0xf]
        %v634 = vsel %vm547, %v629, %v633
        %635 = vst [vmem:[#allocation2] sm:$0xf] %v634
        %v636 = vld [vmem:[#allocation2 + $0x4] sm:$0x1]
        %v637 = vsel %vm553, %v630, %v636
        %638 = vst [vmem:[#allocation2 + $0x4] sm:$0x1] %v637
      $region40: #{down_forward.3} parent=35 // pred_fallthru
        _
      %p639 = scmp.lt.s32.totalorder %s22, 0
      // Predicated region
      $region41: #{down_forward.3} parent=35 // pred_check
        %p640 = pneg %p639
      $region42: #{down_forward.3} parent=35 // pred_check_branch
        %642 = sbr.rel (%p640) target = $region44
      $region43: #{down_forward.3} parent=35 // pred_region
        %v643 = vld [vmem:[%s386] sm:$0xff]
        %v644 = vld [vmem:[%s386 + $0x8] sm:$0xff]
        %v645 = vmax.bf16 %v643, %v644
        %v647 = vrot.slane %v645, 4
        %v649 = vmax.bf16 %v645, %v647
        %v651 = vshrl.u32 %v649, 16
        %v653 = vrot.slane %v651, 7
        %v654 = vshll.u32 %v649, 16
        %v656 = vor.u32 %v653, %v654
        %v657 = vrot.slane %v653, 4
        %v660 = vld [vmem:[%s605] sm:$0xf]
        %v661 = vsel %vm547, %v656, %v660
        %662 = vst [vmem:[%s605] sm:$0xf] %v661
        %v663 = vld [vmem:[%s605 + $0x4] sm:$0x1]
        %v664 = vsel %vm553, %v657, %v663
        %665 = vst [vmem:[%s605 + $0x4] sm:$0x1] %v664
      $region44: #{down_forward.3} parent=35 // pred_fallthru
        _
      %v666 = vld [vmem:[#allocation2] sm:$0x1]
      %v667 = vsel %vm553, 0, %v666
      %668 = vst [vmem:[#allocation2] sm:$0x1] %v667
      %v669 = vld [vmem:[#allocation2 + $0x8] sm:$0x1]
      %v670 = vsel %vm553, 0, %v669
      %671 = vst [vmem:[#allocation2 + $0x8] sm:$0x1] %v670
      %v672 = vld [vmem:[#allocation2 + $0x10] sm:$0x1]
      %v673 = vsel %vm553, 0, %v672
      %674 = vst [vmem:[#allocation2 + $0x10] sm:$0x1] %v673
      %v675 = vld [vmem:[#allocation2 + $0x18] sm:$0x1]
      %v676 = vsel %vm553, 0, %v675
      %677 = vst [vmem:[#allocation2 + $0x18] sm:$0x1] %v676
      %v678 = vld [vmem:[#allocation2 + $0x20] sm:$0x1]
      %v679 = vsel %vm553, 0, %v678
      %680 = vst [vmem:[#allocation2 + $0x20] sm:$0x1] %v679
      %v681 = vld [vmem:[#allocation2 + $0x28] sm:$0x1]
      %v682 = vsel %vm553, 0, %v681
      %683 = vst [vmem:[#allocation2 + $0x28] sm:$0x1] %v682
      %v684 = vld [vmem:[#allocation2 + $0x30] sm:$0x1]
      %v685 = vsel %vm553, 0, %v684
      %686 = vst [vmem:[#allocation2 + $0x30] sm:$0x1] %v685
      %v687 = vld [vmem:[#allocation2 + $0x38] sm:$0x1]
      %v688 = vsel %vm553, 0, %v687
      %689 = vst [vmem:[#allocation2 + $0x38] sm:$0x1] %v688
      %v690 = vld [vmem:[#allocation2 + $0x40] sm:$0x1]
      %v691 = vsel %vm553, 0, %v690
      %692 = vst [vmem:[#allocation2 + $0x40] sm:$0x1] %v691
      %v693 = vld [vmem:[#allocation2 + $0x48] sm:$0x1]
      %v694 = vsel %vm553, 0, %v693
      %695 = vst [vmem:[#allocation2 + $0x48] sm:$0x1] %v694
      %vm696 = vmand %vm551, %vm546
      %v697 = vld [vmem:[#allocation2 + $0x4] sm:$0x1]
      %v698 = vsel %vm696, 0, %v697
      %699 = vst [vmem:[#allocation2 + $0x4] sm:$0x1] %v698
      %v700 = vld [vmem:[#allocation2 + $0xc] sm:$0x1]
      %v701 = vsel %vm696, 0, %v700
      %702 = vst [vmem:[#allocation2 + $0xc] sm:$0x1] %v701
      %v703 = vld [vmem:[#allocation2 + $0x14] sm:$0x1]
      %v704 = vsel %vm696, 0, %v703
      %705 = vst [vmem:[#allocation2 + $0x14] sm:$0x1] %v704
      %v706 = vld [vmem:[#allocation2 + $0x1c] sm:$0x1]
      %v707 = vsel %vm696, 0, %v706
      %708 = vst [vmem:[#allocation2 + $0x1c] sm:$0x1] %v707
      %v709 = vld [vmem:[#allocation2 + $0x24] sm:$0x1]
      %v710 = vsel %vm696, 0, %v709
      %711 = vst [vmem:[#allocation2 + $0x24] sm:$0x1] %v710
      %v712 = vld [vmem:[#allocation2 + $0x2c] sm:$0x1]
      %v713 = vsel %vm696, 0, %v712
      %714 = vst [vmem:[#allocation2 + $0x2c] sm:$0x1] %v713
      %v715 = vld [vmem:[#allocation2 + $0x34] sm:$0x1]
      %v716 = vsel %vm696, 0, %v715
      %717 = vst [vmem:[#allocation2 + $0x34] sm:$0x1] %v716
      %v718 = vld [vmem:[#allocation2 + $0x3c] sm:$0x1]
      %v719 = vsel %vm696, 0, %v718
      %720 = vst [vmem:[#allocation2 + $0x3c] sm:$0x1] %v719
      %v721 = vld [vmem:[#allocation2 + $0x44] sm:$0x1]
      %v722 = vsel %vm696, 0, %v721
      %723 = vst [vmem:[#allocation2 + $0x44] sm:$0x1] %v722
      %v724 = vld [vmem:[#allocation2 + $0x4c] sm:$0x1]
      %v725 = vsel %vm696, 0, %v724
      %726 = vst [vmem:[#allocation2 + $0x4c] sm:$0x1] %v725
      %v727 = vld [vmem:[#allocation2] sm:$0xf]
      %v728 = vld [vmem:[#allocation2 + $0x8] sm:$0xf]
      %v729 = vld [vmem:[#allocation2 + $0x10] sm:$0xf]
      %v730 = vld [vmem:[#allocation2 + $0x18] sm:$0xf]
      %v731 = vld [vmem:[#allocation2 + $0x20] sm:$0xf]
      %v732 = vld [vmem:[#allocation2 + $0x28] sm:$0xf]
      %v733 = vld [vmem:[#allocation2 + $0x30] sm:$0xf]
      %v734 = vld [vmem:[#allocation2 + $0x38] sm:$0xf]
      %v735 = vld [vmem:[%s3] sm:$0xf]
      %v736 = vld [vmem:[%s3 + $0x4] sm:$0xf]
      %v737 = vld [vmem:[%s3 + $0x8] sm:$0xf]
      %v738 = vld [vmem:[%s3 + $0xc] sm:$0xf]
      %v739 = vld [vmem:[%s3 + $0x10] sm:$0xf]
      %v740 = vld [vmem:[%s3 + $0x14] sm:$0xf]
      %v741 = vld [vmem:[%s3 + $0x18] sm:$0xf]
      %v742 = vld [vmem:[%s3 + $0x1c] sm:$0xf]
      %v743 = vld [vmem:[%s3 + $0x20] sm:$0xf]
      %v744 = vld [vmem:[%s3 + $0x24] sm:$0xf]
      %v745 = vld [vmem:[%s3 + $0x28] sm:$0xf]
      %v746 = vld [vmem:[%s3 + $0x2c] sm:$0xf]
      %v747 = vld [vmem:[%s3 + $0x30] sm:$0xf]
      %v748 = vld [vmem:[%s3 + $0x34] sm:$0xf]
      %v749 = vld [vmem:[%s3 + $0x38] sm:$0xf]
      %v750 = vld [vmem:[%s3 + $0x3c] sm:$0xf]
      %v751 = vld [vmem:[#allocation2 + $0x4] sm:$0x1]
      %v752 = vld [vmem:[#allocation2 + $0xc] sm:$0x1]
      %v753 = vld [vmem:[#allocation2 + $0x14] sm:$0x1]
      %v754 = vld [vmem:[#allocation2 + $0x1c] sm:$0x1]
      %v755 = vld [vmem:[#allocation2 + $0x24] sm:$0x1]
      %v756 = vld [vmem:[#allocation2 + $0x2c] sm:$0x1]
      %v757 = vld [vmem:[#allocation2 + $0x34] sm:$0x1]
      %v758 = vld [vmem:[#allocation2 + $0x3c] sm:$0x1]
      %vm759 = vsmask.f32 3328
      %vm760 = vsmask.f32 7440
      %vm761 = vmor %vm759, %vm760
      %v763 = vshrl.u32 %v727, 16
      %v765 = vrot.slane %v763, 4
      %v766 = vshll.u32 %v727, 16
      %v768 = vrot.slane %v766, 5
      %v769 = vor.u32 %v765, %v768
      %v770 = vrot.slane %v769, 4
      %v772 = vshll.u32 %v751, 16
      %v774 = vrot.slane %v772, 5
      %v775 = vsel %vm761, %v770, %v774
      %v777 = vshrl.u32 %v728, 16
      %v779 = vrot.slane %v777, 4
      %v780 = vshll.u32 %v728, 16
      %v782 = vrot.slane %v780, 5
      %v783 = vor.u32 %v779, %v782
      %v784 = vrot.slane %v783, 4
      %v786 = vshll.u32 %v752, 16
      %v788 = vrot.slane %v786, 5
      %v789 = vsel %vm761, %v784, %v788
      %v791 = vshrl.u32 %v729, 16
      %v793 = vrot.slane %v791, 4
      %v794 = vshll.u32 %v729, 16
      %v796 = vrot.slane %v794, 5
      %v797 = vor.u32 %v793, %v796
      %v798 = vrot.slane %v797, 4
      %v800 = vshll.u32 %v753, 16
      %v802 = vrot.slane %v800, 5
      %v803 = vsel %vm761, %v798, %v802
      %v805 = vshrl.u32 %v730, 16
      %v807 = vrot.slane %v805, 4
      %v808 = vshll.u32 %v730, 16
      %v810 = vrot.slane %v808, 5
      %v811 = vor.u32 %v807, %v810
      %v812 = vrot.slane %v811, 4
      %v814 = vshll.u32 %v754, 16
      %v816 = vrot.slane %v814, 5
      %v817 = vsel %vm761, %v812, %v816
      %v819 = vshrl.u32 %v731, 16
      %v821 = vrot.slane %v819, 4
      %v822 = vshll.u32 %v731, 16
      %v824 = vrot.slane %v822, 5
      %v825 = vor.u32 %v821, %v824
      %v826 = vrot.slane %v825, 4
      %v828 = vshll.u32 %v755, 16
      %v830 = vrot.slane %v828, 5
      %v831 = vsel %vm761, %v826, %v830
      %v833 = vshrl.u32 %v732, 16
      %v835 = vrot.slane %v833, 4
      %v836 = vshll.u32 %v732, 16
      %v838 = vrot.slane %v836, 5
      %v839 = vor.u32 %v835, %v838
      %v840 = vrot.slane %v839, 4
      %v842 = vshll.u32 %v756, 16
      %v844 = vrot.slane %v842, 5
      %v845 = vsel %vm761, %v840, %v844
      %v847 = vshrl.u32 %v733, 16
      %v849 = vrot.slane %v847, 4
      %v850 = vshll.u32 %v733, 16
      %v852 = vrot.slane %v850, 5
      %v853 = vor.u32 %v849, %v852
      %v854 = vrot.slane %v853, 4
      %v856 = vshll.u32 %v757, 16
      %v858 = vrot.slane %v856, 5
      %v859 = vsel %vm761, %v854, %v858
      %v861 = vshrl.u32 %v734, 16
      %v863 = vrot.slane %v861, 4
      %v864 = vshll.u32 %v734, 16
      %v866 = vrot.slane %v864, 5
      %v867 = vor.u32 %v863, %v866
      %v868 = vrot.slane %v867, 4
      %v870 = vshll.u32 %v758, 16
      %v872 = vrot.slane %v870, 5
      %v873 = vsel %vm761, %v868, %v872
      %v874 = vld [vmem:[%s3 + $0x40] sm:$0xf]
      %v875 = vld [vmem:[%s3 + $0x44] sm:$0xf]
      %v876 = vld [vmem:[%s3 + $0x48] sm:$0xf]
      %v877 = vld [vmem:[%s3 + $0x4c] sm:$0xf]
      %v878 = vld [vmem:[%s3 + $0x50] sm:$0xf]
      %v879 = vld [vmem:[%s3 + $0x54] sm:$0xf]
      %v880 = vld [vmem:[%s3 + $0x58] sm:$0xf]
      %v881 = vld [vmem:[%s3 + $0x5c] sm:$0xf]
      %v882 = vld [vmem:[%s3 + $0x60] sm:$0xf]
      %v883 = vld [vmem:[%s3 + $0x64] sm:$0xf]
      %v884 = vld [vmem:[%s3 + $0x68] sm:$0xf]
      %v885 = vld [vmem:[%s3 + $0x6c] sm:$0xf]
      %v886 = vld [vmem:[%s3 + $0x70] sm:$0xf]
      %v887 = vld [vmem:[%s3 + $0x74] sm:$0xf]
      %v888 = vld [vmem:[%s3 + $0x78] sm:$0xf]
      %v889 = vld [vmem:[%s3 + $0x7c] sm:$0xf]
      %v890 = vunpack.c.l.b16 %v775
      %v891 = vunpack.c.l.b16 %v789
      %v892 = vunpack.c.l.b16 %v803
      %v893 = vunpack.c.l.b16 %v817
      %v894 = vunpack.c.l.b16 %v831
      %v895 = vunpack.c.l.b16 %v845
      %v896 = vunpack.c.l.b16 %v859
      %v897 = vunpack.c.l.b16 %v873
      %v898 = vpack.c.b16 %v891, %v890
      %v899 = vpack.c.b16 %v893, %v892
      %v900 = vpack.c.b16 %v895, %v894
      %v901 = vpack.c.b16 %v897, %v896
      %v922 = vunpack.c.l.b16 %v874
      %v923 = vunpack.c.l.b16 %v875
      %v924 = vunpack.c.l.b16 %v876
      %v925 = vunpack.c.l.b16 %v877
      %v926 = vunpack.c.l.b16 %v878
      %v927 = vunpack.c.l.b16 %v879
      %v928 = vunpack.c.l.b16 %v880
      %v929 = vunpack.c.l.b16 %v881
      %v930 = vunpack.c.l.b16 %v882
      %v931 = vunpack.c.l.b16 %v883
      %v932 = vunpack.c.l.b16 %v884
      %v933 = vunpack.c.l.b16 %v885
      %v934 = vunpack.c.l.b16 %v886
      %v935 = vunpack.c.l.b16 %v887
      %v936 = vunpack.c.l.b16 %v888
      %v937 = vunpack.c.l.b16 %v889
      %v938 = vpack.c.b16 %v923, %v922
      %v939 = vpack.c.b16 %v925, %v924
      %v940 = vpack.c.b16 %v927, %v926
      %v941 = vpack.c.b16 %v929, %v928
      %v942 = vpack.c.b16 %v931, %v930
      %v943 = vpack.c.b16 %v933, %v932
      %v944 = vpack.c.b16 %v935, %v934
      %v945 = vpack.c.b16 %v937, %v936
      %954 = vmatprep.subr.bf16.mxu0 0
      %955 = vmatpush1.bf16.msra.mxu0 %v938
      %956 = vmatprep.subr.bf16.mxu0 0
      %957 = vmatpush1.bf16.msra.mxu0 %v939
      %958 = vmatprep.subr.bf16.mxu0 0
      %959 = vmatpush1.bf16.msra.mxu0 %v940
      %960 = vmatprep.subr.bf16.mxu0 0
      %961 = vmatpush1.bf16.msra.mxu0 %v941
      %962 = vmatprep.subr.bf16.mxu0 0
      %963 = vmatpush1.bf16.msra.mxu0 %v942
      %964 = vmatprep.subr.bf16.mxu0 0
      %965 = vmatpush1.bf16.msra.mxu0 %v943
      %966 = vmatprep.subr.bf16.mxu0 0
      %967 = vmatpush1.bf16.msra.mxu0 %v944
      %968 = vmatprep.subr.bf16.mxu0 0
      %969 = vmatpush1.bf16.msra.mxu0 %v945
      %970 = vmatprep.subr.bf16.mxu0 0
      %971 = vmatpush1.bf16.msra.mxu0 0
      %972 = vmatprep.subr.bf16.mxu0 0
      %973 = vmatpush1.bf16.msra.mxu0 0
      %974 = vmatprep.subr.bf16.mxu0 0
      %975 = vmatpush1.bf16.msra.mxu0 0
      %976 = vmatprep.subr.bf16.mxu0 0
      %977 = vmatpush1.bf16.msra.mxu0 0
      %978 = vmatprep.subr.bf16.mxu0 0
      %979 = vmatpush1.bf16.msra.mxu0 0
      %980 = vmatprep.subr.bf16.mxu0 0
      %981 = vmatpush1.bf16.msra.mxu0 0
      %982 = vmatprep.subr.bf16.mxu0 0
      %983 = vmatpush1.bf16.msra.mxu0 0
      %984 = vmatprep.subr.bf16.mxu0 0
      %985 = vmatpush1.bf16.msra.mxu0 0
      %986 = vmatprep.mubr.bf16.mxu0 0
      %987 = vmatmul.mubr.bf16.gmra.mrb[0].mxu0 %v898
      %v988 = vpop.f32.mrb[0].mxu0
      %v989 = vadd.f32 0.0, %v988
      %v990 = vpop.f32.mrb[0].mxu0
      %v991 = vpop.f32.mrb[0].mxu0
      %v992 = vadd.f32 0.0, %v991
      %v993 = vpop.f32.mrb[0].mxu0
      %994 = vmatprep.mubr.bf16.mxu0 0
      %995 = vmatmul.mubr.bf16.gmra.mrb[0].mxu0 %v899
      %v996 = vpop.f32.mrb[0].mxu0
      %v997 = vadd.f32 0.0, %v996
      %v998 = vpop.f32.mrb[0].mxu0
      %v999 = vpop.f32.mrb[0].mxu0
      %v1000 = vadd.f32 0.0, %v999
      %v1001 = vpop.f32.mrb[0].mxu0
      %1002 = vmatprep.mubr.bf16.mxu0 0
      %1003 = vmatmul.mubr.bf16.gmra.mrb[0].mxu0 %v900
      %v1004 = vpop.f32.mrb[0].mxu0
      %v1005 = vadd.f32 0.0, %v1004
      %v1006 = vpop.f32.mrb[0].mxu0
      %v1007 = vpop.f32.mrb[0].mxu0
      %v1008 = vadd.f32 0.0, %v1007
      %v1009 = vpop.f32.mrb[0].mxu0
      %1010 = vmatprep.mubr.bf16.mxu0 0
      %1011 = vmatmul.mubr.bf16.gmra.mrb[0].mxu0 %v901
      %v1012 = vpop.f32.mrb[0].mxu0
      %v1013 = vadd.f32 0.0, %v1012
      %v1014 = vpop.f32.mrb[0].mxu0
      %v1015 = vpop.f32.mrb[0].mxu0
      %v1016 = vadd.f32 0.0, %v1015
      %v1017 = vpop.f32.mrb[0].mxu0
      %1018 = vdwg.mxu0
      %v1027 = vunpack.c.l.b16 %v727
      %v1028 = vunpack.c.l.b16 %v728
      %v1029 = vunpack.c.l.b16 %v729
      %v1030 = vunpack.c.l.b16 %v730
      %v1031 = vunpack.c.l.b16 %v731
      %v1032 = vunpack.c.l.b16 %v732
      %v1033 = vunpack.c.l.b16 %v733
      %v1034 = vunpack.c.l.b16 %v734
      %v1035 = vpack.c.b16 %v1028, %v1027
      %v1036 = vpack.c.b16 %v1030, %v1029
      %v1037 = vpack.c.b16 %v1032, %v1031
      %v1038 = vpack.c.b16 %v1034, %v1033
      %v1059 = vunpack.c.l.b16 %v735
      %v1060 = vunpack.c.l.b16 %v736
      %v1061 = vunpack.c.l.b16 %v737
      %v1062 = vunpack.c.l.b16 %v738
      %v1063 = vunpack.c.l.b16 %v739
      %v1064 = vunpack.c.l.b16 %v740
      %v1065 = vunpack.c.l.b16 %v741
      %v1066 = vunpack.c.l.b16 %v742
      %v1067 = vunpack.c.l.b16 %v743
      %v1068 = vunpack.c.l.b16 %v744
      %v1069 = vunpack.c.l.b16 %v745
      %v1070 = vunpack.c.l.b16 %v746
      %v1071 = vunpack.c.l.b16 %v747
      %v1072 = vunpack.c.l.b16 %v748
      %v1073 = vunpack.c.l.b16 %v749
      %v1074 = vunpack.c.l.b16 %v750
      %v1075 = vpack.c.b16 %v1060, %v1059
      %v1076 = vpack.c.b16 %v1062, %v1061
      %v1077 = vpack.c.b16 %v1064, %v1063
      %v1078 = vpack.c.b16 %v1066, %v1065
      %v1079 = vpack.c.b16 %v1068, %v1067
      %v1080 = vpack.c.b16 %v1070, %v1069
      %v1081 = vpack.c.b16 %v1072, %v1071
      %v1082 = vpack.c.b16 %v1074, %v1073
      %1091 = vmatprep.subr.bf16.mxu0 0
      %1092 = vmatpush1.bf16.msra.mxu0 %v1075
      %1093 = vmatprep.subr.bf16.mxu0 0
      %1094 = vmatpush1.bf16.msra.mxu0 %v1076
      %1095 = vmatprep.subr.bf16.mxu0 0
      %1096 = vmatpush1.bf16.msra.mxu0 %v1077
      %1097 = vmatprep.subr.bf16.mxu0 0
      %1098 = vmatpush1.bf16.msra.mxu0 %v1078
      %1099 = vmatprep.subr.bf16.mxu0 0
      %1100 = vmatpush1.bf16.msra.mxu0 %v1079
      %1101 = vmatprep.subr.bf16.mxu0 0
      %1102 = vmatpush1.bf16.msra.mxu0 %v1080
      %1103 = vmatprep.subr.bf16.mxu0 0
      %1104 = vmatpush1.bf16.msra.mxu0 %v1081
      %1105 = vmatprep.subr.bf16.mxu0 0
      %1106 = vmatpush1.bf16.msra.mxu0 %v1082
      %1107 = vmatprep.subr.bf16.mxu0 0
      %1108 = vmatpush1.bf16.msra.mxu0 0
      %1109 = vmatprep.subr.bf16.mxu0 0
      %1110 = vmatpush1.bf16.msra.mxu0 0
      %1111 = vmatprep.subr.bf16.mxu0 0
      %1112 = vmatpush1.bf16.msra.mxu0 0
      %1113 = vmatprep.subr.bf16.mxu0 0
      %1114 = vmatpush1.bf16.msra.mxu0 0
      %1115 = vmatprep.subr.bf16.mxu0 0
      %1116 = vmatpush1.bf16.msra.mxu0 0
      %1117 = vmatprep.subr.bf16.mxu0 0
      %1118 = vmatpush1.bf16.msra.mxu0 0
      %1119 = vmatprep.subr.bf16.mxu0 0
      %1120 = vmatpush1.bf16.msra.mxu0 0
      %1121 = vmatprep.subr.bf16.mxu0 0
      %1122 = vmatpush1.bf16.msra.mxu0 0
      %1123 = vmatprep.mubr.bf16.mxu0 0
      %1124 = vmatmul.mubr.bf16.gmra.mrb[0].mxu0 %v1035
      %v1125 = vpop.f32.mrb[0].mxu0
      %v1126 = vadd.f32 %v989, %v1125
      %v1127 = vpop.f32.mrb[0].mxu0
      %v1128 = vpop.f32.mrb[0].mxu0
      %v1129 = vadd.f32 %v992, %v1128
      %v1130 = vpop.f32.mrb[0].mxu0
      %1131 = vmatprep.mubr.bf16.mxu0 0
      %1132 = vmatmul.mubr.bf16.gmra.mrb[0].mxu0 %v1036
      %v1133 = vpop.f32.mrb[0].mxu0
      %v1134 = vadd.f32 %v997, %v1133
      %v1135 = vpop.f32.mrb[0].mxu0
      %v1136 = vpop.f32.mrb[0].mxu0
      %v1137 = vadd.f32 %v1000, %v1136
      %v1138 = vpop.f32.mrb[0].mxu0
      %1139 = vmatprep.mubr.bf16.mxu0 0
      %1140 = vmatmul.mubr.bf16.gmra.mrb[0].mxu0 %v1037
      %v1141 = vpop.f32.mrb[0].mxu0
      %v1142 = vadd.f32 %v1005, %v1141
      %v1143 = vpop.f32.mrb[0].mxu0
      %v1144 = vpop.f32.mrb[0].mxu0
      %v1145 = vadd.f32 %v1008, %v1144
      %v1146 = vpop.f32.mrb[0].mxu0
      %1147 = vmatprep.mubr.bf16.mxu0 0
      %1148 = vmatmul.mubr.bf16.gmra.mrb[0].mxu0 %v1038
      %v1149 = vpop.f32.mrb[0].mxu0
      %v1150 = vadd.f32 %v1013, %v1149
      %v1151 = vpop.f32.mrb[0].mxu0
      %v1152 = vpop.f32.mrb[0].mxu0
      %v1153 = vadd.f32 %v1016, %v1152
      %v1154 = vpop.f32.mrb[0].mxu0
      %1155 = vdwg.mxu0
      %v1156 = vld [vmem:[#allocation2] sm:$0xe]
      %v1157 = vld [vmem:[#allocation2 + $0x8] sm:$0xe]
      %v1158 = vld [vmem:[#allocation2 + $0x10] sm:$0xe]
      %v1159 = vld [vmem:[#allocation2 + $0x18] sm:$0xe]
      %v1160 = vld [vmem:[#allocation2 + $0x20] sm:$0xe]
      %v1161 = vld [vmem:[#allocation2 + $0x28] sm:$0xe]
      %v1162 = vld [vmem:[#allocation2 + $0x30] sm:$0xe]
      %v1163 = vld [vmem:[#allocation2 + $0x38] sm:$0xe]
      %vm1180 = vcmask 1042432
      %vm1181 = vcmask 1046532
      %vm1182 = vmor %vm1180, %vm1181
      %v1183 = vrot.slane %v1156, 5
      %v1184 = vrot.slane %v1183, 4
      %v1185 = vrot.slane %v751, 5
      %v1186 = vsel %vm1182, %v1184, %v1185
      %v1187 = vrot.slane %v1157, 5
      %v1188 = vrot.slane %v1187, 4
      %v1189 = vrot.slane %v752, 5
      %v1190 = vsel %vm1182, %v1188, %v1189
      %v1191 = vrot.slane %v1158, 5
      %v1192 = vrot.slane %v1191, 4
      %v1193 = vrot.slane %v753, 5
      %v1194 = vsel %vm1182, %v1192, %v1193
      %v1195 = vrot.slane %v1159, 5
      %v1196 = vrot.slane %v1195, 4
      %v1197 = vrot.slane %v754, 5
      %v1198 = vsel %vm1182, %v1196, %v1197
      %v1199 = vrot.slane %v1160, 5
      %v1200 = vrot.slane %v1199, 4
      %v1201 = vrot.slane %v755, 5
      %v1202 = vsel %vm1182, %v1200, %v1201
      %v1203 = vrot.slane %v1161, 5
      %v1204 = vrot.slane %v1203, 4
      %v1205 = vrot.slane %v756, 5
      %v1206 = vsel %vm1182, %v1204, %v1205
      %v1207 = vrot.slane %v1162, 5
      %v1208 = vrot.slane %v1207, 4
      %v1209 = vrot.slane %v757, 5
      %v1210 = vsel %vm1182, %v1208, %v1209
      %v1211 = vrot.slane %v1163, 5
      %v1212 = vrot.slane %v1211, 4
      %v1213 = vrot.slane %v758, 5
      %v1214 = vsel %vm1182, %v1212, %v1213
      %v1215 = vld [vmem:[%s3 + $0x80] sm:$0xf]
      %v1216 = vld [vmem:[%s3 + $0x84] sm:$0xf]
      %v1217 = vld [vmem:[%s3 + $0x88] sm:$0xf]
      %v1218 = vld [vmem:[%s3 + $0x8c] sm:$0xf]
      %v1219 = vld [vmem:[%s3 + $0x90] sm:$0xf]
      %v1220 = vld [vmem:[%s3 + $0x94] sm:$0xf]
      %v1221 = vld [vmem:[%s3 + $0x98] sm:$0xf]
      %v1222 = vld [vmem:[%s3 + $0x9c] sm:$0xf]
      %v1223 = vld [vmem:[%s3 + $0xa0] sm:$0xf]
      %v1224 = vld [vmem:[%s3 + $0xa4] sm:$0xf]
      %v1225 = vld [vmem:[%s3 + $0xa8] sm:$0xf]
      %v1226 = vld [vmem:[%s3 + $0xac] sm:$0xf]
      %v1227 = vld [vmem:[%s3 + $0xb0] sm:$0xf]
      %v1228 = vld [vmem:[%s3 + $0xb4] sm:$0xf]
      %v1229 = vld [vmem:[%s3 + $0xb8] sm:$0xf]
      %v1230 = vld [vmem:[%s3 + $0xbc] sm:$0xf]
      %v1231 = vunpack.c.l.b16 %v1186
      %v1232 = vunpack.c.l.b16 %v1190
      %v1233 = vunpack.c.l.b16 %v1194
      %v1234 = vunpack.c.l.b16 %v1198
      %v1235 = vunpack.c.l.b16 %v1202
      %v1236 = vunpack.c.l.b16 %v1206
      %v1237 = vunpack.c.l.b16 %v1210
      %v1238 = vunpack.c.l.b16 %v1214
      %v1239 = vpack.c.b16 %v1232, %v1231
      %v1240 = vpack.c.b16 %v1234, %v1233
      %v1241 = vpack.c.b16 %v1236, %v1235
      %v1242 = vpack.c.b16 %v1238, %v1237
      %v1263 = vunpack.c.l.b16 %v1215
      %v1264 = vunpack.c.l.b16 %v1216
      %v1265 = vunpack.c.l.b16 %v1217
      %v1266 = vunpack.c.l.b16 %v1218
      %v1267 = vunpack.c.l.b16 %v1219
      %v1268 = vunpack.c.l.b16 %v1220
      %v1269 = vunpack.c.l.b16 %v1221
      %v1270 = vunpack.c.l.b16 %v1222
      %v1271 = vunpack.c.l.b16 %v1223
      %v1272 = vunpack.c.l.b16 %v1224
      %v1273 = vunpack.c.l.b16 %v1225
      %v1274 = vunpack.c.l.b16 %v1226
      %v1275 = vunpack.c.l.b16 %v1227
      %v1276 = vunpack.c.l.b16 %v1228
      %v1277 = vunpack.c.l.b16 %v1229
      %v1278 = vunpack.c.l.b16 %v1230
      %v1279 = vpack.c.b16 %v1264, %v1263
      %v1280 = vpack.c.b16 %v1266, %v1265
      %v1281 = vpack.c.b16 %v1268, %v1267
      %v1282 = vpack.c.b16 %v1270, %v1269
      %v1283 = vpack.c.b16 %v1272, %v1271
      %v1284 = vpack.c.b16 %v1274, %v1273
      %v1285 = vpack.c.b16 %v1276, %v1275
      %v1286 = vpack.c.b16 %v1278, %v1277
      %1295 = vmatprep.subr.bf16.mxu0 0
      %1296 = vmatpush1.bf16.msra.mxu0 %v1279
      %1297 = vmatprep.subr.bf16.mxu0 0
      %1298 = vmatpush1.bf16.msra.mxu0 %v1280
      %1299 = vmatprep.subr.bf16.mxu0 0
      %1300 = vmatpush1.bf16.msra.mxu0 %v1281
      %1301 = vmatprep.subr.bf16.mxu0 0
      %1302 = vmatpush1.bf16.msra.mxu0 %v1282
      %1303 = vmatprep.subr.bf16.mxu0 0
      %1304 = vmatpush1.bf16.msra.mxu0 %v1283
      %1305 = vmatprep.subr.bf16.mxu0 0
      %1306 = vmatpush1.bf16.msra.mxu0 %v1284
      %1307 = vmatprep.subr.bf16.mxu0 0
      %1308 = vmatpush1.bf16.msra.mxu0 %v1285
      %1309 = vmatprep.subr.bf16.mxu0 0
      %1310 = vmatpush1.bf16.msra.mxu0 %v1286
      %1311 = vmatprep.subr.bf16.mxu0 0
      %1312 = vmatpush1.bf16.msra.mxu0 0
      %1313 = vmatprep.subr.bf16.mxu0 0
      %1314 = vmatpush1.bf16.msra.mxu0 0
      %1315 = vmatprep.subr.bf16.mxu0 0
      %1316 = vmatpush1.bf16.msra.mxu0 0
      %1317 = vmatprep.subr.bf16.mxu0 0
      %1318 = vmatpush1.bf16.msra.mxu0 0
      %1319 = vmatprep.subr.bf16.mxu0 0
      %1320 = vmatpush1.bf16.msra.mxu0 0
      %1321 = vmatprep.subr.bf16.mxu0 0
      %1322 = vmatpush1.bf16.msra.mxu0 0
      %1323 = vmatprep.subr.bf16.mxu0 0
      %1324 = vmatpush1.bf16.msra.mxu0 0
      %1325 = vmatprep.subr.bf16.mxu0 0
      %1326 = vmatpush1.bf16.msra.mxu0 0
      %1327 = vmatprep.mubr.bf16.mxu0 0
      %1328 = vmatmul.mubr.bf16.gmra.mrb[0].mxu0 %v1239
      %v1329 = vpop.f32.mrb[0].mxu0
      %v1330 = vadd.f32 0.0, %v1329
      %v1331 = vpop.f32.mrb[0].mxu0
      %v1332 = vpop.f32.mrb[0].mxu0
      %v1333 = vadd.f32 0.0, %v1332
      %v1334 = vpop.f32.mrb[0].mxu0
      %1335 = vmatprep.mubr.bf16.mxu0 0
      %1336 = vmatmul.mubr.bf16.gmra.mrb[0].mxu0 %v1240
      %v1337 = vpop.f32.mrb[0].mxu0
      %v1338 = vadd.f32 0.0, %v1337
      %v1339 = vpop.f32.mrb[0].mxu0
      %v1340 = vpop.f32.mrb[0].mxu0
      %v1341 = vadd.f32 0.0, %v1340
      %v1342 = vpop.f32.mrb[0].mxu0
      %1343 = vmatprep.mubr.bf16.mxu0 0
      %1344 = vmatmul.mubr.bf16.gmra.mrb[0].mxu0 %v1241
      %v1345 = vpop.f32.mrb[0].mxu0
      %v1346 = vadd.f32 0.0, %v1345
      %v1347 = vpop.f32.mrb[0].mxu0
      %v1348 = vpop.f32.mrb[0].mxu0
      %v1349 = vadd.f32 0.0, %v1348
      %v1350 = vpop.f32.mrb[0].mxu0
      %1351 = vmatprep.mubr.bf16.mxu0 0
      %1352 = vmatmul.mubr.bf16.gmra.mrb[0].mxu0 %v1242
      %v1353 = vpop.f32.mrb[0].mxu0
      %v1354 = vadd.f32 0.0, %v1353
      %v1355 = vpop.f32.mrb[0].mxu0
      %v1356 = vpop.f32.mrb[0].mxu0
      %v1357 = vadd.f32 0.0, %v1356
      %v1358 = vpop.f32.mrb[0].mxu0
      %1359 = vdwg.mxu0
      %v1360 = vadd.f32 %v1126, %v1330
      %v1361 = vadd.f32 %v1129, %v1333
      %v1362 = vadd.f32 %v1134, %v1338
      %v1363 = vadd.f32 %v1137, %v1341
      %v1364 = vadd.f32 %v1142, %v1346
      %v1365 = vadd.f32 %v1145, %v1349
      %v1366 = vadd.f32 %v1150, %v1354
      %v1367 = vadd.f32 %v1153, %v1357
      %v1368 = vld [vmem:[%s544] sm:$0xf]
      %v1369 = vld [vmem:[%s544 + $0x8] sm:$0xf]
      %v1370 = vld [vmem:[%s544 + $0x10] sm:$0xf]
      %v1371 = vld [vmem:[%s544 + $0x18] sm:$0xf]
      %v1372 = vld [vmem:[%s544 + $0x20] sm:$0xf]
      %v1373 = vld [vmem:[%s544 + $0x28] sm:$0xf]
      %v1374 = vld [vmem:[%s544 + $0x30] sm:$0xf]
      %v1375 = vld [vmem:[%s544 + $0x38] sm:$0xf]
      %v1376 = vld [vmem:[%s3 + $0xc0] sm:$0xf]
      %v1377 = vld [vmem:[%s3 + $0xc4] sm:$0xf]
      %v1378 = vld [vmem:[%s3 + $0xc8] sm:$0xf]
      %v1379 = vld [vmem:[%s3 + $0xcc] sm:$0xf]
      %v1380 = vld [vmem:[%s3 + $0xd0] sm:$0xf]
      %v1381 = vld [vmem:[%s3 + $0xd4] sm:$0xf]
      %v1382 = vld [vmem:[%s3 + $0xd8] sm:$0xf]
      %v1383 = vld [vmem:[%s3 + $0xdc] sm:$0xf]
      %v1384 = vld [vmem:[%s3 + $0xe0] sm:$0xf]
      %v1385 = vld [vmem:[%s3 + $0xe4] sm:$0xf]
      %v1386 = vld [vmem:[%s3 + $0xe8] sm:$0xf]
      %v1387 = vld [vmem:[%s3 + $0xec] sm:$0xf]
      %v1388 = vld [vmem:[%s3 + $0xf0] sm:$0xf]
      %v1389 = vld [vmem:[%s3 + $0xf4] sm:$0xf]
      %v1390 = vld [vmem:[%s3 + $0xf8] sm:$0xf]
      %v1391 = vld [vmem:[%s3 + $0xfc] sm:$0xf]
      %v1400 = vunpack.c.l.b16 %v1368
      %v1401 = vunpack.c.l.b16 %v1369
      %v1402 = vunpack.c.l.b16 %v1370
      %v1403 = vunpack.c.l.b16 %v1371
      %v1404 = vunpack.c.l.b16 %v1372
      %v1405 = vunpack.c.l.b16 %v1373
      %v1406 = vunpack.c.l.b16 %v1374
      %v1407 = vunpack.c.l.b16 %v1375
      %v1408 = vpack.c.b16 %v1401, %v1400
      %v1409 = vpack.c.b16 %v1403, %v1402
      %v1410 = vpack.c.b16 %v1405, %v1404
      %v1411 = vpack.c.b16 %v1407, %v1406
      %v1432 = vunpack.c.l.b16 %v1376
      %v1433 = vunpack.c.l.b16 %v1377
      %v1434 = vunpack.c.l.b16 %v1378
      %v1435 = vunpack.c.l.b16 %v1379
      %v1436 = vunpack.c.l.b16 %v1380
      %v1437 = vunpack.c.l.b16 %v1381
      %v1438 = vunpack.c.l.b16 %v1382
      %v1439 = vunpack.c.l.b16 %v1383
      %v1440 = vunpack.c.l.b16 %v1384
      %v1441 = vunpack.c.l.b16 %v1385
      %v1442 = vunpack.c.l.b16 %v1386
      %v1443 = vunpack.c.l.b16 %v1387
      %v1444 = vunpack.c.l.b16 %v1388
      %v1445 = vunpack.c.l.b16 %v1389
      %v1446 = vunpack.c.l.b16 %v1390
      %v1447 = vunpack.c.l.b16 %v1391
      %v1448 = vpack.c.b16 %v1433, %v1432
      %v1449 = vpack.c.b16 %v1435, %v1434
      %v1450 = vpack.c.b16 %v1437, %v1436
      %v1451 = vpack.c.b16 %v1439, %v1438
      %v1452 = vpack.c.b16 %v1441, %v1440
      %v1453 = vpack.c.b16 %v1443, %v1442
      %v1454 = vpack.c.b16 %v1445, %v1444
      %v1455 = vpack.c.b16 %v1447, %v1446
      %1464 = vmatprep.subr.bf16.mxu0 0
      %1465 = vmatpush1.bf16.msra.mxu0 %v1448
      %1466 = vmatprep.subr.bf16.mxu0 0
      %1467 = vmatpush1.bf16.msra.mxu0 %v1449
      %1468 = vmatprep.subr.bf16.mxu0 0
      %1469 = vmatpush1.bf16.msra.mxu0 %v1450
      %1470 = vmatprep.subr.bf16.mxu0 0
      %1471 = vmatpush1.bf16.msra.mxu0 %v1451
      %1472 = vmatprep.subr.bf16.mxu0 0
      %1473 = vmatpush1.bf16.msra.mxu0 %v1452
      %1474 = vmatprep.subr.bf16.mxu0 0
      %1475 = vmatpush1.bf16.msra.mxu0 %v1453
      %1476 = vmatprep.subr.bf16.mxu0 0
      %1477 = vmatpush1.bf16.msra.mxu0 %v1454
      %1478 = vmatprep.subr.bf16.mxu0 0
      %1479 = vmatpush1.bf16.msra.mxu0 %v1455
      %1480 = vmatprep.subr.bf16.mxu0 0
      %1481 = vmatpush1.bf16.msra.mxu0 0
      %1482 = vmatprep.subr.bf16.mxu0 0
      %1483 = vmatpush1.bf16.msra.mxu0 0
      %1484 = vmatprep.subr.bf16.mxu0 0
      %1485 = vmatpush1.bf16.msra.mxu0 0
      %1486 = vmatprep.subr.bf16.mxu0 0
      %1487 = vmatpush1.bf16.msra.mxu0 0
      %1488 = vmatprep.subr.bf16.mxu0 0
      %1489 = vmatpush1.bf16.msra.mxu0 0
      %1490 = vmatprep.subr.bf16.mxu0 0
      %1491 = vmatpush1.bf16.msra.mxu0 0
      %1492 = vmatprep.subr.bf16.mxu0 0
      %1493 = vmatpush1.bf16.msra.mxu0 0
      %1494 = vmatprep.subr.bf16.mxu0 0
      %1495 = vmatpush1.bf16.msra.mxu0 0
      %1496 = vmatprep.mubr.bf16.mxu0 0
      %1497 = vmatmul.mubr.bf16.gmra.mrb[0].mxu0 %v1408
      %v1498 = vpop.f32.mrb[0].mxu0
      %v1499 = vadd.f32 0.0, %v1498
      %v1500 = vpop.f32.mrb[0].mxu0
      %v1501 = vpop.f32.mrb[0].mxu0
      %v1502 = vadd.f32 0.0, %v1501
      %v1503 = vpop.f32.mrb[0].mxu0
      %1504 = vmatprep.mubr.bf16.mxu0 0
      %1505 = vmatmul.mubr.bf16.gmra.mrb[0].mxu0 %v1409
      %v1506 = vpop.f32.mrb[0].mxu0
      %v1507 = vadd.f32 0.0, %v1506
      %v1508 = vpop.f32.mrb[0].mxu0
      %v1509 = vpop.f32.mrb[0].mxu0
      %v1510 = vadd.f32 0.0, %v1509
      %v1511 = vpop.f32.mrb[0].mxu0
      %1512 = vmatprep.mubr.bf16.mxu0 0
      %1513 = vmatmul.mubr.bf16.gmra.mrb[0].mxu0 %v1410
      %v1514 = vpop.f32.mrb[0].mxu0
      %v1515 = vadd.f32 0.0, %v1514
      %v1516 = vpop.f32.mrb[0].mxu0
      %v1517 = vpop.f32.mrb[0].mxu0
      %v1518 = vadd.f32 0.0, %v1517
      %v1519 = vpop.f32.mrb[0].mxu0
      %1520 = vmatprep.mubr.bf16.mxu0 0
      %1521 = vmatmul.mubr.bf16.gmra.mrb[0].mxu0 %v1411
      %v1522 = vpop.f32.mrb[0].mxu0
      %v1523 = vadd.f32 0.0, %v1522
      %v1524 = vpop.f32.mrb[0].mxu0
      %v1525 = vpop.f32.mrb[0].mxu0
      %v1526 = vadd.f32 0.0, %v1525
      %v1527 = vpop.f32.mrb[0].mxu0
      %1528 = vdwg.mxu0
      %v1529 = vadd.f32 %v1360, %v1499
      %v1530 = vadd.f32 %v1361, %v1502
      %v1531 = vadd.f32 %v1362, %v1507
      %v1532 = vadd.f32 %v1363, %v1510
      %v1533 = vadd.f32 %v1364, %v1515
      %v1534 = vadd.f32 %v1365, %v1518
      %v1535 = vadd.f32 %v1366, %v1523
      %v1536 = vadd.f32 %v1367, %v1526
      %v1537 = vld [vmem:[%s544] sm:$0xf]
      %v1538 = vld [vmem:[%s544 + $0x4] sm:$0x1]
      %v1539 = vld [vmem:[%s544 + $0x8] sm:$0xf]
      %v1540 = vld [vmem:[%s544 + $0xc] sm:$0x1]
      %v1541 = vld [vmem:[%s544 + $0x10] sm:$0xf]
      %v1542 = vld [vmem:[%s544 + $0x14] sm:$0x1]
      %v1543 = vld [vmem:[%s544 + $0x18] sm:$0xf]
      %v1544 = vld [vmem:[%s544 + $0x1c] sm:$0x1]
      %v1545 = vld [vmem:[%s544 + $0x20] sm:$0xf]
      %v1546 = vld [vmem:[%s544 + $0x24] sm:$0x1]
      %v1547 = vld [vmem:[%s544 + $0x28] sm:$0xf]
      %v1548 = vld [vmem:[%s544 + $0x2c] sm:$0x1]
      %v1549 = vld [vmem:[%s544 + $0x30] sm:$0xf]
      %v1550 = vld [vmem:[%s544 + $0x34] sm:$0x1]
      %v1551 = vld [vmem:[%s544 + $0x38] sm:$0xf]
      %v1552 = vld [vmem:[%s544 + $0x3c] sm:$0x1]
      %v1554 = vshrl.u32 %v1537, 16
      %v1556 = vrot.slane %v1554, 4
      %v1557 = vshll.u32 %v1537, 16
      %v1559 = vrot.slane %v1557, 5
      %v1560 = vor.u32 %v1556, %v1559
      %v1561 = vrot.slane %v1560, 4
      %v1563 = vshll.u32 %v1538, 16
      %v1565 = vrot.slane %v1563, 5
      %v1566 = vsel %vm761, %v1561, %v1565
      %v1568 = vshrl.u32 %v1539, 16
      %v1570 = vrot.slane %v1568, 4
      %v1571 = vshll.u32 %v1539, 16
      %v1573 = vrot.slane %v1571, 5
      %v1574 = vor.u32 %v1570, %v1573
      %v1575 = vrot.slane %v1574, 4
      %v1577 = vshll.u32 %v1540, 16
      %v1579 = vrot.slane %v1577, 5
      %v1580 = vsel %vm761, %v1575, %v1579
      %v1582 = vshrl.u32 %v1541, 16
      %v1584 = vrot.slane %v1582, 4
      %v1585 = vshll.u32 %v1541, 16
      %v1587 = vrot.slane %v1585, 5
      %v1588 = vor.u32 %v1584, %v1587
      %v1589 = vrot.slane %v1588, 4
      %v1591 = vshll.u32 %v1542, 16
      %v1593 = vrot.slane %v1591, 5
      %v1594 = vsel %vm761, %v1589, %v1593
      %v1596 = vshrl.u32 %v1543, 16
      %v1598 = vrot.slane %v1596, 4
      %v1599 = vshll.u32 %v1543, 16
      %v1601 = vrot.slane %v1599, 5
      %v1602 = vor.u32 %v1598, %v1601
      %v1603 = vrot.slane %v1602, 4
      %v1605 = vshll.u32 %v1544, 16
      %v1607 = vrot.slane %v1605, 5
      %v1608 = vsel %vm761, %v1603, %v1607
      %v1610 = vshrl.u32 %v1545, 16
      %v1612 = vrot.slane %v1610, 4
      %v1613 = vshll.u32 %v1545, 16
      %v1615 = vrot.slane %v1613, 5
      %v1616 = vor.u32 %v1612, %v1615
      %v1617 = vrot.slane %v1616, 4
      %v1619 = vshll.u32 %v1546, 16
      %v1621 = vrot.slane %v1619, 5
      %v1622 = vsel %vm761, %v1617, %v1621
      %v1624 = vshrl.u32 %v1547, 16
      %v1626 = vrot.slane %v1624, 4
      %v1627 = vshll.u32 %v1547, 16
      %v1629 = vrot.slane %v1627, 5
      %v1630 = vor.u32 %v1626, %v1629
      %v1631 = vrot.slane %v1630, 4
      %v1633 = vshll.u32 %v1548, 16
      %v1635 = vrot.slane %v1633, 5
      %v1636 = vsel %vm761, %v1631, %v1635
      %v1638 = vshrl.u32 %v1549, 16
      %v1640 = vrot.slane %v1638, 4
      %v1641 = vshll.u32 %v1549, 16
      %v1643 = vrot.slane %v1641, 5
      %v1644 = vor.u32 %v1640, %v1643
      %v1645 = vrot.slane %v1644, 4
      %v1647 = vshll.u32 %v1550, 16
      %v1649 = vrot.slane %v1647, 5
      %v1650 = vsel %vm761, %v1645, %v1649
      %v1652 = vshrl.u32 %v1551, 16
      %v1654 = vrot.slane %v1652, 4
      %v1655 = vshll.u32 %v1551, 16
      %v1657 = vrot.slane %v1655, 5
      %v1658 = vor.u32 %v1654, %v1657
      %v1659 = vrot.slane %v1658, 4
      %v1661 = vshll.u32 %v1552, 16
      %v1663 = vrot.slane %v1661, 5
      %v1664 = vsel %vm761, %v1659, %v1663
      %v1665 = vld [vmem:[%s3 + $0x100] sm:$0xf]
      %v1666 = vld [vmem:[%s3 + $0x104] sm:$0xf]
      %v1667 = vld [vmem:[%s3 + $0x108] sm:$0xf]
      %v1668 = vld [vmem:[%s3 + $0x10c] sm:$0xf]
      %v1669 = vld [vmem:[%s3 + $0x110] sm:$0xf]
      %v1670 = vld [vmem:[%s3 + $0x114] sm:$0xf]
      %v1671 = vld [vmem:[%s3 + $0x118] sm:$0xf]
      %v1672 = vld [vmem:[%s3 + $0x11c] sm:$0xf]
      %v1673 = vld [vmem:[%s3 + $0x120] sm:$0xf]
      %v1674 = vld [vmem:[%s3 + $0x124] sm:$0xf]
      %v1675 = vld [vmem:[%s3 + $0x128] sm:$0xf]
      %v1676 = vld [vmem:[%s3 + $0x12c] sm:$0xf]
      %v1677 = vld [vmem:[%s3 + $0x130] sm:$0xf]
      %v1678 = vld [vmem:[%s3 + $0x134] sm:$0xf]
      %v1679 = vld [vmem:[%s3 + $0x138] sm:$0xf]
      %v1680 = vld [vmem:[%s3 + $0x13c] sm:$0xf]
      %v1681 = vunpack.c.l.b16 %v1566
      %v1682 = vunpack.c.l.b16 %v1580
      %v1683 = vunpack.c.l.b16 %v1594
      %v1684 = vunpack.c.l.b16 %v1608
      %v1685 = vunpack.c.l.b16 %v1622
      %v1686 = vunpack.c.l.b16 %v1636
      %v1687 = vunpack.c.l.b16 %v1650
      %v1688 = vunpack.c.l.b16 %v1664
      %v1689 = vpack.c.b16 %v1682, %v1681
      %v1690 = vpack.c.b16 %v1684, %v1683
      %v1691 = vpack.c.b16 %v1686, %v1685
      %v1692 = vpack.c.b16 %v1688, %v1687
      %v1713 = vunpack.c.l.b16 %v1665
      %v1714 = vunpack.c.l.b16 %v1666
      %v1715 = vunpack.c.l.b16 %v1667
      %v1716 = vunpack.c.l.b16 %v1668
      %v1717 = vunpack.c.l.b16 %v1669
      %v1718 = vunpack.c.l.b16 %v1670
      %v1719 = vunpack.c.l.b16 %v1671
      %v1720 = vunpack.c.l.b16 %v1672
      %v1721 = vunpack.c.l.b16 %v1673
      %v1722 = vunpack.c.l.b16 %v1674
      %v1723 = vunpack.c.l.b16 %v1675
      %v1724 = vunpack.c.l.b16 %v1676
      %v1725 = vunpack.c.l.b16 %v1677
      %v1726 = vunpack.c.l.b16 %v1678
      %v1727 = vunpack.c.l.b16 %v1679
      %v1728 = vunpack.c.l.b16 %v1680
      %v1729 = vpack.c.b16 %v1714, %v1713
      %v1730 = vpack.c.b16 %v1716, %v1715
      %v1731 = vpack.c.b16 %v1718, %v1717
      %v1732 = vpack.c.b16 %v1720, %v1719
      %v1733 = vpack.c.b16 %v1722, %v1721
      %v1734 = vpack.c.b16 %v1724, %v1723
      %v1735 = vpack.c.b16 %v1726, %v1725
      %v1736 = vpack.c.b16 %v1728, %v1727
      %1745 = vmatprep.subr.bf16.mxu0 0
      %1746 = vmatpush1.bf16.msra.mxu0 %v1729
      %1747 = vmatprep.subr.bf16.mxu0 0
      %1748 = vmatpush1.bf16.msra.mxu0 %v1730
      %1749 = vmatprep.subr.bf16.mxu0 0
      %1750 = vmatpush1.bf16.msra.mxu0 %v1731
      %1751 = vmatprep.subr.bf16.mxu0 0
      %1752 = vmatpush1.bf16.msra.mxu0 %v1732
      %1753 = vmatprep.subr.bf16.mxu0 0
      %1754 = vmatpush1.bf16.msra.mxu0 %v1733
      %1755 = vmatprep.subr.bf16.mxu0 0
      %1756 = vmatpush1.bf16.msra.mxu0 %v1734
      %1757 = vmatprep.subr.bf16.mxu0 0
      %1758 = vmatpush1.bf16.msra.mxu0 %v1735
      %1759 = vmatprep.subr.bf16.mxu0 0
      %1760 = vmatpush1.bf16.msra.mxu0 %v1736
      %1761 = vmatprep.subr.bf16.mxu0 0
      %1762 = vmatpush1.bf16.msra.mxu0 0
      %1763 = vmatprep.subr.bf16.mxu0 0
      %1764 = vmatpush1.bf16.msra.mxu0 0
      %1765 = vmatprep.subr.bf16.mxu0 0
      %1766 = vmatpush1.bf16.msra.mxu0 0
      %1767 = vmatprep.subr.bf16.mxu0 0
      %1768 = vmatpush1.bf16.msra.mxu0 0
      %1769 = vmatprep.subr.bf16.mxu0 0
      %1770 = vmatpush1.bf16.msra.mxu0 0
      %1771 = vmatprep.subr.bf16.mxu0 0
      %1772 = vmatpush1.bf16.msra.mxu0 0
      %1773 = vmatprep.subr.bf16.mxu0 0
      %1774 = vmatpush1.bf16.msra.mxu0 0
      %1775 = vmatprep.subr.bf16.mxu0 0
      %1776 = vmatpush1.bf16.msra.mxu0 0
      %1777 = vmatprep.mubr.bf16.mxu0 0
      %1778 = vmatmul.mubr.bf16.gmra.mrb[0].mxu0 %v1689
      %v1779 = vpop.f32.mrb[0].mxu0
      %v1780 = vadd.f32 0.0, %v1779
      %v1781 = vpop.f32.mrb[0].mxu0
      %v1782 = vpop.f32.mrb[0].mxu0
      %v1783 = vadd.f32 0.0, %v1782
      %v1784 = vpop.f32.mrb[0].mxu0
      %1785 = vmatprep.mubr.bf16.mxu0 0
      %1786 = vmatmul.mubr.bf16.gmra.mrb[0].mxu0 %v1690
      %v1787 = vpop.f32.mrb[0].mxu0
      %v1788 = vadd.f32 0.0, %v1787
      %v1789 = vpop.f32.mrb[0].mxu0
      %v1790 = vpop.f32.mrb[0].mxu0
      %v1791 = vadd.f32 0.0, %v1790
      %v1792 = vpop.f32.mrb[0].mxu0
      %1793 = vmatprep.mubr.bf16.mxu0 0
      %1794 = vmatmul.mubr.bf16.gmra.mrb[0].mxu0 %v1691
      %v1795 = vpop.f32.mrb[0].mxu0
      %v1796 = vadd.f32 0.0, %v1795
      %v1797 = vpop.f32.mrb[0].mxu0
      %v1798 = vpop.f32.mrb[0].mxu0
      %v1799 = vadd.f32 0.0, %v1798
      %v1800 = vpop.f32.mrb[0].mxu0
      %1801 = vmatprep.mubr.bf16.mxu0 0
      %1802 = vmatmul.mubr.bf16.gmra.mrb[0].mxu0 %v1692
      %v1803 = vpop.f32.mrb[0].mxu0
      %v1804 = vadd.f32 0.0, %v1803
      %v1805 = vpop.f32.mrb[0].mxu0
      %v1806 = vpop.f32.mrb[0].mxu0
      %v1807 = vadd.f32 0.0, %v1806
      %v1808 = vpop.f32.mrb[0].mxu0
      %1809 = vdwg.mxu0
      %v1810 = vadd.f32 %v1529, %v1780
      %v1811 = vadd.f32 %v1530, %v1783
      %v1812 = vadd.f32 %v1531, %v1788
      %v1813 = vadd.f32 %v1532, %v1791
      %v1814 = vadd.f32 %v1533, %v1796
      %v1815 = vadd.f32 %v1534, %v1799
      %v1816 = vadd.f32 %v1535, %v1804
      %v1817 = vadd.f32 %v1536, %v1807
      %v1818 = vld [vmem:[%s544] sm:$0xe]
      %v1819 = vld [vmem:[%s544 + $0x8] sm:$0xe]
      %v1820 = vld [vmem:[%s544 + $0x10] sm:$0xe]
      %v1821 = vld [vmem:[%s544 + $0x18] sm:$0xe]
      %v1822 = vld [vmem:[%s544 + $0x20] sm:$0xe]
      %v1823 = vld [vmem:[%s544 + $0x28] sm:$0xe]
      %v1824 = vld [vmem:[%s544 + $0x30] sm:$0xe]
      %v1825 = vld [vmem:[%s544 + $0x38] sm:$0xe]
      %v1842 = vrot.slane %v1818, 5
      %v1843 = vrot.slane %v1842, 4
      %v1844 = vrot.slane %v1538, 5
      %v1845 = vsel %vm1182, %v1843, %v1844
      %v1846 = vrot.slane %v1819, 5
      %v1847 = vrot.slane %v1846, 4
      %v1848 = vrot.slane %v1540, 5
      %v1849 = vsel %vm1182, %v1847, %v1848
      %v1850 = vrot.slane %v1820, 5
      %v1851 = vrot.slane %v1850, 4
      %v1852 = vrot.slane %v1542, 5
      %v1853 = vsel %vm1182, %v1851, %v1852
      %v1854 = vrot.slane %v1821, 5
      %v1855 = vrot.slane %v1854, 4
      %v1856 = vrot.slane %v1544, 5
      %v1857 = vsel %vm1182, %v1855, %v1856
      %v1858 = vrot.slane %v1822, 5
      %v1859 = vrot.slane %v1858, 4
      %v1860 = vrot.slane %v1546, 5
      %v1861 = vsel %vm1182, %v1859, %v1860
      %v1862 = vrot.slane %v1823, 5
      %v1863 = vrot.slane %v1862, 4
      %v1864 = vrot.slane %v1548, 5
      %v1865 = vsel %vm1182, %v1863, %v1864
      %v1866 = vrot.slane %v1824, 5
      %v1867 = vrot.slane %v1866, 4
      %v1868 = vrot.slane %v1550, 5
      %v1869 = vsel %vm1182, %v1867, %v1868
      %v1870 = vrot.slane %v1825, 5
      %v1871 = vrot.slane %v1870, 4
      %v1872 = vrot.slane %v1552, 5
      %v1873 = vsel %vm1182, %v1871, %v1872
      %v1874 = vld [vmem:[%s3 + $0x140] sm:$0xf]
      %v1875 = vld [vmem:[%s3 + $0x144] sm:$0xf]
      %v1876 = vld [vmem:[%s3 + $0x148] sm:$0xf]
      %v1877 = vld [vmem:[%s3 + $0x14c] sm:$0xf]
      %v1878 = vld [vmem:[%s3 + $0x150] sm:$0xf]
      %v1879 = vld [vmem:[%s3 + $0x154] sm:$0xf]
      %v1880 = vld [vmem:[%s3 + $0x158] sm:$0xf]
      %v1881 = vld [vmem:[%s3 + $0x15c] sm:$0xf]
      %v1882 = vld [vmem:[%s3 + $0x160] sm:$0xf]
      %v1883 = vld [vmem:[%s3 + $0x164] sm:$0xf]
      %v1884 = vld [vmem:[%s3 + $0x168] sm:$0xf]
      %v1885 = vld [vmem:[%s3 + $0x16c] sm:$0xf]
      %v1886 = vld [vmem:[%s3 + $0x170] sm:$0xf]
      %v1887 = vld [vmem:[%s3 + $0x174] sm:$0xf]
      %v1888 = vld [vmem:[%s3 + $0x178] sm:$0xf]
      %v1889 = vld [vmem:[%s3 + $0x17c] sm:$0xf]
      %v1890 = vunpack.c.l.b16 %v1845
      %v1891 = vunpack.c.l.b16 %v1849
      %v1892 = vunpack.c.l.b16 %v1853
      %v1893 = vunpack.c.l.b16 %v1857
      %v1894 = vunpack.c.l.b16 %v1861
      %v1895 = vunpack.c.l.b16 %v1865
      %v1896 = vunpack.c.l.b16 %v1869
      %v1897 = vunpack.c.l.b16 %v1873
      %v1898 = vpack.c.b16 %v1891, %v1890
      %v1899 = vpack.c.b16 %v1893, %v1892
      %v1900 = vpack.c.b16 %v1895, %v1894
      %v1901 = vpack.c.b16 %v1897, %v1896
      %v1922 = vunpack.c.l.b16 %v1874
      %v1923 = vunpack.c.l.b16 %v1875
      %v1924 = vunpack.c.l.b16 %v1876
      %v1925 = vunpack.c.l.b16 %v1877
      %v1926 = vunpack.c.l.b16 %v1878
      %v1927 = vunpack.c.l.b16 %v1879
      %v1928 = vunpack.c.l.b16 %v1880
      %v1929 = vunpack.c.l.b16 %v1881
      %v1930 = vunpack.c.l.b16 %v1882
      %v1931 = vunpack.c.l.b16 %v1883
      %v1932 = vunpack.c.l.b16 %v1884
      %v1933 = vunpack.c.l.b16 %v1885
      %v1934 = vunpack.c.l.b16 %v1886
      %v1935 = vunpack.c.l.b16 %v1887
      %v1936 = vunpack.c.l.b16 %v1888
      %v1937 = vunpack.c.l.b16 %v1889
      %v1938 = vpack.c.b16 %v1923, %v1922
      %v1939 = vpack.c.b16 %v1925, %v1924
      %v1940 = vpack.c.b16 %v1927, %v1926
      %v1941 = vpack.c.b16 %v1929, %v1928
      %v1942 = vpack.c.b16 %v1931, %v1930
      %v1943 = vpack.c.b16 %v1933, %v1932
      %v1944 = vpack.c.b16 %v1935, %v1934
      %v1945 = vpack.c.b16 %v1937, %v1936
      %1954 = vmatprep.subr.bf16.mxu0 0
      %1955 = vmatpush1.bf16.msra.mxu0 %v1938
      %1956 = vmatprep.subr.bf16.mxu0 0
      %1957 = vmatpush1.bf16.msra.mxu0 %v1939
      %1958 = vmatprep.subr.bf16.mxu0 0
      %1959 = vmatpush1.bf16.msra.mxu0 %v1940
      %1960 = vmatprep.subr.bf16.mxu0 0
      %1961 = vmatpush1.bf16.msra.mxu0 %v1941
      %1962 = vmatprep.subr.bf16.mxu0 0
      %1963 = vmatpush1.bf16.msra.mxu0 %v1942
      %1964 = vmatprep.subr.bf16.mxu0 0
      %1965 = vmatpush1.bf16.msra.mxu0 %v1943
      %1966 = vmatprep.subr.bf16.mxu0 0
      %1967 = vmatpush1.bf16.msra.mxu0 %v1944
      %1968 = vmatprep.subr.bf16.mxu0 0
      %1969 = vmatpush1.bf16.msra.mxu0 %v1945
      %1970 = vmatprep.subr.bf16.mxu0 0
      %1971 = vmatpush1.bf16.msra.mxu0 0
      %1972 = vmatprep.subr.bf16.mxu0 0
      %1973 = vmatpush1.bf16.msra.mxu0 0
      %1974 = vmatprep.subr.bf16.mxu0 0
      %1975 = vmatpush1.bf16.msra.mxu0 0
      %1976 = vmatprep.subr.bf16.mxu0 0
      %1977 = vmatpush1.bf16.msra.mxu0 0
      %1978 = vmatprep.subr.bf16.mxu0 0
      %1979 = vmatpush1.bf16.msra.mxu0 0
      %1980 = vmatprep.subr.bf16.mxu0 0
      %1981 = vmatpush1.bf16.msra.mxu0 0
      %1982 = vmatprep.subr.bf16.mxu0 0
      %1983 = vmatpush1.bf16.msra.mxu0 0
      %1984 = vmatprep.subr.bf16.mxu0 0
      %1985 = vmatpush1.bf16.msra.mxu0 0
      %1986 = vmatprep.mubr.bf16.mxu0 0
      %1987 = vmatmul.mubr.bf16.gmra.mrb[0].mxu0 %v1898
      %v1988 = vpop.f32.mrb[0].mxu0
      %v1989 = vadd.f32 0.0, %v1988
      %v1990 = vpop.f32.mrb[0].mxu0
      %v1991 = vpop.f32.mrb[0].mxu0
      %v1992 = vadd.f32 0.0, %v1991
      %v1993 = vpop.f32.mrb[0].mxu0
      %1994 = vmatprep.mubr.bf16.mxu0 0
      %1995 = vmatmul.mubr.bf16.gmra.mrb[0].mxu0 %v1899
      %v1996 = vpop.f32.mrb[0].mxu0
      %v1997 = vadd.f32 0.0, %v1996
      %v1998 = vpop.f32.mrb[0].mxu0
      %v1999 = vpop.f32.mrb[0].mxu0
      %v2000 = vadd.f32 0.0, %v1999
      %v2001 = vpop.f32.mrb[0].mxu0
      %2002 = vmatprep.mubr.bf16.mxu0 0
      %2003 = vmatmul.mubr.bf16.gmra.mrb[0].mxu0 %v1900
      %v2004 = vpop.f32.mrb[0].mxu0
      %v2005 = vadd.f32 0.0, %v2004
      %v2006 = vpop.f32.mrb[0].mxu0
      %v2007 = vpop.f32.mrb[0].mxu0
      %v2008 = vadd.f32 0.0, %v2007
      %v2009 = vpop.f32.mrb[0].mxu0
      %2010 = vmatprep.mubr.bf16.mxu0 0
      %2011 = vmatmul.mubr.bf16.gmra.mrb[0].mxu0 %v1901
      %v2012 = vpop.f32.mrb[0].mxu0
      %v2013 = vadd.f32 0.0, %v2012
      %v2014 = vpop.f32.mrb[0].mxu0
      %v2015 = vpop.f32.mrb[0].mxu0
      %v2016 = vadd.f32 0.0, %v2015
      %v2017 = vpop.f32.mrb[0].mxu0
      %2018 = vdwg.mxu0
      %v2019 = vadd.f32 %v1810, %v1989
      %v2020 = vadd.f32 %v1811, %v1992
      %v2021 = vadd.f32 %v1812, %v1997
      %v2022 = vadd.f32 %v1813, %v2000
      %v2023 = vadd.f32 %v1814, %v2005
      %v2024 = vadd.f32 %v1815, %v2008
      %v2025 = vadd.f32 %v1816, %v2013
      %v2026 = vadd.f32 %v1817, %v2016
      %s2027 = scalar_lea.vmem [#allocation2], 16
      %v2028 = vld [vmem:[%s2027] sm:$0xf]
      %v2029 = vld [vmem:[%s2027 + $0x8] sm:$0xf]
      %v2030 = vld [vmem:[%s2027 + $0x10] sm:$0xf]
      %v2031 = vld [vmem:[%s2027 + $0x18] sm:$0xf]
      %v2032 = vld [vmem:[%s2027 + $0x20] sm:$0xf]
      %v2033 = vld [vmem:[%s2027 + $0x28] sm:$0xf]
      %v2034 = vld [vmem:[%s2027 + $0x30] sm:$0xf]
      %v2035 = vld [vmem:[%s2027 + $0x38] sm:$0xf]
      %v2036 = vld [vmem:[%s3 + $0x180] sm:$0xf]
      %v2037 = vld [vmem:[%s3 + $0x184] sm:$0xf]
      %v2038 = vld [vmem:[%s3 + $0x188] sm:$0xf]
      %v2039 = vld [vmem:[%s3 + $0x18c] sm:$0xf]
      %v2040 = vld [vmem:[%s3 + $0x190] sm:$0xf]
      %v2041 = vld [vmem:[%s3 + $0x194] sm:$0xf]
      %v2042 = vld [vmem:[%s3 + $0x198] sm:$0xf]
      %v2043 = vld [vmem:[%s3 + $0x19c] sm:$0xf]
      %v2044 = vld [vmem:[%s3 + $0x1a0] sm:$0xf]
      %v2045 = vld [vmem:[%s3 + $0x1a4] sm:$0xf]
      %v2046 = vld [vmem:[%s3 + $0x1a8] sm:$0xf]
      %v2047 = vld [vmem:[%s3 + $0x1ac] sm:$0xf]
      %v2048 = vld [vmem:[%s3 + $0x1b0] sm:$0xf]
      %v2049 = vld [vmem:[%s3 + $0x1b4] sm:$0xf]
      %v2050 = vld [vmem:[%s3 + $0x1b8] sm:$0xf]
      %v2051 = vld [vmem:[%s3 + $0x1bc] sm:$0xf]
      %v2060 = vunpack.c.l.b16 %v2028
      %v2061 = vunpack.c.l.b16 %v2029
      %v2062 = vunpack.c.l.b16 %v2030
      %v2063 = vunpack.c.l.b16 %v2031
      %v2064 = vunpack.c.l.b16 %v2032
      %v2065 = vunpack.c.l.b16 %v2033
      %v2066 = vunpack.c.l.b16 %v2034
      %v2067 = vunpack.c.l.b16 %v2035
      %v2068 = vpack.c.b16 %v2061, %v2060
      %v2069 = vpack.c.b16 %v2063, %v2062
      %v2070 = vpack.c.b16 %v2065, %v2064
      %v2071 = vpack.c.b16 %v2067, %v2066
      %v2092 = vunpack.c.l.b16 %v2036
      %v2093 = vunpack.c.l.b16 %v2037
      %v2094 = vunpack.c.l.b16 %v2038
      %v2095 = vunpack.c.l.b16 %v2039
      %v2096 = vunpack.c.l.b16 %v2040
      %v2097 = vunpack.c.l.b16 %v2041
      %v2098 = vunpack.c.l.b16 %v2042
      %v2099 = vunpack.c.l.b16 %v2043
      %v2100 = vunpack.c.l.b16 %v2044
      %v2101 = vunpack.c.l.b16 %v2045
      %v2102 = vunpack.c.l.b16 %v2046
      %v2103 = vunpack.c.l.b16 %v2047
      %v2104 = vunpack.c.l.b16 %v2048
      %v2105 = vunpack.c.l.b16 %v2049
      %v2106 = vunpack.c.l.b16 %v2050
      %v2107 = vunpack.c.l.b16 %v2051
      %v2108 = vpack.c.b16 %v2093, %v2092
      %v2109 = vpack.c.b16 %v2095, %v2094
      %v2110 = vpack.c.b16 %v2097, %v2096
      %v2111 = vpack.c.b16 %v2099, %v2098
      %v2112 = vpack.c.b16 %v2101, %v2100
      %v2113 = vpack.c.b16 %v2103, %v2102
      %v2114 = vpack.c.b16 %v2105, %v2104
      %v2115 = vpack.c.b16 %v2107, %v2106
      %2124 = vmatprep.subr.bf16.mxu0 0
      %2125 = vmatpush1.bf16.msra.mxu0 %v2108
      %2126 = vmatprep.subr.bf16.mxu0 0
      %2127 = vmatpush1.bf16.msra.mxu0 %v2109
      %2128 = vmatprep.subr.bf16.mxu0 0
      %2129 = vmatpush1.bf16.msra.mxu0 %v2110
      %2130 = vmatprep.subr.bf16.mxu0 0
      %2131 = vmatpush1.bf16.msra.mxu0 %v2111
      %2132 = vmatprep.subr.bf16.mxu0 0
      %2133 = vmatpush1.bf16.msra.mxu0 %v2112
      %2134 = vmatprep.subr.bf16.mxu0 0
      %2135 = vmatpush1.bf16.msra.mxu0 %v2113
      %2136 = vmatprep.subr.bf16.mxu0 0
      %2137 = vmatpush1.bf16.msra.mxu0 %v2114
      %2138 = vmatprep.subr.bf16.mxu0 0
      %2139 = vmatpush1.bf16.msra.mxu0 %v2115
      %2140 = vmatprep.subr.bf16.mxu0 0
      %2141 = vmatpush1.bf16.msra.mxu0 0
      %2142 = vmatprep.subr.bf16.mxu0 0
      %2143 = vmatpush1.bf16.msra.mxu0 0
      %2144 = vmatprep.subr.bf16.mxu0 0
      %2145 = vmatpush1.bf16.msra.mxu0 0
      %2146 = vmatprep.subr.bf16.mxu0 0
      %2147 = vmatpush1.bf16.msra.mxu0 0
      %2148 = vmatprep.subr.bf16.mxu0 0
      %2149 = vmatpush1.bf16.msra.mxu0 0
      %2150 = vmatprep.subr.bf16.mxu0 0
      %2151 = vmatpush1.bf16.msra.mxu0 0
      %2152 = vmatprep.subr.bf16.mxu0 0
      %2153 = vmatpush1.bf16.msra.mxu0 0
      %2154 = vmatprep.subr.bf16.mxu0 0
      %2155 = vmatpush1.bf16.msra.mxu0 0
      %2156 = vmatprep.mubr.bf16.mxu0 0
      %2157 = vmatmul.mubr.bf16.gmra.mrb[0].mxu0 %v2068
      %v2158 = vpop.f32.mrb[0].mxu0
      %v2159 = vadd.f32 0.0, %v2158
      %v2160 = vpop.f32.mrb[0].mxu0
      %v2161 = vpop.f32.mrb[0].mxu0
      %v2162 = vadd.f32 0.0, %v2161
      %v2163 = vpop.f32.mrb[0].mxu0
      %2164 = vmatprep.mubr.bf16.mxu0 0
      %2165 = vmatmul.mubr.bf16.gmra.mrb[0].mxu0 %v2069
      %v2166 = vpop.f32.mrb[0].mxu0
      %v2167 = vadd.f32 0.0, %v2166
      %v2168 = vpop.f32.mrb[0].mxu0
      %v2169 = vpop.f32.mrb[0].mxu0
      %v2170 = vadd.f32 0.0, %v2169
      %v2171 = vpop.f32.mrb[0].mxu0
      %2172 = vmatprep.mubr.bf16.mxu0 0
      %2173 = vmatmul.mubr.bf16.gmra.mrb[0].mxu0 %v2070
      %v2174 = vpop.f32.mrb[0].mxu0
      %v2175 = vadd.f32 0.0, %v2174
      %v2176 = vpop.f32.mrb[0].mxu0
      %v2177 = vpop.f32.mrb[0].mxu0
      %v2178 = vadd.f32 0.0, %v2177
      %v2179 = vpop.f32.mrb[0].mxu0
      %2180 = vmatprep.mubr.bf16.mxu0 0
      %2181 = vmatmul.mubr.bf16.gmra.mrb[0].mxu0 %v2071
      %v2182 = vpop.f32.mrb[0].mxu0
      %v2183 = vadd.f32 0.0, %v2182
      %v2184 = vpop.f32.mrb[0].mxu0
      %v2185 = vpop.f32.mrb[0].mxu0
      %v2186 = vadd.f32 0.0, %v2185
      %v2187 = vpop.f32.mrb[0].mxu0
      %2188 = vdwg.mxu0
      %v2189 = vadd.f32 %v2019, %v2159
      %v2190 = vadd.f32 %v2020, %v2162
      %v2191 = vadd.f32 %v2021, %v2167
      %v2192 = vadd.f32 %v2022, %v2170
      %v2193 = vadd.f32 %v2023, %v2175
      %v2194 = vadd.f32 %v2024, %v2178
      %v2195 = vadd.f32 %v2025, %v2183
      %v2196 = vadd.f32 %v2026, %v2186
      %v2197 = vld [vmem:[%s2027] sm:$0xf]
      %v2198 = vld [vmem:[%s2027 + $0x4] sm:$0x1]
      %v2199 = vld [vmem:[%s2027 + $0x8] sm:$0xf]
      %v2200 = vld [vmem:[%s2027 + $0xc] sm:$0x1]
      %v2201 = vld [vmem:[%s2027 + $0x10] sm:$0xf]
      %v2202 = vld [vmem:[%s2027 + $0x14] sm:$0x1]
      %v2203 = vld [vmem:[%s2027 + $0x18] sm:$0xf]
      %v2204 = vld [vmem:[%s2027 + $0x1c] sm:$0x1]
      %v2205 = vld [vmem:[%s2027 + $0x20] sm:$0xf]
      %v2206 = vld [vmem:[%s2027 + $0x24] sm:$0x1]
      %v2207 = vld [vmem:[%s2027 + $0x28] sm:$0xf]
      %v2208 = vld [vmem:[%s2027 + $0x2c] sm:$0x1]
      %v2209 = vld [vmem:[%s2027 + $0x30] sm:$0xf]
      %v2210 = vld [vmem:[%s2027 + $0x34] sm:$0x1]
      %v2211 = vld [vmem:[%s2027 + $0x38] sm:$0xf]
      %v2212 = vld [vmem:[%s2027 + $0x3c] sm:$0x1]
      %v2214 = vshrl.u32 %v2197, 16
      %v2216 = vrot.slane %v2214, 4
      %v2217 = vshll.u32 %v2197, 16
      %v2219 = vrot.slane %v2217, 5
      %v2220 = vor.u32 %v2216, %v2219
      %v2221 = vrot.slane %v2220, 4
      %v2223 = vshll.u32 %v2198, 16
      %v2225 = vrot.slane %v2223, 5
      %v2226 = vsel %vm761, %v2221, %v2225
      %v2228 = vshrl.u32 %v2199, 16
      %v2230 = vrot.slane %v2228, 4
      %v2231 = vshll.u32 %v2199, 16
      %v2233 = vrot.slane %v2231, 5
      %v2234 = vor.u32 %v2230, %v2233
      %v2235 = vrot.slane %v2234, 4
      %v2237 = vshll.u32 %v2200, 16
      %v2239 = vrot.slane %v2237, 5
      %v2240 = vsel %vm761, %v2235, %v2239
      %v2242 = vshrl.u32 %v2201, 16
      %v2244 = vrot.slane %v2242, 4
      %v2245 = vshll.u32 %v2201, 16
      %v2247 = vrot.slane %v2245, 5
      %v2248 = vor.u32 %v2244, %v2247
      %v2249 = vrot.slane %v2248, 4
      %v2251 = vshll.u32 %v2202, 16
      %v2253 = vrot.slane %v2251, 5
      %v2254 = vsel %vm761, %v2249, %v2253
      %v2256 = vshrl.u32 %v2203, 16
      %v2258 = vrot.slane %v2256, 4
      %v2259 = vshll.u32 %v2203, 16
      %v2261 = vrot.slane %v2259, 5
      %v2262 = vor.u32 %v2258, %v2261
      %v2263 = vrot.slane %v2262, 4
      %v2265 = vshll.u32 %v2204, 16
      %v2267 = vrot.slane %v2265, 5
      %v2268 = vsel %vm761, %v2263, %v2267
      %v2270 = vshrl.u32 %v2205, 16
      %v2272 = vrot.slane %v2270, 4
      %v2273 = vshll.u32 %v2205, 16
      %v2275 = vrot.slane %v2273, 5
      %v2276 = vor.u32 %v2272, %v2275
      %v2277 = vrot.slane %v2276, 4
      %v2279 = vshll.u32 %v2206, 16
      %v2281 = vrot.slane %v2279, 5
      %v2282 = vsel %vm761, %v2277, %v2281
      %v2284 = vshrl.u32 %v2207, 16
      %v2286 = vrot.slane %v2284, 4
      %v2287 = vshll.u32 %v2207, 16
      %v2289 = vrot.slane %v2287, 5
      %v2290 = vor.u32 %v2286, %v2289
      %v2291 = vrot.slane %v2290, 4
      %v2293 = vshll.u32 %v2208, 16
      %v2295 = vrot.slane %v2293, 5
      %v2296 = vsel %vm761, %v2291, %v2295
      %v2298 = vshrl.u32 %v2209, 16
      %v2300 = vrot.slane %v2298, 4
      %v2301 = vshll.u32 %v2209, 16
      %v2303 = vrot.slane %v2301, 5
      %v2304 = vor.u32 %v2300, %v2303
      %v2305 = vrot.slane %v2304, 4
      %v2307 = vshll.u32 %v2210, 16
      %v2309 = vrot.slane %v2307, 5
      %v2310 = vsel %vm761, %v2305, %v2309
      %v2312 = vshrl.u32 %v2211, 16
      %v2314 = vrot.slane %v2312, 4
      %v2315 = vshll.u32 %v2211, 16
      %v2317 = vrot.slane %v2315, 5
      %v2318 = vor.u32 %v2314, %v2317
      %v2319 = vrot.slane %v2318, 4
      %v2321 = vshll.u32 %v2212, 16
      %v2323 = vrot.slane %v2321, 5
      %v2324 = vsel %vm761, %v2319, %v2323
      %v2325 = vld [vmem:[%s3 + $0x1c0] sm:$0xf]
      %v2326 = vld [vmem:[%s3 + $0x1c4] sm:$0xf]
      %v2327 = vld [vmem:[%s3 + $0x1c8] sm:$0xf]
      %v2328 = vld [vmem:[%s3 + $0x1cc] sm:$0xf]
      %v2329 = vld [vmem:[%s3 + $0x1d0] sm:$0xf]
      %v2330 = vld [vmem:[%s3 + $0x1d4] sm:$0xf]
      %v2331 = vld [vmem:[%s3 + $0x1d8] sm:$0xf]
      %v2332 = vld [vmem:[%s3 + $0x1dc] sm:$0xf]
      %v2333 = vld [vmem:[%s3 + $0x1e0] sm:$0xf]
      %v2334 = vld [vmem:[%s3 + $0x1e4] sm:$0xf]
      %v2335 = vld [vmem:[%s3 + $0x1e8] sm:$0xf]
      %v2336 = vld [vmem:[%s3 + $0x1ec] sm:$0xf]
      %v2337 = vld [vmem:[%s3 + $0x1f0] sm:$0xf]
      %v2338 = vld [vmem:[%s3 + $0x1f4] sm:$0xf]
      %v2339 = vld [vmem:[%s3 + $0x1f8] sm:$0xf]
      %v2340 = vld [vmem:[%s3 + $0x1fc] sm:$0xf]
      %v2341 = vunpack.c.l.b16 %v2226
      %v2342 = vunpack.c.l.b16 %v2240
      %v2343 = vunpack.c.l.b16 %v2254
      %v2344 = vunpack.c.l.b16 %v2268
      %v2345 = vunpack.c.l.b16 %v2282
      %v2346 = vunpack.c.l.b16 %v2296
      %v2347 = vunpack.c.l.b16 %v2310
      %v2348 = vunpack.c.l.b16 %v2324
      %v2349 = vpack.c.b16 %v2342, %v2341
      %v2350 = vpack.c.b16 %v2344, %v2343
      %v2351 = vpack.c.b16 %v2346, %v2345
      %v2352 = vpack.c.b16 %v2348, %v2347
      %v2373 = vunpack.c.l.b16 %v2325
      %v2374 = vunpack.c.l.b16 %v2326
      %v2375 = vunpack.c.l.b16 %v2327
      %v2376 = vunpack.c.l.b16 %v2328
      %v2377 = vunpack.c.l.b16 %v2329
      %v2378 = vunpack.c.l.b16 %v2330
      %v2379 = vunpack.c.l.b16 %v2331
      %v2380 = vunpack.c.l.b16 %v2332
      %v2381 = vunpack.c.l.b16 %v2333
      %v2382 = vunpack.c.l.b16 %v2334
      %v2383 = vunpack.c.l.b16 %v2335
      %v2384 = vunpack.c.l.b16 %v2336
      %v2385 = vunpack.c.l.b16 %v2337
      %v2386 = vunpack.c.l.b16 %v2338
      %v2387 = vunpack.c.l.b16 %v2339
      %v2388 = vunpack.c.l.b16 %v2340
      %v2389 = vpack.c.b16 %v2374, %v2373
      %v2390 = vpack.c.b16 %v2376, %v2375
      %v2391 = vpack.c.b16 %v2378, %v2377
      %v2392 = vpack.c.b16 %v2380, %v2379
      %v2393 = vpack.c.b16 %v2382, %v2381
      %v2394 = vpack.c.b16 %v2384, %v2383
      %v2395 = vpack.c.b16 %v2386, %v2385
      %v2396 = vpack.c.b16 %v2388, %v2387
      %2405 = vmatprep.subr.bf16.mxu0 0
      %2406 = vmatpush1.bf16.msra.mxu0 %v2389
      %2407 = vmatprep.subr.bf16.mxu0 0
      %2408 = vmatpush1.bf16.msra.mxu0 %v2390
      %2409 = vmatprep.subr.bf16.mxu0 0
      %2410 = vmatpush1.bf16.msra.mxu0 %v2391
      %2411 = vmatprep.subr.bf16.mxu0 0
      %2412 = vmatpush1.bf16.msra.mxu0 %v2392
      %2413 = vmatprep.subr.bf16.mxu0 0
      %2414 = vmatpush1.bf16.msra.mxu0 %v2393
      %2415 = vmatprep.subr.bf16.mxu0 0
      %2416 = vmatpush1.bf16.msra.mxu0 %v2394
      %2417 = vmatprep.subr.bf16.mxu0 0
      %2418 = vmatpush1.bf16.msra.mxu0 %v2395
      %2419 = vmatprep.subr.bf16.mxu0 0
      %2420 = vmatpush1.bf16.msra.mxu0 %v2396
      %2421 = vmatprep.subr.bf16.mxu0 0
      %2422 = vmatpush1.bf16.msra.mxu0 0
      %2423 = vmatprep.subr.bf16.mxu0 0
      %2424 = vmatpush1.bf16.msra.mxu0 0
      %2425 = vmatprep.subr.bf16.mxu0 0
      %2426 = vmatpush1.bf16.msra.mxu0 0
      %2427 = vmatprep.subr.bf16.mxu0 0
      %2428 = vmatpush1.bf16.msra.mxu0 0
      %2429 = vmatprep.subr.bf16.mxu0 0
      %2430 = vmatpush1.bf16.msra.mxu0 0
      %2431 = vmatprep.subr.bf16.mxu0 0
      %2432 = vmatpush1.bf16.msra.mxu0 0
      %2433 = vmatprep.subr.bf16.mxu0 0
      %2434 = vmatpush1.bf16.msra.mxu0 0
      %2435 = vmatprep.subr.bf16.mxu0 0
      %2436 = vmatpush1.bf16.msra.mxu0 0
      %2437 = vmatprep.mubr.bf16.mxu0 0
      %2438 = vmatmul.mubr.bf16.gmra.mrb[0].mxu0 %v2349
      %v2439 = vpop.f32.mrb[0].mxu0
      %v2440 = vadd.f32 0.0, %v2439
      %v2441 = vpop.f32.mrb[0].mxu0
      %v2442 = vpop.f32.mrb[0].mxu0
      %v2443 = vadd.f32 0.0, %v2442
      %v2444 = vpop.f32.mrb[0].mxu0
      %2445 = vmatprep.mubr.bf16.mxu0 0
      %2446 = vmatmul.mubr.bf16.gmra.mrb[0].mxu0 %v2350
      %v2447 = vpop.f32.mrb[0].mxu0
      %v2448 = vadd.f32 0.0, %v2447
      %v2449 = vpop.f32.mrb[0].mxu0
      %v2450 = vpop.f32.mrb[0].mxu0
      %v2451 = vadd.f32 0.0, %v2450
      %v2452 = vpop.f32.mrb[0].mxu0
      %2453 = vmatprep.mubr.bf16.mxu0 0
      %2454 = vmatmul.mubr.bf16.gmra.mrb[0].mxu0 %v2351
      %v2455 = vpop.f32.mrb[0].mxu0
      %v2456 = vadd.f32 0.0, %v2455
      %v2457 = vpop.f32.mrb[0].mxu0
      %v2458 = vpop.f32.mrb[0].mxu0
      %v2459 = vadd.f32 0.0, %v2458
      %v2460 = vpop.f32.mrb[0].mxu0
      %2461 = vmatprep.mubr.bf16.mxu0 0
      %2462 = vmatmul.mubr.bf16.gmra.mrb[0].mxu0 %v2352
      %v2463 = vpop.f32.mrb[0].mxu0
      %v2464 = vadd.f32 0.0, %v2463
      %v2465 = vpop.f32.mrb[0].mxu0
      %v2466 = vpop.f32.mrb[0].mxu0
      %v2467 = vadd.f32 0.0, %v2466
      %v2468 = vpop.f32.mrb[0].mxu0
      %2469 = vdwg.mxu0
      %v2470 = vadd.f32 %v2189, %v2440
      %v2471 = vadd.f32 %v2190, %v2443
      %v2472 = vadd.f32 %v2191, %v2448
      %v2473 = vadd.f32 %v2192, %v2451
      %v2474 = vadd.f32 %v2193, %v2456
      %v2475 = vadd.f32 %v2194, %v2459
      %v2476 = vadd.f32 %v2195, %v2464
      %v2477 = vadd.f32 %v2196, %v2467
      %v2478 = vld [vmem:[%s2027] sm:$0xe]
      %v2479 = vld [vmem:[%s2027 + $0x8] sm:$0xe]
      %v2480 = vld [vmem:[%s2027 + $0x10] sm:$0xe]
      %v2481 = vld [vmem:[%s2027 + $0x18] sm:$0xe]
      %v2482 = vld [vmem:[%s2027 + $0x20] sm:$0xe]
      %v2483 = vld [vmem:[%s2027 + $0x28] sm:$0xe]
      %v2484 = vld [vmem:[%s2027 + $0x30] sm:$0xe]
      %v2485 = vld [vmem:[%s2027 + $0x38] sm:$0xe]
      %v2502 = vrot.slane %v2478, 5
      %v2503 = vrot.slane %v2502, 4
      %v2504 = vrot.slane %v2198, 5
      %v2505 = vsel %vm1182, %v2503, %v2504
      %v2506 = vrot.slane %v2479, 5
      %v2507 = vrot.slane %v2506, 4
      %v2508 = vrot.slane %v2200, 5
      %v2509 = vsel %vm1182, %v2507, %v2508
      %v2510 = vrot.slane %v2480, 5
      %v2511 = vrot.slane %v2510, 4
      %v2512 = vrot.slane %v2202, 5
      %v2513 = vsel %vm1182, %v2511, %v2512
      %v2514 = vrot.slane %v2481, 5
      %v2515 = vrot.slane %v2514, 4
      %v2516 = vrot.slane %v2204, 5
      %v2517 = vsel %vm1182, %v2515, %v2516
      %v2518 = vrot.slane %v2482, 5
      %v2519 = vrot.slane %v2518, 4
      %v2520 = vrot.slane %v2206, 5
      %v2521 = vsel %vm1182, %v2519, %v2520
      %v2522 = vrot.slane %v2483, 5
      %v2523 = vrot.slane %v2522, 4
      %v2524 = vrot.slane %v2208, 5
      %v2525 = vsel %vm1182, %v2523, %v2524
      %v2526 = vrot.slane %v2484, 5
      %v2527 = vrot.slane %v2526, 4
      %v2528 = vrot.slane %v2210, 5
      %v2529 = vsel %vm1182, %v2527, %v2528
      %v2530 = vrot.slane %v2485, 5
      %v2531 = vrot.slane %v2530, 4
      %v2532 = vrot.slane %v2212, 5
      %v2533 = vsel %vm1182, %v2531, %v2532
      %v2534 = vld [vmem:[%s3 + $0x200] sm:$0xf]
      %v2535 = vld [vmem:[%s3 + $0x204] sm:$0xf]
      %v2536 = vld [vmem:[%s3 + $0x208] sm:$0xf]
      %v2537 = vld [vmem:[%s3 + $0x20c] sm:$0xf]
      %v2538 = vld [vmem:[%s3 + $0x210] sm:$0xf]
      %v2539 = vld [vmem:[%s3 + $0x214] sm:$0xf]
      %v2540 = vld [vmem:[%s3 + $0x218] sm:$0xf]
      %v2541 = vld [vmem:[%s3 + $0x21c] sm:$0xf]
      %v2542 = vld [vmem:[%s3 + $0x220] sm:$0xf]
      %v2543 = vld [vmem:[%s3 + $0x224] sm:$0xf]
      %v2544 = vld [vmem:[%s3 + $0x228] sm:$0xf]
      %v2545 = vld [vmem:[%s3 + $0x22c] sm:$0xf]
      %v2546 = vld [vmem:[%s3 + $0x230] sm:$0xf]
      %v2547 = vld [vmem:[%s3 + $0x234] sm:$0xf]
      %v2548 = vld [vmem:[%s3 + $0x238] sm:$0xf]
      %v2549 = vld [vmem:[%s3 + $0x23c] sm:$0xf]
      %v2550 = vunpack.c.l.b16 %v2505
      %v2551 = vunpack.c.l.b16 %v2509
      %v2552 = vunpack.c.l.b16 %v2513
      %v2553 = vunpack.c.l.b16 %v2517
      %v2554 = vunpack.c.l.b16 %v2521
      %v2555 = vunpack.c.l.b16 %v2525
      %v2556 = vunpack.c.l.b16 %v2529
      %v2557 = vunpack.c.l.b16 %v2533
      %v2558 = vpack.c.b16 %v2551, %v2550
      %v2559 = vpack.c.b16 %v2553, %v2552
      %v2560 = vpack.c.b16 %v2555, %v2554
      %v2561 = vpack.c.b16 %v2557, %v2556
      %v2582 = vunpack.c.l.b16 %v2534
      %v2583 = vunpack.c.l.b16 %v2535
      %v2584 = vunpack.c.l.b16 %v2536
      %v2585 = vunpack.c.l.b16 %v2537
      %v2586 = vunpack.c.l.b16 %v2538
      %v2587 = vunpack.c.l.b16 %v2539
      %v2588 = vunpack.c.l.b16 %v2540
      %v2589 = vunpack.c.l.b16 %v2541
      %v2590 = vunpack.c.l.b16 %v2542
      %v2591 = vunpack.c.l.b16 %v2543
      %v2592 = vunpack.c.l.b16 %v2544
      %v2593 = vunpack.c.l.b16 %v2545
      %v2594 = vunpack.c.l.b16 %v2546
      %v2595 = vunpack.c.l.b16 %v2547
      %v2596 = vunpack.c.l.b16 %v2548
      %v2597 = vunpack.c.l.b16 %v2549
      %v2598 = vpack.c.b16 %v2583, %v2582
      %v2599 = vpack.c.b16 %v2585, %v2584
      %v2600 = vpack.c.b16 %v2587, %v2586
      %v2601 = vpack.c.b16 %v2589, %v2588
      %v2602 = vpack.c.b16 %v2591, %v2590
      %v2603 = vpack.c.b16 %v2593, %v2592
      %v2604 = vpack.c.b16 %v2595, %v2594
      %v2605 = vpack.c.b16 %v2597, %v2596
      %2614 = vmatprep.subr.bf16.mxu0 0
      %2615 = vmatpush1.bf16.msra.mxu0 %v2598
      %2616 = vmatprep.subr.bf16.mxu0 0
      %2617 = vmatpush1.bf16.msra.mxu0 %v2599
      %2618 = vmatprep.subr.bf16.mxu0 0
      %2619 = vmatpush1.bf16.msra.mxu0 %v2600
      %2620 = vmatprep.subr.bf16.mxu0 0
      %2621 = vmatpush1.bf16.msra.mxu0 %v2601
      %2622 = vmatprep.subr.bf16.mxu0 0
      %2623 = vmatpush1.bf16.msra.mxu0 %v2602
      %2624 = vmatprep.subr.bf16.mxu0 0
      %2625 = vmatpush1.bf16.msra.mxu0 %v2603
      %2626 = vmatprep.subr.bf16.mxu0 0
      %2627 = vmatpush1.bf16.msra.mxu0 %v2604
      %2628 = vmatprep.subr.bf16.mxu0 0
      %2629 = vmatpush1.bf16.msra.mxu0 %v2605
      %2630 = vmatprep.subr.bf16.mxu0 0
      %2631 = vmatpush1.bf16.msra.mxu0 0
      %2632 = vmatprep.subr.bf16.mxu0 0
      %2633 = vmatpush1.bf16.msra.mxu0 0
      %2634 = vmatprep.subr.bf16.mxu0 0
      %2635 = vmatpush1.bf16.msra.mxu0 0
      %2636 = vmatprep.subr.bf16.mxu0 0
      %2637 = vmatpush1.bf16.msra.mxu0 0
      %2638 = vmatprep.subr.bf16.mxu0 0
      %2639 = vmatpush1.bf16.msra.mxu0 0
      %2640 = vmatprep.subr.bf16.mxu0 0
      %2641 = vmatpush1.bf16.msra.mxu0 0
      %2642 = vmatprep.subr.bf16.mxu0 0
      %2643 = vmatpush1.bf16.msra.mxu0 0
      %2644 = vmatprep.subr.bf16.mxu0 0
      %2645 = vmatpush1.bf16.msra.mxu0 0
      %2646 = vmatprep.mubr.bf16.mxu0 0
      %2647 = vmatmul.mubr.bf16.gmra.mrb[0].mxu0 %v2558
      %v2648 = vpop.f32.mrb[0].mxu0
      %v2649 = vadd.f32 0.0, %v2648
      %v2650 = vpop.f32.mrb[0].mxu0
      %v2651 = vpop.f32.mrb[0].mxu0
      %v2652 = vadd.f32 0.0, %v2651
      %v2653 = vpop.f32.mrb[0].mxu0
      %2654 = vmatprep.mubr.bf16.mxu0 0
      %2655 = vmatmul.mubr.bf16.gmra.mrb[0].mxu0 %v2559
      %v2656 = vpop.f32.mrb[0].mxu0
      %v2657 = vadd.f32 0.0, %v2656
      %v2658 = vpop.f32.mrb[0].mxu0
      %v2659 = vpop.f32.mrb[0].mxu0
      %v2660 = vadd.f32 0.0, %v2659
      %v2661 = vpop.f32.mrb[0].mxu0
      %2662 = vmatprep.mubr.bf16.mxu0 0
      %2663 = vmatmul.mubr.bf16.gmra.mrb[0].mxu0 %v2560
      %v2664 = vpop.f32.mrb[0].mxu0
      %v2665 = vadd.f32 0.0, %v2664
      %v2666 = vpop.f32.mrb[0].mxu0
      %v2667 = vpop.f32.mrb[0].mxu0
      %v2668 = vadd.f32 0.0, %v2667
      %v2669 = vpop.f32.mrb[0].mxu0
      %2670 = vmatprep.mubr.bf16.mxu0 0
      %2671 = vmatmul.mubr.bf16.gmra.mrb[0].mxu0 %v2561
      %v2672 = vpop.f32.mrb[0].mxu0
      %v2673 = vadd.f32 0.0, %v2672
      %v2674 = vpop.f32.mrb[0].mxu0
      %v2675 = vpop.f32.mrb[0].mxu0
      %v2676 = vadd.f32 0.0, %v2675
      %v2677 = vpop.f32.mrb[0].mxu0
      %2678 = vdwg.mxu0
      %v2679 = vadd.f32 %v2470, %v2649
      %v2680 = vadd.f32 %v2471, %v2652
      %v2681 = vadd.f32 %v2472, %v2657
      %v2682 = vadd.f32 %v2473, %v2660
      %v2683 = vadd.f32 %v2474, %v2665
      %v2684 = vadd.f32 %v2475, %v2668
      %v2685 = vadd.f32 %v2476, %v2673
      %v2686 = vadd.f32 %v2477, %v2676
      %v2687 = vpack.c.bf16 %v2679, %v2679
      %v2688 = vpack.c.bf16 %v2680, %v2680
      %v2689 = vpack.c.bf16 %v2681, %v2681
      %v2690 = vpack.c.bf16 %v2682, %v2682
      %v2691 = vpack.c.bf16 %v2683, %v2683
      %v2692 = vpack.c.bf16 %v2684, %v2684
      %v2693 = vpack.c.bf16 %v2685, %v2685
      %v2694 = vpack.c.bf16 %v2686, %v2686
      %2695 = vst [vmem:[%s399] sm:$0xf] %v2687
      %2696 = vst [vmem:[%s399 + $0x4] sm:$0xf] %v2688
      %2697 = vst [vmem:[%s399 + $0x8] sm:$0xf] %v2689
      %2698 = vst [vmem:[%s399 + $0xc] sm:$0xf] %v2690
      %2699 = vst [vmem:[%s399 + $0x10] sm:$0xf] %v2691
      %2700 = vst [vmem:[%s399 + $0x14] sm:$0xf] %v2692
      %2701 = vst [vmem:[%s399 + $0x18] sm:$0xf] %v2693
      %2702 = vst [vmem:[%s399 + $0x1c] sm:$0xf] %v2694
      %v2703 = vadd.f32 %v2679, %v2680
      %v2704 = vadd.f32 %v2703, %v2681
      %v2705 = vadd.f32 %v2704, %v2682
      %v2706 = vadd.f32 %v2705, %v2683
      %v2707 = vadd.f32 %v2706, %v2684
      %v2708 = vadd.f32 %v2707, %v2685
      %v2709 = vadd.f32 %v2708, %v2686
      %v2710 = vrot.slane %v2709, 4
      %v2711 = vadd.f32 %v2709, %v2710
      %v2712 = vrot.slane %v2711, 2
      %v2713 = vadd.f32 %v2711, %v2712
      %v2714 = vrot.slane %v2713, 1
      %v2715 = vadd.f32 %v2713, %v2714
      %2716 = vst [vmem:[%s405] sm:$0x1] %v2715
      %v2717 = vmul.f32 %v2679, %v2679
      %v2718 = vmul.f32 %v2680, %v2680
      %v2719 = vmul.f32 %v2681, %v2681
      %v2720 = vmul.f32 %v2682, %v2682
      %v2721 = vmul.f32 %v2683, %v2683
      %v2722 = vmul.f32 %v2684, %v2684
      %v2723 = vmul.f32 %v2685, %v2685
      %v2724 = vmul.f32 %v2686, %v2686
      %v2725 = vadd.f32 %v2717, %v2718
      %v2726 = vadd.f32 %v2725, %v2719
      %v2727 = vadd.f32 %v2726, %v2720
      %v2728 = vadd.f32 %v2727, %v2721
      %v2729 = vadd.f32 %v2728, %v2722
      %v2730 = vadd.f32 %v2729, %v2723
      %v2731 = vadd.f32 %v2730, %v2724
      %v2732 = vrot.slane %v2731, 4
      %v2733 = vadd.f32 %v2731, %v2732
      %v2734 = vrot.slane %v2733, 2
      %v2735 = vadd.f32 %v2733, %v2734
      %v2736 = vrot.slane %v2735, 1
      %v2737 = vadd.f32 %v2735, %v2736
      %2738 = vst [vmem:[%s405 + $0x1] sm:$0x1] %v2737
      %s2739 = smul.u32 8, %s22
      %p2740 = scmp.lt.s32.totalorder %s21, 1
      %s2741 = scalar_select %p2740, %s21, 1
      %p2742 = scmp.lt.s32.totalorder %s2739, 7
      %s2743 = scalar_select %p2742, %s2739, 7
      %s2744 = smul.addr %s2741, 8
      %s2745 = sadd.s32 %s2743, %s2744
      %s2746 = smul.addr %s2745, 4
      %s2747 = scalar_lea.vmem %s4, %s2746
      %s2748 = sadd.s32 %s21, %s22
      %p2749 = scmp.lt.s32.totalorder %s2748, 1
      %s2750 = scalar_select %p2749, %s2748, 1
      %s2751 = smul.addr %s2750, 2
      %s2752 = scalar_lea.vmem %s5, %s2751
      // Predicated region
      $region45: #{down_forward.3} parent=35 // pred_check
        %p2753 = pneg %p170
      $region46: #{down_forward.3} parent=35 // pred_check_branch
        %2755 = sbr.rel (%p2753) target = $region48
      $region47: #{down_forward.3} parent=35 // pred_region
        %s2756 = smul.u32 8, %s22
      $region48: #{down_forward.3} parent=35 // pred_fallthru
        _
      // Predicated region
      $region49: #{down_forward.3} parent=35 // pred_check
        %p2757 = pneg %p198
      $region50: #{down_forward.3} parent=35 // pred_check_branch
        %2759 = sbr.rel (%p2757) target = $region52
      $region51: #{down_forward.3} parent=35 // pred_region
        %s2760 = sadd.s32 %s21, %s22
      $region52: #{down_forward.3} parent=35 // pred_fallthru
        _
    $region36: #{down_forward.3} parent=5 // pred_fallthru
      _
    %p2761 = scmp.le.s32.totalorder 2, %s12
    // Predicated region
    $region53: #{down_forward.3} parent=5 // pred_check
      %p2762 = pneg %p2761
    $region54: #{down_forward.3} parent=5 // pred_check_branch
      %2764 = sbr.rel (%p2762) target = $region56
    $region55: #{down_forward.3} parent=5 // pred_region
      %s2765 = ssub.s32 %s12, 2
      // Predicated region
      $region57: #{down_forward.3} parent=55 // pred_check
        %p2766 = pneg %p176
      $region58: #{down_forward.3} parent=55 // pred_check_branch
        %2768 = sbr.rel (%p2766) target = $region60
      $region59: #{down_forward.3} parent=55 // pred_region
        %s2769 = smul.u32 8, %s24
        %p2770 = scmp.lt.s32.totalorder %s23, 1
        %s2771 = scalar_select %p2770, %s23, 1
        %p2772 = scmp.lt.s32.totalorder %s2769, 7
        %s2773 = scalar_select %p2772, %s2769, 7
        %s2774 = smul.addr %s2771, 8
        %s2775 = sadd.s32 %s2773, %s2774
        %s2776 = smul.addr %s2775, 4
        %s2777 = scalar_lea.vmem %s4, %s2776
      $region60: #{down_forward.3} parent=55 // pred_fallthru
        _
      // Predicated region
      $region61: #{down_forward.3} parent=55 // pred_check
        %p2778 = pneg %p204
      $region62: #{down_forward.3} parent=55 // pred_check_branch
        %2780 = sbr.rel (%p2778) target = $region64
      $region63: #{down_forward.3} parent=55 // pred_region
        %s2781 = sadd.s32 %s23, %s24
        %p2782 = scmp.lt.s32.totalorder %s2781, 1
        %s2783 = scalar_select %p2782, %s2781, 1
        %s2784 = smul.addr %s2783, 2
        %s2785 = scalar_lea.vmem %s5, %s2784
      $region64: #{down_forward.3} parent=55 // pred_fallthru
        _
    $region56: #{down_forward.3} parent=5 // pred_fallthru
      _
  $region6: #{down_forward.3} parent=0 // loop_footer
    %s16 = sadd.s32 1, %s12
  $region7: #{down_forward.3} parent=0 // loop_footer_branch
    %11 = sbr.rel target = $region3
  $region8: #{down_forward.3} parent=0 // loop_exit
    _

</llo_original>
